<compile_context>
chip_gen: v7x
topology: tpu7x:2x2x1
jax: 0.10.0
libtpu: 0.0.40
codegen_flags: <defaults>
</compile_context>

<pallas_src>
import functools

import jax
import jax.numpy as jnp
from jax.experimental import pallas as pl
from jax.experimental.pallas import tpu as pltpu

_VMEM_LIMIT = 32 * 1024 * 1024  # explicit scoped-VMEM budget, safe on v5e/v6e/v7x


# ------------------------------------------------------------------------ helpers
def _pick_tile(dim, target, align):
    """Largest tile <= target that is a multiple of `align` and divides `dim`;
    falls back to the full dim (always legal: block == full array dim)."""
    if dim <= target:
        return dim
    t = max((target // align) * align, align)
    while t > align and dim % t != 0:
        t -= align
    return t if dim % t == 0 else dim


def _gelu(x):
    # GPT-2 "gelu_new" (tanh approximation), kept in fp32 (v5e has no bf16 VPU/EUP).
    return 0.5 * x * (1.0 + jnp.tanh(0.7978845608028654 *
                                     (x + 0.044715 * x * x * x)))


# ------------------------------------------------------------------------ kernels
def _linear_kernel(*refs, activation, has_residual):
    """Tiled matmul: bf16 x bf16 -> fp32 accumulator; bias/activation/residual fused
    at the last K step."""
    if has_residual:
        x_ref, w_ref, b_ref, res_ref, o_ref, acc_ref = refs
    else:
        x_ref, w_ref, b_ref, o_ref, acc_ref = refs
        res_ref = None

    k = pl.program_id(2)

    @pl.when(k == 0)
    def _():
        acc_ref[...] = jnp.zeros_like(acc_ref)

    acc_ref[...] += jnp.dot(x_ref[...].astype(jnp.bfloat16), w_ref[...],
                            preferred_element_type=jnp.float32)

    @pl.when(k == pl.num_programs(2) - 1)
    def _():
        acc = acc_ref[...] + b_ref[...].astype(jnp.float32)
        if activation == "gelu":
            acc = _gelu(acc)
        if res_ref is not None:
            acc = acc + res_ref[...].astype(jnp.float32)
        o_ref[...] = acc.astype(o_ref.dtype)


def linear(x, w, b, activation="none", residual=None, out_dtype=jnp.float32,
           tm=256, tn=256, tk=512):
    """x: (..., K) @ w: (K, D) + b -> (..., D). bf16 MXU inputs, fp32 accumulation.
    Optional fused residual add (residual has the output shape).  x / residual are
    DMA'd in their native dtype and cast inside the kernel."""
    K, D = w.shape
    lead = x.shape[:-1]
    x2 = x.reshape(-1, K)
    N = x2.shape[0]

    tm = _pick_tile(N, tm, 8)
    tn = _pick_tile(D, tn, 128)
    tk = _pick_tile(K, tk, 128)
    grid = (N // tm, D // tn, K // tk)

    in_specs = [
        pl.BlockSpec((tm, tk), lambda i, j, k: (i, k)),
        pl.BlockSpec((tk, tn), lambda i, j, k: (k, j)),
        pl.BlockSpec((1, tn), lambda i, j, k: (0, j)),      # k-invariant: fetched once
    ]
    args = [x2, w.astype(jnp.bfloat16), b.reshape(1, D).astype(jnp.float32)]
    has_residual = residual is not None
    if has_residual:
        in_specs.append(pl.BlockSpec((tm, tn), lambda i, j, k: (i, j)))  # k-invariant
        args.append(residual.reshape(-1, D))

    out = pl.pallas_call(
        functools.partial(_linear_kernel, activation=activation,
                          has_residual=has_residual),
        out_shape=jax.ShapeDtypeStruct((N, D), out_dtype),
        grid=grid,
        in_specs=in_specs,
        out_specs=pl.BlockSpec((tm, tn), lambda i, j, k: (i, j)),
        scratch_shapes=[pltpu.VMEM((tm, tn), jnp.float32)],
        compiler_params=pltpu.CompilerParams(
            dimension_semantics=("parallel", "parallel", "arbitrary"),
            vmem_limit_bytes=_VMEM_LIMIT),
    )(*args)
    return out.reshape(*lead, D)


def _ln_linear_kernel(x_ref, g_ref, bl_ref, w_ref, b_ref, o_ref, *, activation, eps):
    """LayerNorm(x) in fp32, then bf16 matmul with fp32 accumulation (K untiled)."""
    x = x_ref[...].astype(jnp.float32)
    mean = jnp.mean(x, axis=-1, keepdims=True)
    c = x - mean
    var = jnp.mean(c * c, axis=-1, keepdims=True)
    xn = c * jax.lax.rsqrt(var + eps) * g_ref[...] + bl_ref[...]
    acc = jnp.dot(xn.astype(jnp.bfloat16), w_ref[...],
                  preferred_element_type=jnp.float32)
    acc = acc + b_ref[...].astype(jnp.float32)
    if activation == "gelu":
        acc = _gelu(acc)
    o_ref[...] = acc.astype(o_ref.dtype)


def ln_linear(x, g, bl, w, b, activation="none", out_dtype=jnp.float32,
              tm=256, tn=256, eps=1e-5):
    """Fused LayerNorm + Linear: (..., K) -> (..., D)."""
    K, D = w.shape
    lead = x.shape[:-1]
    x2 = x.reshape(-1, K)
    N = x2.shape[0]

    tm = _pick_tile(N, tm, 8)
    tn = _pick_tile(D, tn, 128)
    grid = (N // tm, D // tn)

    out = pl.pallas_call(
        functools.partial(_ln_linear_kernel, activation=activation, eps=eps),
        out_shape=jax.ShapeDtypeStruct((N, D), out_dtype),
        grid=grid,
        in_specs=[
            pl.BlockSpec((tm, K), lambda i, j: (i, 0)),
            pl.BlockSpec((1, K), lambda i, j: (0, 0)),
            pl.BlockSpec((1, K), lambda i, j: (0, 0)),
            pl.BlockSpec((K, tn), lambda i, j: (0, j)),
            pl.BlockSpec((1, tn), lambda i, j: (0, j)),
        ],
        out_specs=pl.BlockSpec((tm, tn), lambda i, j: (i, j)),
        compiler_params=pltpu.CompilerParams(
            dimension_semantics=("parallel", "parallel"),
            vmem_limit_bytes=_VMEM_LIMIT),
    )(x2,
      g.reshape(1, K).astype(jnp.float32),
      bl.reshape(1, K).astype(jnp.float32),
      w.astype(jnp.bfloat16),
      b.reshape(1, D).astype(jnp.float32))
    return out.reshape(*lead, D)


def _layernorm_kernel(x_ref, g_ref, b_ref, o_ref, *, eps):
    x = x_ref[...].astype(jnp.float32)
    mean = jnp.mean(x, axis=-1, keepdims=True)
    c = x - mean
    var = jnp.mean(c * c, axis=-1, keepdims=True)
    o_ref[...] = c * jax.lax.rsqrt(var + eps) * g_ref[...] + b_ref[...]


def layernorm(x, g, b, eps=1e-5, tm=512):
    D = x.shape[-1]
    lead = x.shape[:-1]
    x2 = x.reshape(-1, D)
    N = x2.shape[0]
    tm = _pick_tile(N, tm, 8)
    out = pl.pallas_call(
        functools.partial(_layernorm_kernel, eps=eps),
        out_shape=jax.ShapeDtypeStruct((N, D), jnp.float32),
        grid=(N // tm,),
        in_specs=[pl.BlockSpec((tm, D), lambda i: (i, 0)),
                  pl.BlockSpec((1, D), lambda i: (0, 0)),
                  pl.BlockSpec((1, D), lambda i: (0, 0))],
        out_specs=pl.BlockSpec((tm, D), lambda i: (i, 0)),
        compiler_params=pltpu.CompilerParams(
            dimension_semantics=("parallel",),
            vmem_limit_bytes=_VMEM_LIMIT),
    )(x2, g.reshape(1, D).astype(jnp.float32), b.reshape(1, D).astype(jnp.float32))
    return out.reshape(*lead, D)


def _attn_kernel(q_ref, k_ref, v_ref, o_ref, *, scale):
    """Causal MHA for one batch element, all heads at once. Matmuls in bf16, softmax
    in fp32, EUP reciprocal for the normalization."""
    q = q_ref[0]                      # (H, T, Dh) bf16
    k = k_ref[0]
    v = v_ref[0]
    s = jnp.einsum("htd,hsd->hts", q, k,
                   preferred_element_type=jnp.float32) * scale       # (H, T, T) fp32
    T = s.shape[-1]
    row = jax.lax.broadcasted_iota(jnp.int32, (T, T), 0)
    col = jax.lax.broadcasted_iota(jnp.int32, (T, T), 1)
    s = jnp.where((col <= row)[None, :, :], s, jnp.float32(-1e30))   # causal mask
    m = jnp.max(s, axis=-1, keepdims=True)
    p = jnp.exp(s - m)
    denom = jnp.sum(p, axis=-1, keepdims=True)
    p = p * pl.reciprocal(denom, approx=True)
    o = jnp.einsum("hts,hsd->htd", p.astype(v.dtype), v,
                   preferred_element_type=jnp.float32)
    o_ref[0] = o.astype(o_ref.dtype)


def causal_attention(q, k, v):
    """q, k, v: (B, H, T, Dh) -> (B, H, T, Dh) bf16; one grid step per batch element."""
    B, H, T, Dh = q.shape
    scale = 1.0 / (Dh ** 0.5)
    return pl.pallas_call(
        functools.partial(_attn_kernel, scale=scale),
        out_shape=jax.ShapeDtypeStruct((B, H, T, Dh), jnp.bfloat16),
        grid=(B,),
        in_specs=[pl.BlockSpec((1, H, T, Dh), lambda i: (i, 0, 0, 0))] * 3,
        out_specs=pl.BlockSpec((1, H, T, Dh), lambda i: (i, 0, 0, 0)),
        compiler_params=pltpu.CompilerParams(
            dimension_semantics=("parallel",),
            vmem_limit_bytes=_VMEM_LIMIT),
    )(q.astype(jnp.bfloat16), k.astype(jnp.bfloat16), v.astype(jnp.bfloat16))


# -------------------------------------------------------------------- GPT-2 backbone
def init_gpt2_params(key, d_model, n_layers, max_pos, d_mlp):
    # matmul weights stored in bf16 once (avoids per-call casts); LN/bias/wpe in fp32.
    def nrm(k, shape, dtype=jnp.bfloat16):
        return (0.02 * jax.random.normal(k, shape, jnp.float32)).astype(dtype)

    keys = jax.random.split(key, n_layers + 1)
    params = {
        "wpe": nrm(keys[0], (max_pos, d_model), jnp.float32),
        "lnf_g": jnp.ones((d_model,), jnp.float32),
        "lnf_b": jnp.zeros((d_model,), jnp.float32),
        "layers": [],
    }
    for li in range(n_layers):
        ks = jax.random.split(keys[li + 1], 4)
        params["layers"].append({
            "ln1_g": jnp.ones((d_model,), jnp.float32),
            "ln1_b": jnp.zeros((d_model,), jnp.float32),
            "attn_w": nrm(ks[0], (d_model, 3 * d_model)),
            "attn_b": jnp.zeros((3 * d_model,), jnp.float32),
            "proj_w": nrm(ks[1], (d_model, d_model)),
            "proj_b": jnp.zeros((d_model,), jnp.float32),
            "ln2_g": jnp.ones((d_model,), jnp.float32),
            "ln2_b": jnp.zeros((d_model,), jnp.float32),
            "fc_w": nrm(ks[2], (d_model, d_mlp)),
            "fc_b": jnp.zeros((d_mlp,), jnp.float32),
            "mproj_w": nrm(ks[3], (d_mlp, d_model)),
            "mproj_b": jnp.zeros((d_model,), jnp.float32),
        })
    return params


def gpt2_forward(gp, inputs_embeds, n_heads):
    """GPT2Model(inputs_embeds=...).last_hidden_state (eval mode, no attn mask).
    n_heads is a static Python int (NOT part of the traced params)."""
    B, T, D = inputs_embeds.shape
    H = n_heads
    Dh = D // H
    h = inputs_embeds.astype(jnp.float32) + gp["wpe"][None, :T, :]

    for layer in gp["layers"]:
        # --- self-attention block: LN1 fused into the QKV projection
        qkv = ln_linear(h, layer["ln1_g"], layer["ln1_b"],
                        layer["attn_w"], layer["attn_b"],
                        out_dtype=jnp.bfloat16)                       # (B, T, 3D)
        qkv = qkv.reshape(B, T, 3, H, Dh).transpose(2, 0, 3, 1, 4)    # (3, B, H, T, Dh)
        a = causal_attention(qkv[0], qkv[1], qkv[2])                  # (B, H, T, Dh)
        a = a.transpose(0, 2, 1, 3).reshape(B, T, D)                  # merge heads
        h = linear(a, layer["proj_w"], layer["proj_b"], residual=h)   # residual fused
        # --- MLP block: LN2 fused into fc(gelu); residual fused into mproj
        m = ln_linear(h, layer["ln2_g"], layer["ln2_b"],
                      layer["fc_w"], layer["fc_b"],
                      activation="gelu", out_dtype=jnp.bfloat16)      # (B, T, 4D)
        h = linear(m, layer["mproj_w"], layer["mproj_b"], residual=h)

    return layernorm(h, gp["lnf_g"], gp["lnf_b"])


# ----------------------------------------------------------------------- full model
def init_model_params(key, *, seq_len, c_out, d_model, gpt_layers, max_pos):
    def nrm(k, shape, dtype=jnp.bfloat16):
        return (0.02 * jax.random.normal(k, shape, jnp.float32)).astype(dtype)

    ks = jax.random.split(key, 8)
    return {
        "gpt2": init_gpt2_params(ks[0], d_model, gpt_layers, max_pos, 4 * d_model),
        "in_w": nrm(ks[1], (c_out * 2, d_model)),
        "in_b": jnp.zeros((d_model,), jnp.float32),
        "s_in_w": nrm(ks[2], (seq_len * 2, d_model)),
        "s_in_b": jnp.zeros((d_model,), jnp.float32),
        "lnp_g": jnp.ones((d_model * 2,), jnp.float32),
        "lnp_b": jnp.zeros((d_model * 2,), jnp.float32),
        "slnp_g": jnp.ones((d_model,), jnp.float32),
        "slnp_b": jnp.zeros((d_model,), jnp.float32),
        "out_w": nrm(ks[3], (d_model * 2, c_out)),
        "out_b": jnp.zeros((c_out,), jnp.float32),
        "s_out_w": nrm(ks[4], (d_model, seq_len)),
        "s_out_b": jnp.zeros((seq_len,), jnp.float32),
        "w_w": nrm(ks[5], (c_out * 2, c_out)),
        "w_b": jnp.zeros((c_out,), jnp.float32),
    }
    # note: self.mlp and self.drop exist in __init__ but are unused in forward.


def model_forward(params, x_enc, mask, *, n_heads):
    """Matches Model.imputation(x_enc, mask).  x_enc, mask: (B, L, M) float32."""
    B, L, M = x_enc.shape
    x_enc = jnp.where(mask == 0, 0.0, x_enc)

    # temporal branch: forward + (batch, seq)-flipped sequence, batched into ONE
    # GPT-2 pass (they share all weights and are independent).
    x_m = jnp.concatenate([x_enc, mask], axis=-1)                    # (B, L, 2M)
    re_x_m = jnp.flip(x_m, axis=(0, 1))                              # torch.flip dims=(0,1)
    both = jnp.concatenate([x_m, re_x_m], axis=0)                    # (2B, L, 2M)
    h = linear(both, params["in_w"], params["in_b"])                 # (2B, L, D)
    out_both = gpt2_forward(params["gpt2"], h, n_heads)
    x_m_output = out_both[:B]
    re_dec = jnp.flip(out_both[B:], axis=(0, 1))

    tem_cat = jnp.concatenate([x_m_output, re_dec], axis=-1)         # (B, L, 2D)
    tem = ln_linear(tem_cat, params["lnp_g"], params["lnp_b"],
                    params["out_w"], params["out_b"])                # (B, L, M)

    # spatial branch (transpose: sequence length becomes M)
    x_s = jnp.transpose(tem, (0, 2, 1))                              # (B, M, L)
    s_mask = jnp.transpose(mask, (0, 2, 1))
    x_ms = jnp.concatenate([x_s, s_mask], axis=-1)                   # (B, M, 2L)
    hs = linear(x_ms, params["s_in_w"], params["s_in_b"])            # (B, M, D)
    s_out = gpt2_forward(params["gpt2"], hs, n_heads)
    s_dec = ln_linear(s_out, params["slnp_g"], params["slnp_b"],
                      params["s_out_w"], params["s_out_b"])          # (B, M, L)
    spa = jnp.transpose(s_dec, (0, 2, 1))                            # (B, L, M)

    dec = jnp.concatenate([tem, spa], axis=-1)                       # (B, L, 2M)
    dec = linear(dec, params["w_w"], params["w_b"])                  # (B, L, M)
    return dec


# --------------------------------------------------------------------------- driver
if __name__ == "__main__":
    # small synthetic configs: seq_len=16, c_out=4, d_model=32, 2 heads, 2 GPT layers
    B, L, M = 2, 16, 4
    D_MODEL, N_HEADS, GPT_LAYERS = 32, 2, 2

    key = jax.random.PRNGKey(0)
    k_par, k_x, k_m = jax.random.split(key, 3)

    params = init_model_params(
        k_par, seq_len=L, c_out=M, d_model=D_MODEL,
        gpt_layers=GPT_LAYERS, max_pos=max(L, M),
    )

    x_enc = jax.random.normal(k_x, (B, L, M), jnp.float32)
    mask = (jax.random.uniform(k_m, (B, L, M)) > 0.3).astype(jnp.float32)

    # n_heads is bound statically (not a traced pytree leaf).
    fwd = jax.jit(functools.partial(model_forward, n_heads=N_HEADS))
    out = fwd(params, x_enc, mask)
    out = jax.block_until_ready(out)
    assert out.shape == (B, L, M), out.shape
    print("KERNEL_OK")
</pallas_src>

<mosaic_0001>
module attributes {stable_mosaic.version = 11 : i64} {
  func.func @_linear_kernel(%arg0: i32, %arg1: i32, %arg2: i32, %arg3: memref<64x8xf32, #tpu.memory_space<vmem>>, %arg4: memref<8x32xbf16, #tpu.memory_space<vmem>>, %arg5: memref<1x32xf32, #tpu.memory_space<vmem>>, %arg6: memref<64x32xf32, #tpu.memory_space<vmem>>, %arg7: memref<64x32xf32, #tpu.memory_space<vmem>>) attributes {dimension_semantics = [#tpu.dimension_semantics<parallel>, #tpu.dimension_semantics<parallel>, #tpu.dimension_semantics<arbitrary>], iteration_bounds = array<i64: 1, 1, 1>, scalar_prefetch = 0 : i64, scratch_operands = 1 : i64, tpu.core_type = #tpu.core_type<tc>, window_params = [{transform_indices = @transform_0, window_bounds = array<i64: 64, 8>}, {transform_indices = @transform_1, window_bounds = array<i64: 8, 32>}, {transform_indices = @transform_2, window_bounds = array<i64: 1, 32>}, {transform_indices = @transform_3, window_bounds = array<i64: 64, 32>}]} {
    %c0_i32 = arith.constant 0 : i32
    %0 = arith.cmpi eq, %arg2, %c0_i32 : i32
    %1 = arith.extui %0 : i1 to i32
    %c0_i32_0 = arith.constant 0 : i32
    %2 = arith.cmpi ne, %1, %c0_i32_0 : i32
    scf.if %2 {
      %cst_10 = arith.constant 0.000000e+00 : f32
      %13 = vector.broadcast %cst_10 : f32 to vector<64x32xf32>
      %c0_11 = arith.constant 0 : index
      %c0_12 = arith.constant 0 : index
      %14 = vector.load %arg7[%c0_11, %c0_12] : memref<64x32xf32, #tpu.memory_space<vmem>>, vector<64x32xf32>
      tpu.vector_store %arg7[%c0_11, %c0_12], %13 {strides = array<i32>} : memref<64x32xf32, #tpu.memory_space<vmem>>, vector<64x32xf32>,
    } else {
    }
    %c0 = arith.constant 0 : index
    %c0_1 = arith.constant 0 : index
    %3 = vector.load %arg7[%c0, %c0_1] : memref<64x32xf32, #tpu.memory_space<vmem>>, vector<64x32xf32>
    %c0_2 = arith.constant 0 : index
    %c0_3 = arith.constant 0 : index
    %4 = vector.load %arg3[%c0_2, %c0_3] : memref<64x8xf32, #tpu.memory_space<vmem>>, vector<64x8xf32>
    %5 = arith.truncf %4 : vector<64x8xf32> to vector<64x8xbf16>
    %c0_4 = arith.constant 0 : index
    %c0_5 = arith.constant 0 : index
    %6 = vector.load %arg4[%c0_4, %c0_5] : memref<8x32xbf16, #tpu.memory_space<vmem>>, vector<8x32xbf16>
    %cst = arith.constant dense<0.000000e+00> : vector<64x32xf32>
    %7 = tpu.matmul %5, %6, %cst {dimension_numbers = #tpu.dot_dimension_numbers<[1], [0], [0], [1], [0, 0, 1, 1], [], []>} : vector<64x8xbf16>, vector<8x32xbf16>, vector<64x32xf32> -> vector<64x32xf32>
    %8 = arith.addf %3, %7 : vector<64x32xf32>
    %c0_6 = arith.constant 0 : index
    %c0_7 = arith.constant 0 : index
    %9 = vector.load %arg7[%c0_6, %c0_7] : memref<64x32xf32, #tpu.memory_space<vmem>>, vector<64x32xf32>
    tpu.vector_store %arg7[%c0_6, %c0_7], %8 {strides = array<i32>} : memref<64x32xf32, #tpu.memory_space<vmem>>, vector<64x32xf32>,
    %c0_i32_8 = arith.constant 0 : i32
    %10 = arith.cmpi eq, %arg2, %c0_i32_8 : i32
    %11 = arith.extui %10 : i1 to i32
    %c0_i32_9 = arith.constant 0 : i32
    %12 = arith.cmpi ne, %11, %c0_i32_9 : i32
    scf.if %12 {
      %c0_10 = arith.constant 0 : index
      %c0_11 = arith.constant 0 : index
      %13 = vector.load %arg7[%c0_10, %c0_11] : memref<64x32xf32, #tpu.memory_space<vmem>>, vector<64x32xf32>
      %c0_12 = arith.constant 0 : index
      %c0_13 = arith.constant 0 : index
      %14 = vector.load %arg5[%c0_12, %c0_13] : memref<1x32xf32, #tpu.memory_space<vmem>>, vector<1x32xf32>
      %15 = vector.broadcast %14 : vector<1x32xf32> to vector<64x32xf32>
      %16 = arith.addf %13, %15 : vector<64x32xf32>
      %c0_14 = arith.constant 0 : index
      %c0_15 = arith.constant 0 : index
      %17 = vector.load %arg6[%c0_14, %c0_15] : memref<64x32xf32, #tpu.memory_space<vmem>>, vector<64x32xf32>
      tpu.vector_store %arg6[%c0_14, %c0_15], %16 {strides = array<i32>} : memref<64x32xf32, #tpu.memory_space<vmem>>, vector<64x32xf32>,
    } else {
    }
    return
  }
  func.func @transform_0(%arg0: i32, %arg1: i32, %arg2: i32) -> (i32, i32) {
    %c0_i32 = arith.constant 0 : i32
    return %arg0, %arg2 : i32, i32
  }
  func.func @transform_1(%arg0: i32, %arg1: i32, %arg2: i32) -> (i32, i32) {
    %c0_i32 = arith.constant 0 : i32
    return %arg2, %arg1 : i32, i32
  }
  func.func @transform_2(%arg0: i32, %arg1: i32, %arg2: i32) -> (i32, i32) {
    %c0_i32 = arith.constant 0 : i32
    %c0_i32_0 = arith.constant 0 : i32
    return %c0_i32, %arg1 : i32, i32
  }
  func.func @transform_3(%arg0: i32, %arg1: i32, %arg2: i32) -> (i32, i32) {
    %c0_i32 = arith.constant 0 : i32
    return %arg0, %arg1 : i32, i32
  }
}

module attributes {stable_mosaic.version = 11 : i64} {
  func.func @_ln_linear_kernel(%arg0: i32, %arg1: i32, %arg2: memref<64x32xf32, #tpu.memory_space<vmem>>, %arg3: memref<1x32xf32, #tpu.memory_space<vmem>>, %arg4: memref<1x32xf32, #tpu.memory_space<vmem>>, %arg5: memref<32x96xbf16, #tpu.memory_space<vmem>>, %arg6: memref<1x96xf32, #tpu.memory_space<vmem>>, %arg7: memref<64x96xbf16, #tpu.memory_space<vmem>>) attributes {dimension_semantics = [#tpu.dimension_semantics<parallel>, #tpu.dimension_semantics<parallel>], iteration_bounds = array<i64: 1, 1>, scalar_prefetch = 0 : i64, scratch_operands = 0 : i64, tpu.core_type = #tpu.core_type<tc>, window_params = [{transform_indices = @transform_0, window_bounds = array<i64: 64, 32>}, {pipeline_mode = #tpu.pipeline_mode<synchronous>, transform_indices = @transform_1, window_bounds = array<i64: 1, 32>}, {pipeline_mode = #tpu.pipeline_mode<synchronous>, transform_indices = @transform_2, window_bounds = array<i64: 1, 32>}, {transform_indices = @transform_3, window_bounds = array<i64: 32, 96>}, {transform_indices = @transform_4, window_bounds = array<i64: 1, 96>}, {transform_indices = @transform_5, window_bounds = array<i64: 64, 96>}]} {
    %c0 = arith.constant 0 : index
    %c0_0 = arith.constant 0 : index
    %0 = vector.load %arg2[%c0, %c0_0] : memref<64x32xf32, #tpu.memory_space<vmem>>, vector<64x32xf32>
    %cst = arith.constant dense<0.000000e+00> : vector<64xf32>
    %1 = vector.multi_reduction <add>, %0, %cst [1] : vector<64x32xf32> to vector<64xf32>
    %2 = vector.shape_cast %1 : vector<64xf32> to vector<64x1xf32>
    %cst_1 = arith.constant 3.200000e+01 : f32
    %3 = vector.broadcast %cst_1 : f32 to vector<64x1xf32>
    %4 = arith.divf %2, %3 : vector<64x1xf32>
    %5 = vector.broadcast %4 : vector<64x1xf32> to vector<64x32xf32>
    %6 = arith.subf %0, %5 : vector<64x32xf32>
    %7 = arith.mulf %6, %6 : vector<64x32xf32>
    %cst_2 = arith.constant dense<0.000000e+00> : vector<64xf32>
    %8 = vector.multi_reduction <add>, %7, %cst_2 [1] : vector<64x32xf32> to vector<64xf32>
    %9 = vector.shape_cast %8 : vector<64xf32> to vector<64x1xf32>
    %cst_3 = arith.constant 3.200000e+01 : f32
    %10 = vector.broadcast %cst_3 : f32 to vector<64x1xf32>
    %11 = arith.divf %9, %10 : vector<64x1xf32>
    %cst_4 = arith.constant 9.99999974E-6 : f32
    %12 = vector.broadcast %cst_4 : f32 to vector<64x1xf32>
    %13 = arith.addf %11, %12 : vector<64x1xf32>
    %14 = math.rsqrt %13 : vector<64x1xf32>
    %15 = vector.broadcast %14 : vector<64x1xf32> to vector<64x32xf32>
    %16 = arith.mulf %6, %15 : vector<64x32xf32>
    %c0_5 = arith.constant 0 : index
    %c0_6 = arith.constant 0 : index
    %17 = vector.load %arg3[%c0_5, %c0_6] : memref<1x32xf32, #tpu.memory_space<vmem>>, vector<1x32xf32>
    %18 = vector.broadcast %17 : vector<1x32xf32> to vector<64x32xf32>
    %19 = arith.mulf %16, %18 : vector<64x32xf32>
    %c0_7 = arith.constant 0 : index
    %c0_8 = arith.constant 0 : index
    %20 = vector.load %arg4[%c0_7, %c0_8] : memref<1x32xf32, #tpu.memory_space<vmem>>, vector<1x32xf32>
    %21 = vector.broadcast %20 : vector<1x32xf32> to vector<64x32xf32>
    %22 = arith.addf %19, %21 : vector<64x32xf32>
    %23 = arith.truncf %22 : vector<64x32xf32> to vector<64x32xbf16>
    %c0_9 = arith.constant 0 : index
    %c0_10 = arith.constant 0 : index
    %24 = vector.load %arg5[%c0_9, %c0_10] : memref<32x96xbf16, #tpu.memory_space<vmem>>, vector<32x96xbf16>
    %cst_11 = arith.constant dense<0.000000e+00> : vector<64x96xf32>
    %25 = tpu.matmul %23, %24, %cst_11 {dimension_numbers = #tpu.dot_dimension_numbers<[1], [0], [0], [1], [0, 0, 1, 1], [], []>} : vector<64x32xbf16>, vector<32x96xbf16>, vector<64x96xf32> -> vector<64x96xf32>
    %c0_12 = arith.constant 0 : index
    %c0_13 = arith.constant 0 : index
    %26 = vector.load %arg6[%c0_12, %c0_13] : memref<1x96xf32, #tpu.memory_space<vmem>>, vector<1x96xf32>
    %27 = vector.broadcast %26 : vector<1x96xf32> to vector<64x96xf32>
    %28 = arith.addf %25, %27 : vector<64x96xf32>
    %29 = arith.truncf %28 : vector<64x96xf32> to vector<64x96xbf16>
    %c0_14 = arith.constant 0 : index
    %c0_15 = arith.constant 0 : index
    %30 = vector.load %arg7[%c0_14, %c0_15] : memref<64x96xbf16, #tpu.memory_space<vmem>>, vector<64x96xbf16>
    tpu.vector_store %arg7[%c0_14, %c0_15], %29 {strides = array<i32>} : memref<64x96xbf16, #tpu.memory_space<vmem>>, vector<64x96xbf16>,
    return
  }
  func.func @transform_0(%arg0: i32, %arg1: i32) -> (i32, i32) {
    %c0_i32 = arith.constant 0 : i32
    %c0_i32_0 = arith.constant 0 : i32
    return %arg0, %c0_i32 : i32, i32
  }
  func.func @transform_1(%arg0: i32, %arg1: i32) -> (i32, i32) {
    %c0_i32 = arith.constant 0 : i32
    %c0_i32_0 = arith.constant 0 : i32
    %c0_i32_1 = arith.constant 0 : i32
    return %c0_i32, %c0_i32_0 : i32, i32
  }
  func.func @transform_2(%arg0: i32, %arg1: i32) -> (i32, i32) {
    %c0_i32 = arith.constant 0 : i32
    %c0_i32_0 = arith.constant 0 : i32
    %c0_i32_1 = arith.constant 0 : i32
    return %c0_i32, %c0_i32_0 : i32, i32
  }
  func.func @transform_3(%arg0: i32, %arg1: i32) -> (i32, i32) {
    %c0_i32 = arith.constant 0 : i32
    %c0_i32_0 = arith.constant 0 : i32
    return %c0_i32, %arg1 : i32, i32
  }
  func.func @transform_4(%arg0: i32, %arg1: i32) -> (i32, i32) {
    %c0_i32 = arith.constant 0 : i32
    %c0_i32_0 = arith.constant 0 : i32
    return %c0_i32, %arg1 : i32, i32
  }
  func.func @transform_5(%arg0: i32, %arg1: i32) -> (i32, i32) {
    %c0_i32 = arith.constant 0 : i32
    return %arg0, %arg1 : i32, i32
  }
}

module attributes {stable_mosaic.version = 11 : i64} {
  func.func @_attn_kernel(%arg0: i32, %arg1: memref<1x2x16x16xbf16, #tpu.memory_space<vmem>>, %arg2: memref<1x2x16x16xbf16, #tpu.memory_space<vmem>>, %arg3: memref<1x2x16x16xbf16, #tpu.memory_space<vmem>>, %arg4: memref<1x2x16x16xbf16, #tpu.memory_space<vmem>>) attributes {dimension_semantics = [#tpu.dimension_semantics<parallel>], iteration_bounds = array<i64: 4>, scalar_prefetch = 0 : i64, scratch_operands = 0 : i64, tpu.core_type = #tpu.core_type<tc>, window_params = [{transform_indices = @transform_0, window_bounds = array<i64: 1, 2, 16, 16>}, {transform_indices = @transform_1, window_bounds = array<i64: 1, 2, 16, 16>}, {transform_indices = @transform_2, window_bounds = array<i64: 1, 2, 16, 16>}, {transform_indices = @transform_3, window_bounds = array<i64: 1, 2, 16, 16>}]} {
    %c0 = arith.constant 0 : index
    %c0_0 = arith.constant 0 : index
    %c0_1 = arith.constant 0 : index
    %c0_2 = arith.constant 0 : index
    %0 = vector.load %arg1[%c0, %c0_0, %c0_1, %c0_2] : memref<1x2x16x16xbf16, #tpu.memory_space<vmem>>, vector<1x2x16x16xbf16>
    %1 = vector.shape_cast %0 : vector<1x2x16x16xbf16> to vector<2x16x16xbf16>
    %c0_3 = arith.constant 0 : index
    %c0_4 = arith.constant 0 : index
    %c0_5 = arith.constant 0 : index
    %c0_6 = arith.constant 0 : index
    %2 = vector.load %arg2[%c0_3, %c0_4, %c0_5, %c0_6] : memref<1x2x16x16xbf16, #tpu.memory_space<vmem>>, vector<1x2x16x16xbf16>
    %3 = vector.shape_cast %2 : vector<1x2x16x16xbf16> to vector<2x16x16xbf16>
    %c0_7 = arith.constant 0 : index
    %c0_8 = arith.constant 0 : index
    %c0_9 = arith.constant 0 : index
    %c0_10 = arith.constant 0 : index
    %4 = vector.load %arg3[%c0_7, %c0_8, %c0_9, %c0_10] : memref<1x2x16x16xbf16, #tpu.memory_space<vmem>>, vector<1x2x16x16xbf16>
    %5 = vector.shape_cast %4 : vector<1x2x16x16xbf16> to vector<2x16x16xbf16>
    "tpu.trace_start"() <{level = 10 : i32, message = "htd,hsd->hts"}> : () -> ()
    %cst = arith.constant dense<0.000000e+00> : vector<2x16x16xf32>
    %6 = tpu.matmul %1, %3, %cst {dimension_numbers = #tpu.dot_dimension_numbers<[2], [2], [1], [1], [0, 0, 0, 1, 1, 1], [0], [0]>} : vector<2x16x16xbf16>, vector<2x16x16xbf16>, vector<2x16x16xf32> -> vector<2x16x16xf32>
    "tpu.trace_stop"() : () -> ()
    %cst_11 = arith.constant 2.500000e-01 : f32
    %7 = vector.broadcast %cst_11 : f32 to vector<2x16x16xf32>
    %8 = arith.mulf %6, %7 : vector<2x16x16xf32>
    %9 = tpu.iota {dimensions = array<i32: 0>} : vector<16x16xi32>
    %10 = tpu.iota {dimensions = array<i32: 1>} : vector<16x16xi32>
    %11 = arith.cmpi sle, %10, %9 : vector<16x16xi32>
    %12 = vector.shape_cast %11 : vector<16x16xi1> to vector<1x16x16xi1>
    %cst_12 = arith.constant -1.000000e+30 : f32
    %13 = vector.shape_cast %12 : vector<1x16x16xi1> to vector<1x16x16xi1>
    %14 = vector.broadcast %13 : vector<1x16x16xi1> to vector<2x16x16xi1>
    %15 = vector.broadcast %cst_12 : f32 to vector<2x16x16xf32>
    %16 = arith.select %14, %8, %15 : vector<2x16x16xi1>, vector<2x16x16xf32>
    %cst_13 = arith.constant dense<0xFF800000> : vector<2x16xf32>
    %17 = vector.multi_reduction <maximumf>, %16, %cst_13 [2] : vector<2x16x16xf32> to vector<2x16xf32>
    %18 = vector.shape_cast %17 : vector<2x16xf32> to vector<2x16x1xf32>
    %19 = vector.broadcast %18 : vector<2x16x1xf32> to vector<2x16x16xf32>
    %20 = arith.subf %16, %19 : vector<2x16x16xf32>
    %21 = math.exp %20 : vector<2x16x16xf32>
    %cst_14 = arith.constant dense<0.000000e+00> : vector<2x16xf32>
    %22 = vector.multi_reduction <add>, %21, %cst_14 [2] : vector<2x16x16xf32> to vector<2x16xf32>
    %23 = vector.shape_cast %22 : vector<2x16xf32> to vector<2x16x1xf32>
    %24 = tpu.reciprocal %23 {approx = true} : vector<2x16x1xf32> -> vector<2x16x1xf32>
    %25 = vector.broadcast %24 : vector<2x16x1xf32> to vector<2x16x16xf32>
    %26 = arith.mulf %21, %25 : vector<2x16x16xf32>
    %27 = arith.truncf %26 : vector<2x16x16xf32> to vector<2x16x16xbf16>
    "tpu.trace_start"() <{level = 10 : i32, message = "hts,hsd->htd"}> : () -> ()
    %cst_15 = arith.constant dense<0.000000e+00> : vector<2x16x16xf32>
    %28 = tpu.matmul %27, %5, %cst_15 {dimension_numbers = #tpu.dot_dimension_numbers<[2], [1], [1], [2], [0, 0, 0, 1, 1, 2], [0], [0]>} : vector<2x16x16xbf16>, vector<2x16x16xbf16>, vector<2x16x16xf32> -> vector<2x16x16xf32>
    "tpu.trace_stop"() : () -> ()
    %29 = arith.truncf %28 : vector<2x16x16xf32> to vector<2x16x16xbf16>
    %c0_16 = arith.constant 0 : index
    %c0_17 = arith.constant 0 : index
    %c0_18 = arith.constant 0 : index
    %c0_19 = arith.constant 0 : index
    %30 = vector.load %arg4[%c0_16, %c0_17, %c0_18, %c0_19] : memref<1x2x16x16xbf16, #tpu.memory_space<vmem>>, vector<1x2x16x16xbf16>
    %31 = vector.shape_cast %30 : vector<1x2x16x16xbf16> to vector<2x16x16xbf16>
    %32 = vector.shape_cast %29 : vector<2x16x16xbf16> to vector<1x2x16x16xbf16>
    tpu.vector_store %arg4[%c0_16, %c0_17, %c0_18, %c0_19], %32 {strides = array<i32>} : memref<1x2x16x16xbf16, #tpu.memory_space<vmem>>, vector<1x2x16x16xbf16>,
    return
  }
  func.func @transform_0(%arg0: i32) -> (i32, i32, i32, i32) {
    %c0_i32 = arith.constant 0 : i32
    %c0_i32_0 = arith.constant 0 : i32
    %c0_i32_1 = arith.constant 0 : i32
    %c0_i32_2 = arith.constant 0 : i32
    return %arg0, %c0_i32, %c0_i32_0, %c0_i32_1 : i32, i32, i32, i32
  }
  func.func @transform_1(%arg0: i32) -> (i32, i32, i32, i32) {
    %c0_i32 = arith.constant 0 : i32
    %c0_i32_0 = arith.constant 0 : i32
    %c0_i32_1 = arith.constant 0 : i32
    %c0_i32_2 = arith.constant 0 : i32
    return %arg0, %c0_i32, %c0_i32_0, %c0_i32_1 : i32, i32, i32, i32
  }
  func.func @transform_2(%arg0: i32) -> (i32, i32, i32, i32) {
    %c0_i32 = arith.constant 0 : i32
    %c0_i32_0 = arith.constant 0 : i32
    %c0_i32_1 = arith.constant 0 : i32
    %c0_i32_2 = arith.constant 0 : i32
    return %arg0, %c0_i32, %c0_i32_0, %c0_i32_1 : i32, i32, i32, i32
  }
  func.func @transform_3(%arg0: i32) -> (i32, i32, i32, i32) {
    %c0_i32 = arith.constant 0 : i32
    %c0_i32_0 = arith.constant 0 : i32
    %c0_i32_1 = arith.constant 0 : i32
    %c0_i32_2 = arith.constant 0 : i32
    return %arg0, %c0_i32, %c0_i32_0, %c0_i32_1 : i32, i32, i32, i32
  }
}

module attributes {stable_mosaic.version = 11 : i64} {
  func.func @_linear_kernel(%arg0: i32, %arg1: i32, %arg2: i32, %arg3: memref<64x32xbf16, #tpu.memory_space<vmem>>, %arg4: memref<32x32xbf16, #tpu.memory_space<vmem>>, %arg5: memref<1x32xf32, #tpu.memory_space<vmem>>, %arg6: memref<64x32xf32, #tpu.memory_space<vmem>>, %arg7: memref<64x32xf32, #tpu.memory_space<vmem>>, %arg8: memref<64x32xf32, #tpu.memory_space<vmem>>) attributes {dimension_semantics = [#tpu.dimension_semantics<parallel>, #tpu.dimension_semantics<parallel>, #tpu.dimension_semantics<arbitrary>], iteration_bounds = array<i64: 1, 1, 1>, scalar_prefetch = 0 : i64, scratch_operands = 1 : i64, tpu.core_type = #tpu.core_type<tc>, window_params = [{transform_indices = @transform_0, window_bounds = array<i64: 64, 32>}, {transform_indices = @transform_1, window_bounds = array<i64: 32, 32>}, {transform_indices = @transform_2, window_bounds = array<i64: 1, 32>}, {transform_indices = @transform_3, window_bounds = array<i64: 64, 32>}, {transform_indices = @transform_4, window_bounds = array<i64: 64, 32>}]} {
    %c0_i32 = arith.constant 0 : i32
    %0 = arith.cmpi eq, %arg2, %c0_i32 : i32
    %1 = arith.extui %0 : i1 to i32
    %c0_i32_0 = arith.constant 0 : i32
    %2 = arith.cmpi ne, %1, %c0_i32_0 : i32
    scf.if %2 {
      %cst_10 = arith.constant 0.000000e+00 : f32
      %12 = vector.broadcast %cst_10 : f32 to vector<64x32xf32>
      %c0_11 = arith.constant 0 : index
      %c0_12 = arith.constant 0 : index
      %13 = vector.load %arg8[%c0_11, %c0_12] : memref<64x32xf32, #tpu.memory_space<vmem>>, vector<64x32xf32>
      tpu.vector_store %arg8[%c0_11, %c0_12], %12 {strides = array<i32>} : memref<64x32xf32, #tpu.memory_space<vmem>>, vector<64x32xf32>,
    } else {
    }
    %c0 = arith.constant 0 : index
    %c0_1 = arith.constant 0 : index
    %3 = vector.load %arg8[%c0, %c0_1] : memref<64x32xf32, #tpu.memory_space<vmem>>, vector<64x32xf32>
    %c0_2 = arith.constant 0 : index
    %c0_3 = arith.constant 0 : index
    %4 = vector.load %arg3[%c0_2, %c0_3] : memref<64x32xbf16, #tpu.memory_space<vmem>>, vector<64x32xbf16>
    %c0_4 = arith.constant 0 : index
    %c0_5 = arith.constant 0 : index
    %5 = vector.load %arg4[%c0_4, %c0_5] : memref<32x32xbf16, #tpu.memory_space<vmem>>, vector<32x32xbf16>
    %cst = arith.constant dense<0.000000e+00> : vector<64x32xf32>
    %6 = tpu.matmul %4, %5, %cst {dimension_numbers = #tpu.dot_dimension_numbers<[1], [0], [0], [1], [0, 0, 1, 1], [], []>} : vector<64x32xbf16>, vector<32x32xbf16>, vector<64x32xf32> -> vector<64x32xf32>
    %7 = arith.addf %3, %6 : vector<64x32xf32>
    %c0_6 = arith.constant 0 : index
    %c0_7 = arith.constant 0 : index
    %8 = vector.load %arg8[%c0_6, %c0_7] : memref<64x32xf32, #tpu.memory_space<vmem>>, vector<64x32xf32>
    tpu.vector_store %arg8[%c0_6, %c0_7], %7 {strides = array<i32>} : memref<64x32xf32, #tpu.memory_space<vmem>>, vector<64x32xf32>,
    %c0_i32_8 = arith.constant 0 : i32
    %9 = arith.cmpi eq, %arg2, %c0_i32_8 : i32
    %10 = arith.extui %9 : i1 to i32
    %c0_i32_9 = arith.constant 0 : i32
    %11 = arith.cmpi ne, %10, %c0_i32_9 : i32
    scf.if %11 {
      %c0_10 = arith.constant 0 : index
      %c0_11 = arith.constant 0 : index
      %12 = vector.load %arg8[%c0_10, %c0_11] : memref<64x32xf32, #tpu.memory_space<vmem>>, vector<64x32xf32>
      %c0_12 = arith.constant 0 : index
      %c0_13 = arith.constant 0 : index
      %13 = vector.load %arg5[%c0_12, %c0_13] : memref<1x32xf32, #tpu.memory_space<vmem>>, vector<1x32xf32>
      %14 = vector.broadcast %13 : vector<1x32xf32> to vector<64x32xf32>
      %15 = arith.addf %12, %14 : vector<64x32xf32>
      %c0_14 = arith.constant 0 : index
      %c0_15 = arith.constant 0 : index
      %16 = vector.load %arg6[%c0_14, %c0_15] : memref<64x32xf32, #tpu.memory_space<vmem>>, vector<64x32xf32>
      %17 = arith.addf %15, %16 : vector<64x32xf32>
      %c0_16 = arith.constant 0 : index
      %c0_17 = arith.constant 0 : index
      %18 = vector.load %arg7[%c0_16, %c0_17] : memref<64x32xf32, #tpu.memory_space<vmem>>, vector<64x32xf32>
      tpu.vector_store %arg7[%c0_16, %c0_17], %17 {strides = array<i32>} : memref<64x32xf32, #tpu.memory_space<vmem>>, vector<64x32xf32>,
    } else {
    }
    return
  }
  func.func @transform_0(%arg0: i32, %arg1: i32, %arg2: i32) -> (i32, i32) {
    %c0_i32 = arith.constant 0 : i32
    return %arg0, %arg2 : i32, i32
  }
  func.func @transform_1(%arg0: i32, %arg1: i32, %arg2: i32) -> (i32, i32) {
    %c0_i32 = arith.constant 0 : i32
    return %arg2, %arg1 : i32, i32
  }
  func.func @transform_2(%arg0: i32, %arg1: i32, %arg2: i32) -> (i32, i32) {
    %c0_i32 = arith.constant 0 : i32
    %c0_i32_0 = arith.constant 0 : i32
    return %c0_i32, %arg1 : i32, i32
  }
  func.func @transform_3(%arg0: i32, %arg1: i32, %arg2: i32) -> (i32, i32) {
    %c0_i32 = arith.constant 0 : i32
    return %arg0, %arg1 : i32, i32
  }
  func.func @transform_4(%arg0: i32, %arg1: i32, %arg2: i32) -> (i32, i32) {
    %c0_i32 = arith.constant 0 : i32
    return %arg0, %arg1 : i32, i32
  }
}

module attributes {stable_mosaic.version = 11 : i64} {
  func.func @_ln_linear_kernel(%arg0: i32, %arg1: i32, %arg2: memref<64x32xf32, #tpu.memory_space<vmem>>, %arg3: memref<1x32xf32, #tpu.memory_space<vmem>>, %arg4: memref<1x32xf32, #tpu.memory_space<vmem>>, %arg5: memref<32x128xbf16, #tpu.memory_space<vmem>>, %arg6: memref<1x128xf32, #tpu.memory_space<vmem>>, %arg7: memref<64x128xbf16, #tpu.memory_space<vmem>>) attributes {dimension_semantics = [#tpu.dimension_semantics<parallel>, #tpu.dimension_semantics<parallel>], iteration_bounds = array<i64: 1, 1>, scalar_prefetch = 0 : i64, scratch_operands = 0 : i64, tpu.core_type = #tpu.core_type<tc>, window_params = [{transform_indices = @transform_0, window_bounds = array<i64: 64, 32>}, {pipeline_mode = #tpu.pipeline_mode<synchronous>, transform_indices = @transform_1, window_bounds = array<i64: 1, 32>}, {pipeline_mode = #tpu.pipeline_mode<synchronous>, transform_indices = @transform_2, window_bounds = array<i64: 1, 32>}, {transform_indices = @transform_3, window_bounds = array<i64: 32, 128>}, {transform_indices = @transform_4, window_bounds = array<i64: 1, 128>}, {transform_indices = @transform_5, window_bounds = array<i64: 64, 128>}]} {
    %c0 = arith.constant 0 : index
    %c0_0 = arith.constant 0 : index
    %0 = vector.load %arg2[%c0, %c0_0] : memref<64x32xf32, #tpu.memory_space<vmem>>, vector<64x32xf32>
    %cst = arith.constant dense<0.000000e+00> : vector<64xf32>
    %1 = vector.multi_reduction <add>, %0, %cst [1] : vector<64x32xf32> to vector<64xf32>
    %2 = vector.shape_cast %1 : vector<64xf32> to vector<64x1xf32>
    %cst_1 = arith.constant 3.200000e+01 : f32
    %3 = vector.broadcast %cst_1 : f32 to vector<64x1xf32>
    %4 = arith.divf %2, %3 : vector<64x1xf32>
    %5 = vector.broadcast %4 : vector<64x1xf32> to vector<64x32xf32>
    %6 = arith.subf %0, %5 : vector<64x32xf32>
    %7 = arith.mulf %6, %6 : vector<64x32xf32>
    %cst_2 = arith.constant dense<0.000000e+00> : vector<64xf32>
    %8 = vector.multi_reduction <add>, %7, %cst_2 [1] : vector<64x32xf32> to vector<64xf32>
    %9 = vector.shape_cast %8 : vector<64xf32> to vector<64x1xf32>
    %cst_3 = arith.constant 3.200000e+01 : f32
    %10 = vector.broadcast %cst_3 : f32 to vector<64x1xf32>
    %11 = arith.divf %9, %10 : vector<64x1xf32>
    %cst_4 = arith.constant 9.99999974E-6 : f32
    %12 = vector.broadcast %cst_4 : f32 to vector<64x1xf32>
    %13 = arith.addf %11, %12 : vector<64x1xf32>
    %14 = math.rsqrt %13 : vector<64x1xf32>
    %15 = vector.broadcast %14 : vector<64x1xf32> to vector<64x32xf32>
    %16 = arith.mulf %6, %15 : vector<64x32xf32>
    %c0_5 = arith.constant 0 : index
    %c0_6 = arith.constant 0 : index
    %17 = vector.load %arg3[%c0_5, %c0_6] : memref<1x32xf32, #tpu.memory_space<vmem>>, vector<1x32xf32>
    %18 = vector.broadcast %17 : vector<1x32xf32> to vector<64x32xf32>
    %19 = arith.mulf %16, %18 : vector<64x32xf32>
    %c0_7 = arith.constant 0 : index
    %c0_8 = arith.constant 0 : index
    %20 = vector.load %arg4[%c0_7, %c0_8] : memref<1x32xf32, #tpu.memory_space<vmem>>, vector<1x32xf32>
    %21 = vector.broadcast %20 : vector<1x32xf32> to vector<64x32xf32>
    %22 = arith.addf %19, %21 : vector<64x32xf32>
    %23 = arith.truncf %22 : vector<64x32xf32> to vector<64x32xbf16>
    %c0_9 = arith.constant 0 : index
    %c0_10 = arith.constant 0 : index
    %24 = vector.load %arg5[%c0_9, %c0_10] : memref<32x128xbf16, #tpu.memory_space<vmem>>, vector<32x128xbf16>
    %cst_11 = arith.constant dense<0.000000e+00> : vector<64x128xf32>
    %25 = tpu.matmul %23, %24, %cst_11 {dimension_numbers = #tpu.dot_dimension_numbers<[1], [0], [0], [1], [0, 0, 1, 1], [], []>} : vector<64x32xbf16>, vector<32x128xbf16>, vector<64x128xf32> -> vector<64x128xf32>
    %c0_12 = arith.constant 0 : index
    %c0_13 = arith.constant 0 : index
    %26 = vector.load %arg6[%c0_12, %c0_13] : memref<1x128xf32, #tpu.memory_space<vmem>>, vector<1x128xf32>
    %27 = vector.broadcast %26 : vector<1x128xf32> to vector<64x128xf32>
    %28 = arith.addf %25, %27 : vector<64x128xf32>
    %cst_14 = arith.constant 5.000000e-01 : f32
    %29 = vector.broadcast %cst_14 : f32 to vector<64x128xf32>
    %30 = arith.mulf %29, %28 : vector<64x128xf32>
    %cst_15 = arith.constant 4.471500e-02 : f32
    %31 = vector.broadcast %cst_15 : f32 to vector<64x128xf32>
    %32 = arith.mulf %31, %28 : vector<64x128xf32>
    %33 = arith.mulf %32, %28 : vector<64x128xf32>
    %34 = arith.mulf %33, %28 : vector<64x128xf32>
    %35 = arith.addf %28, %34 : vector<64x128xf32>
    %cst_16 = arith.constant 0.797884583 : f32
    %36 = vector.broadcast %cst_16 : f32 to vector<64x128xf32>
    %37 = arith.mulf %36, %35 : vector<64x128xf32>
    %38 = math.tanh %37 : vector<64x128xf32>
    %cst_17 = arith.constant 1.000000e+00 : f32
    %39 = vector.broadcast %cst_17 : f32 to vector<64x128xf32>
    %40 = arith.addf %39, %38 : vector<64x128xf32>
    %41 = arith.mulf %30, %40 : vector<64x128xf32>
    %42 = arith.truncf %41 : vector<64x128xf32> to vector<64x128xbf16>
    %c0_18 = arith.constant 0 : index
    %c0_19 = arith.constant 0 : index
    %43 = vector.load %arg7[%c0_18, %c0_19] : memref<64x128xbf16, #tpu.memory_space<vmem>>, vector<64x128xbf16>
    tpu.vector_store %arg7[%c0_18, %c0_19], %42 {strides = array<i32>} : memref<64x128xbf16, #tpu.memory_space<vmem>>, vector<64x128xbf16>,
    return
  }
  func.func @transform_0(%arg0: i32, %arg1: i32) -> (i32, i32) {
    %c0_i32 = arith.constant 0 : i32
    %c0_i32_0 = arith.constant 0 : i32
    return %arg0, %c0_i32 : i32, i32
  }
  func.func @transform_1(%arg0: i32, %arg1: i32) -> (i32, i32) {
    %c0_i32 = arith.constant 0 : i32
    %c0_i32_0 = arith.constant 0 : i32
    %c0_i32_1 = arith.constant 0 : i32
    return %c0_i32, %c0_i32_0 : i32, i32
  }
  func.func @transform_2(%arg0: i32, %arg1: i32) -> (i32, i32) {
    %c0_i32 = arith.constant 0 : i32
    %c0_i32_0 = arith.constant 0 : i32
    %c0_i32_1 = arith.constant 0 : i32
    return %c0_i32, %c0_i32_0 : i32, i32
  }
  func.func @transform_3(%arg0: i32, %arg1: i32) -> (i32, i32) {
    %c0_i32 = arith.constant 0 : i32
    %c0_i32_0 = arith.constant 0 : i32
    return %c0_i32, %arg1 : i32, i32
  }
  func.func @transform_4(%arg0: i32, %arg1: i32) -> (i32, i32) {
    %c0_i32 = arith.constant 0 : i32
    %c0_i32_0 = arith.constant 0 : i32
    return %c0_i32, %arg1 : i32, i32
  }
  func.func @transform_5(%arg0: i32, %arg1: i32) -> (i32, i32) {
    %c0_i32 = arith.constant 0 : i32
    return %arg0, %arg1 : i32, i32
  }
}

module attributes {stable_mosaic.version = 11 : i64} {
  func.func @_linear_kernel(%arg0: i32, %arg1: i32, %arg2: i32, %arg3: memref<64x128xbf16, #tpu.memory_space<vmem>>, %arg4: memref<128x32xbf16, #tpu.memory_space<vmem>>, %arg5: memref<1x32xf32, #tpu.memory_space<vmem>>, %arg6: memref<64x32xf32, #tpu.memory_space<vmem>>, %arg7: memref<64x32xf32, #tpu.memory_space<vmem>>, %arg8: memref<64x32xf32, #tpu.memory_space<vmem>>) attributes {dimension_semantics = [#tpu.dimension_semantics<parallel>, #tpu.dimension_semantics<parallel>, #tpu.dimension_semantics<arbitrary>], iteration_bounds = array<i64: 1, 1, 1>, scalar_prefetch = 0 : i64, scratch_operands = 1 : i64, tpu.core_type = #tpu.core_type<tc>, window_params = [{transform_indices = @transform_0, window_bounds = array<i64: 64, 128>}, {transform_indices = @transform_1, window_bounds = array<i64: 128, 32>}, {transform_indices = @transform_2, window_bounds = array<i64: 1, 32>}, {transform_indices = @transform_3, window_bounds = array<i64: 64, 32>}, {transform_indices = @transform_4, window_bounds = array<i64: 64, 32>}]} {
    %c0_i32 = arith.constant 0 : i32
    %0 = arith.cmpi eq, %arg2, %c0_i32 : i32
    %1 = arith.extui %0 : i1 to i32
    %c0_i32_0 = arith.constant 0 : i32
    %2 = arith.cmpi ne, %1, %c0_i32_0 : i32
    scf.if %2 {
      %cst_10 = arith.constant 0.000000e+00 : f32
      %12 = vector.broadcast %cst_10 : f32 to vector<64x32xf32>
      %c0_11 = arith.constant 0 : index
      %c0_12 = arith.constant 0 : index
      %13 = vector.load %arg8[%c0_11, %c0_12] : memref<64x32xf32, #tpu.memory_space<vmem>>, vector<64x32xf32>
      tpu.vector_store %arg8[%c0_11, %c0_12], %12 {strides = array<i32>} : memref<64x32xf32, #tpu.memory_space<vmem>>, vector<64x32xf32>,
    } else {
    }
    %c0 = arith.constant 0 : index
    %c0_1 = arith.constant 0 : index
    %3 = vector.load %arg8[%c0, %c0_1] : memref<64x32xf32, #tpu.memory_space<vmem>>, vector<64x32xf32>
    %c0_2 = arith.constant 0 : index
    %c0_3 = arith.constant 0 : index
    %4 = vector.load %arg3[%c0_2, %c0_3] : memref<64x128xbf16, #tpu.memory_space<vmem>>, vector<64x128xbf16>
    %c0_4 = arith.constant 0 : index
    %c0_5 = arith.constant 0 : index
    %5 = vector.load %arg4[%c0_4, %c0_5] : memref<128x32xbf16, #tpu.memory_space<vmem>>, vector<128x32xbf16>
    %cst = arith.constant dense<0.000000e+00> : vector<64x32xf32>
    %6 = tpu.matmul %4, %5, %cst {dimension_numbers = #tpu.dot_dimension_numbers<[1], [0], [0], [1], [0, 0, 1, 1], [], []>} : vector<64x128xbf16>, vector<128x32xbf16>, vector<64x32xf32> -> vector<64x32xf32>
    %7 = arith.addf %3, %6 : vector<64x32xf32>
    %c0_6 = arith.constant 0 : index
    %c0_7 = arith.constant 0 : index
    %8 = vector.load %arg8[%c0_6, %c0_7] : memref<64x32xf32, #tpu.memory_space<vmem>>, vector<64x32xf32>
    tpu.vector_store %arg8[%c0_6, %c0_7], %7 {strides = array<i32>} : memref<64x32xf32, #tpu.memory_space<vmem>>, vector<64x32xf32>,
    %c0_i32_8 = arith.constant 0 : i32
    %9 = arith.cmpi eq, %arg2, %c0_i32_8 : i32
    %10 = arith.extui %9 : i1 to i32
    %c0_i32_9 = arith.constant 0 : i32
    %11 = arith.cmpi ne, %10, %c0_i32_9 : i32
    scf.if %11 {
      %c0_10 = arith.constant 0 : index
      %c0_11 = arith.constant 0 : index
      %12 = vector.load %arg8[%c0_10, %c0_11] : memref<64x32xf32, #tpu.memory_space<vmem>>, vector<64x32xf32>
      %c0_12 = arith.constant 0 : index
      %c0_13 = arith.constant 0 : index
      %13 = vector.load %arg5[%c0_12, %c0_13] : memref<1x32xf32, #tpu.memory_space<vmem>>, vector<1x32xf32>
      %14 = vector.broadcast %13 : vector<1x32xf32> to vector<64x32xf32>
      %15 = arith.addf %12, %14 : vector<64x32xf32>
      %c0_14 = arith.constant 0 : index
      %c0_15 = arith.constant 0 : index
      %16 = vector.load %arg6[%c0_14, %c0_15] : memref<64x32xf32, #tpu.memory_space<vmem>>, vector<64x32xf32>
      %17 = arith.addf %15, %16 : vector<64x32xf32>
      %c0_16 = arith.constant 0 : index
      %c0_17 = arith.constant 0 : index
      %18 = vector.load %arg7[%c0_16, %c0_17] : memref<64x32xf32, #tpu.memory_space<vmem>>, vector<64x32xf32>
      tpu.vector_store %arg7[%c0_16, %c0_17], %17 {strides = array<i32>} : memref<64x32xf32, #tpu.memory_space<vmem>>, vector<64x32xf32>,
    } else {
    }
    return
  }
  func.func @transform_0(%arg0: i32, %arg1: i32, %arg2: i32) -> (i32, i32) {
    %c0_i32 = arith.constant 0 : i32
    return %arg0, %arg2 : i32, i32
  }
  func.func @transform_1(%arg0: i32, %arg1: i32, %arg2: i32) -> (i32, i32) {
    %c0_i32 = arith.constant 0 : i32
    return %arg2, %arg1 : i32, i32
  }
  func.func @transform_2(%arg0: i32, %arg1: i32, %arg2: i32) -> (i32, i32) {
    %c0_i32 = arith.constant 0 : i32
    %c0_i32_0 = arith.constant 0 : i32
    return %c0_i32, %arg1 : i32, i32
  }
  func.func @transform_3(%arg0: i32, %arg1: i32, %arg2: i32) -> (i32, i32) {
    %c0_i32 = arith.constant 0 : i32
    return %arg0, %arg1 : i32, i32
  }
  func.func @transform_4(%arg0: i32, %arg1: i32, %arg2: i32) -> (i32, i32) {
    %c0_i32 = arith.constant 0 : i32
    return %arg0, %arg1 : i32, i32
  }
}

module attributes {stable_mosaic.version = 11 : i64} {
  func.func @_layernorm_kernel(%arg0: i32, %arg1: memref<64x32xf32, #tpu.memory_space<vmem>>, %arg2: memref<1x32xf32, #tpu.memory_space<vmem>>, %arg3: memref<1x32xf32, #tpu.memory_space<vmem>>, %arg4: memref<64x32xf32, #tpu.memory_space<vmem>>) attributes {dimension_semantics = [#tpu.dimension_semantics<parallel>], iteration_bounds = array<i64: 1>, scalar_prefetch = 0 : i64, scratch_operands = 0 : i64, tpu.core_type = #tpu.core_type<tc>, window_params = [{transform_indices = @transform_0, window_bounds = array<i64: 64, 32>}, {pipeline_mode = #tpu.pipeline_mode<synchronous>, transform_indices = @transform_1, window_bounds = array<i64: 1, 32>}, {pipeline_mode = #tpu.pipeline_mode<synchronous>, transform_indices = @transform_2, window_bounds = array<i64: 1, 32>}, {transform_indices = @transform_3, window_bounds = array<i64: 64, 32>}]} {
    %c0 = arith.constant 0 : index
    %c0_0 = arith.constant 0 : index
    %0 = vector.load %arg1[%c0, %c0_0] : memref<64x32xf32, #tpu.memory_space<vmem>>, vector<64x32xf32>
    %cst = arith.constant dense<0.000000e+00> : vector<64xf32>
    %1 = vector.multi_reduction <add>, %0, %cst [1] : vector<64x32xf32> to vector<64xf32>
    %2 = vector.shape_cast %1 : vector<64xf32> to vector<64x1xf32>
    %cst_1 = arith.constant 3.200000e+01 : f32
    %3 = vector.broadcast %cst_1 : f32 to vector<64x1xf32>
    %4 = arith.divf %2, %3 : vector<64x1xf32>
    %5 = vector.broadcast %4 : vector<64x1xf32> to vector<64x32xf32>
    %6 = arith.subf %0, %5 : vector<64x32xf32>
    %7 = arith.mulf %6, %6 : vector<64x32xf32>
    %cst_2 = arith.constant dense<0.000000e+00> : vector<64xf32>
    %8 = vector.multi_reduction <add>, %7, %cst_2 [1] : vector<64x32xf32> to vector<64xf32>
    %9 = vector.shape_cast %8 : vector<64xf32> to vector<64x1xf32>
    %cst_3 = arith.constant 3.200000e+01 : f32
    %10 = vector.broadcast %cst_3 : f32 to vector<64x1xf32>
    %11 = arith.divf %9, %10 : vector<64x1xf32>
    %cst_4 = arith.constant 9.99999974E-6 : f32
    %12 = vector.broadcast %cst_4 : f32 to vector<64x1xf32>
    %13 = arith.addf %11, %12 : vector<64x1xf32>
    %14 = math.rsqrt %13 : vector<64x1xf32>
    %15 = vector.broadcast %14 : vector<64x1xf32> to vector<64x32xf32>
    %16 = arith.mulf %6, %15 : vector<64x32xf32>
    %c0_5 = arith.constant 0 : index
    %c0_6 = arith.constant 0 : index
    %17 = vector.load %arg2[%c0_5, %c0_6] : memref<1x32xf32, #tpu.memory_space<vmem>>, vector<1x32xf32>
    %18 = vector.broadcast %17 : vector<1x32xf32> to vector<64x32xf32>
    %19 = arith.mulf %16, %18 : vector<64x32xf32>
    %c0_7 = arith.constant 0 : index
    %c0_8 = arith.constant 0 : index
    %20 = vector.load %arg3[%c0_7, %c0_8] : memref<1x32xf32, #tpu.memory_space<vmem>>, vector<1x32xf32>
    %21 = vector.broadcast %20 : vector<1x32xf32> to vector<64x32xf32>
    %22 = arith.addf %19, %21 : vector<64x32xf32>
    %c0_9 = arith.constant 0 : index
    %c0_10 = arith.constant 0 : index
    %23 = vector.load %arg4[%c0_9, %c0_10] : memref<64x32xf32, #tpu.memory_space<vmem>>, vector<64x32xf32>
    tpu.vector_store %arg4[%c0_9, %c0_10], %22 {strides = array<i32>} : memref<64x32xf32, #tpu.memory_space<vmem>>, vector<64x32xf32>,
    return
  }
  func.func @transform_0(%arg0: i32) -> (i32, i32) {
    %c0_i32 = arith.constant 0 : i32
    %c0_i32_0 = arith.constant 0 : i32
    return %arg0, %c0_i32 : i32, i32
  }
  func.func @transform_1(%arg0: i32) -> (i32, i32) {
    %c0_i32 = arith.constant 0 : i32
    %c0_i32_0 = arith.constant 0 : i32
    %c0_i32_1 = arith.constant 0 : i32
    return %c0_i32, %c0_i32_0 : i32, i32
  }
  func.func @transform_2(%arg0: i32) -> (i32, i32) {
    %c0_i32 = arith.constant 0 : i32
    %c0_i32_0 = arith.constant 0 : i32
    %c0_i32_1 = arith.constant 0 : i32
    return %c0_i32, %c0_i32_0 : i32, i32
  }
  func.func @transform_3(%arg0: i32) -> (i32, i32) {
    %c0_i32 = arith.constant 0 : i32
    %c0_i32_0 = arith.constant 0 : i32
    return %arg0, %c0_i32 : i32, i32
  }
}

module attributes {stable_mosaic.version = 11 : i64} {
  func.func @_ln_linear_kernel(%arg0: i32, %arg1: i32, %arg2: memref<32x64xf32, #tpu.memory_space<vmem>>, %arg3: memref<1x64xf32, #tpu.memory_space<vmem>>, %arg4: memref<1x64xf32, #tpu.memory_space<vmem>>, %arg5: memref<64x4xbf16, #tpu.memory_space<vmem>>, %arg6: memref<1x4xf32, #tpu.memory_space<vmem>>, %arg7: memref<32x4xf32, #tpu.memory_space<vmem>>) attributes {dimension_semantics = [#tpu.dimension_semantics<parallel>, #tpu.dimension_semantics<parallel>], iteration_bounds = array<i64: 1, 1>, scalar_prefetch = 0 : i64, scratch_operands = 0 : i64, tpu.core_type = #tpu.core_type<tc>, window_params = [{transform_indices = @transform_0, window_bounds = array<i64: 32, 64>}, {pipeline_mode = #tpu.pipeline_mode<synchronous>, transform_indices = @transform_1, window_bounds = array<i64: 1, 64>}, {pipeline_mode = #tpu.pipeline_mode<synchronous>, transform_indices = @transform_2, window_bounds = array<i64: 1, 64>}, {transform_indices = @transform_3, window_bounds = array<i64: 64, 4>}, {transform_indices = @transform_4, window_bounds = array<i64: 1, 4>}, {transform_indices = @transform_5, window_bounds = array<i64: 32, 4>}]} {
    %c0 = arith.constant 0 : index
    %c0_0 = arith.constant 0 : index
    %0 = vector.load %arg2[%c0, %c0_0] : memref<32x64xf32, #tpu.memory_space<vmem>>, vector<32x64xf32>
    %cst = arith.constant dense<0.000000e+00> : vector<32xf32>
    %1 = vector.multi_reduction <add>, %0, %cst [1] : vector<32x64xf32> to vector<32xf32>
    %2 = vector.shape_cast %1 : vector<32xf32> to vector<32x1xf32>
    %cst_1 = arith.constant 6.400000e+01 : f32
    %3 = vector.broadcast %cst_1 : f32 to vector<32x1xf32>
    %4 = arith.divf %2, %3 : vector<32x1xf32>
    %5 = vector.broadcast %4 : vector<32x1xf32> to vector<32x64xf32>
    %6 = arith.subf %0, %5 : vector<32x64xf32>
    %7 = arith.mulf %6, %6 : vector<32x64xf32>
    %cst_2 = arith.constant dense<0.000000e+00> : vector<32xf32>
    %8 = vector.multi_reduction <add>, %7, %cst_2 [1] : vector<32x64xf32> to vector<32xf32>
    %9 = vector.shape_cast %8 : vector<32xf32> to vector<32x1xf32>
    %cst_3 = arith.constant 6.400000e+01 : f32
    %10 = vector.broadcast %cst_3 : f32 to vector<32x1xf32>
    %11 = arith.divf %9, %10 : vector<32x1xf32>
    %cst_4 = arith.constant 9.99999974E-6 : f32
    %12 = vector.broadcast %cst_4 : f32 to vector<32x1xf32>
    %13 = arith.addf %11, %12 : vector<32x1xf32>
    %14 = math.rsqrt %13 : vector<32x1xf32>
    %15 = vector.broadcast %14 : vector<32x1xf32> to vector<32x64xf32>
    %16 = arith.mulf %6, %15 : vector<32x64xf32>
    %c0_5 = arith.constant 0 : index
    %c0_6 = arith.constant 0 : index
    %17 = vector.load %arg3[%c0_5, %c0_6] : memref<1x64xf32, #tpu.memory_space<vmem>>, vector<1x64xf32>
    %18 = vector.broadcast %17 : vector<1x64xf32> to vector<32x64xf32>
    %19 = arith.mulf %16, %18 : vector<32x64xf32>
    %c0_7 = arith.constant 0 : index
    %c0_8 = arith.constant 0 : index
    %20 = vector.load %arg4[%c0_7, %c0_8] : memref<1x64xf32, #tpu.memory_space<vmem>>, vector<1x64xf32>
    %21 = vector.broadcast %20 : vector<1x64xf32> to vector<32x64xf32>
    %22 = arith.addf %19, %21 : vector<32x64xf32>
    %23 = arith.truncf %22 : vector<32x64xf32> to vector<32x64xbf16>
    %c0_9 = arith.constant 0 : index
    %c0_10 = arith.constant 0 : index
    %24 = vector.load %arg5[%c0_9, %c0_10] : memref<64x4xbf16, #tpu.memory_space<vmem>>, vector<64x4xbf16>
    %cst_11 = arith.constant dense<0.000000e+00> : vector<32x4xf32>
    %25 = tpu.matmul %23, %24, %cst_11 {dimension_numbers = #tpu.dot_dimension_numbers<[1], [0], [0], [1], [0, 0, 1, 1], [], []>} : vector<32x64xbf16>, vector<64x4xbf16>, vector<32x4xf32> -> vector<32x4xf32>
    %c0_12 = arith.constant 0 : index
    %c0_13 = arith.constant 0 : index
    %26 = vector.load %arg6[%c0_12, %c0_13] : memref<1x4xf32, #tpu.memory_space<vmem>>, vector<1x4xf32>
    %27 = vector.broadcast %26 : vector<1x4xf32> to vector<32x4xf32>
    %28 = arith.addf %25, %27 : vector<32x4xf32>
    %c0_14 = arith.constant 0 : index
    %c0_15 = arith.constant 0 : index
    %29 = vector.load %arg7[%c0_14, %c0_15] : memref<32x4xf32, #tpu.memory_space<vmem>>, vector<32x4xf32>
    tpu.vector_store %arg7[%c0_14, %c0_15], %28 {strides = array<i32>} : memref<32x4xf32, #tpu.memory_space<vmem>>, vector<32x4xf32>,
    return
  }
  func.func @transform_0(%arg0: i32, %arg1: i32) -> (i32, i32) {
    %c0_i32 = arith.constant 0 : i32
    %c0_i32_0 = arith.constant 0 : i32
    return %arg0, %c0_i32 : i32, i32
  }
  func.func @transform_1(%arg0: i32, %arg1: i32) -> (i32, i32) {
    %c0_i32 = arith.constant 0 : i32
    %c0_i32_0 = arith.constant 0 : i32
    %c0_i32_1 = arith.constant 0 : i32
    return %c0_i32, %c0_i32_0 : i32, i32
  }
  func.func @transform_2(%arg0: i32, %arg1: i32) -> (i32, i32) {
    %c0_i32 = arith.constant 0 : i32
    %c0_i32_0 = arith.constant 0 : i32
    %c0_i32_1 = arith.constant 0 : i32
    return %c0_i32, %c0_i32_0 : i32, i32
  }
  func.func @transform_3(%arg0: i32, %arg1: i32) -> (i32, i32) {
    %c0_i32 = arith.constant 0 : i32
    %c0_i32_0 = arith.constant 0 : i32
    return %c0_i32, %arg1 : i32, i32
  }
  func.func @transform_4(%arg0: i32, %arg1: i32) -> (i32, i32) {
    %c0_i32 = arith.constant 0 : i32
    %c0_i32_0 = arith.constant 0 : i32
    return %c0_i32, %arg1 : i32, i32
  }
  func.func @transform_5(%arg0: i32, %arg1: i32) -> (i32, i32) {
    %c0_i32 = arith.constant 0 : i32
    return %arg0, %arg1 : i32, i32
  }
}

module attributes {stable_mosaic.version = 11 : i64} {
  func.func @_linear_kernel(%arg0: i32, %arg1: i32, %arg2: i32, %arg3: memref<8x32xf32, #tpu.memory_space<vmem>>, %arg4: memref<32x32xbf16, #tpu.memory_space<vmem>>, %arg5: memref<1x32xf32, #tpu.memory_space<vmem>>, %arg6: memref<8x32xf32, #tpu.memory_space<vmem>>, %arg7: memref<8x32xf32, #tpu.memory_space<vmem>>) attributes {dimension_semantics = [#tpu.dimension_semantics<parallel>, #tpu.dimension_semantics<parallel>, #tpu.dimension_semantics<arbitrary>], iteration_bounds = array<i64: 1, 1, 1>, scalar_prefetch = 0 : i64, scratch_operands = 1 : i64, tpu.core_type = #tpu.core_type<tc>, window_params = [{transform_indices = @transform_0, window_bounds = array<i64: 8, 32>}, {transform_indices = @transform_1, window_bounds = array<i64: 32, 32>}, {transform_indices = @transform_2, window_bounds = array<i64: 1, 32>}, {transform_indices = @transform_3, window_bounds = array<i64: 8, 32>}]} {
    %c0_i32 = arith.constant 0 : i32
    %0 = arith.cmpi eq, %arg2, %c0_i32 : i32
    %1 = arith.extui %0 : i1 to i32
    %c0_i32_0 = arith.constant 0 : i32
    %2 = arith.cmpi ne, %1, %c0_i32_0 : i32
    scf.if %2 {
      %cst_10 = arith.constant 0.000000e+00 : f32
      %13 = vector.broadcast %cst_10 : f32 to vector<8x32xf32>
      %c0_11 = arith.constant 0 : index
      %c0_12 = arith.constant 0 : index
      %14 = vector.load %arg7[%c0_11, %c0_12] : memref<8x32xf32, #tpu.memory_space<vmem>>, vector<8x32xf32>
      tpu.vector_store %arg7[%c0_11, %c0_12], %13 {strides = array<i32>} : memref<8x32xf32, #tpu.memory_space<vmem>>, vector<8x32xf32>,
    } else {
    }
    %c0 = arith.constant 0 : index
    %c0_1 = arith.constant 0 : index
    %3 = vector.load %arg7[%c0, %c0_1] : memref<8x32xf32, #tpu.memory_space<vmem>>, vector<8x32xf32>
    %c0_2 = arith.constant 0 : index
    %c0_3 = arith.constant 0 : index
    %4 = vector.load %arg3[%c0_2, %c0_3] : memref<8x32xf32, #tpu.memory_space<vmem>>, vector<8x32xf32>
    %5 = arith.truncf %4 : vector<8x32xf32> to vector<8x32xbf16>
    %c0_4 = arith.constant 0 : index
    %c0_5 = arith.constant 0 : index
    %6 = vector.load %arg4[%c0_4, %c0_5] : memref<32x32xbf16, #tpu.memory_space<vmem>>, vector<32x32xbf16>
    %cst = arith.constant dense<0.000000e+00> : vector<8x32xf32>
    %7 = tpu.matmul %5, %6, %cst {dimension_numbers = #tpu.dot_dimension_numbers<[1], [0], [0], [1], [0, 0, 1, 1], [], []>} : vector<8x32xbf16>, vector<32x32xbf16>, vector<8x32xf32> -> vector<8x32xf32>
    %8 = arith.addf %3, %7 : vector<8x32xf32>
    %c0_6 = arith.constant 0 : index
    %c0_7 = arith.constant 0 : index
    %9 = vector.load %arg7[%c0_6, %c0_7] : memref<8x32xf32, #tpu.memory_space<vmem>>, vector<8x32xf32>
    tpu.vector_store %arg7[%c0_6, %c0_7], %8 {strides = array<i32>} : memref<8x32xf32, #tpu.memory_space<vmem>>, vector<8x32xf32>,
    %c0_i32_8 = arith.constant 0 : i32
    %10 = arith.cmpi eq, %arg2, %c0_i32_8 : i32
    %11 = arith.extui %10 : i1 to i32
    %c0_i32_9 = arith.constant 0 : i32
    %12 = arith.cmpi ne, %11, %c0_i32_9 : i32
    scf.if %12 {
      %c0_10 = arith.constant 0 : index
      %c0_11 = arith.constant 0 : index
      %13 = vector.load %arg7[%c0_10, %c0_11] : memref<8x32xf32, #tpu.memory_space<vmem>>, vector<8x32xf32>
      %c0_12 = arith.constant 0 : index
      %c0_13 = arith.constant 0 : index
      %14 = vector.load %arg5[%c0_12, %c0_13] : memref<1x32xf32, #tpu.memory_space<vmem>>, vector<1x32xf32>
      %15 = vector.broadcast %14 : vector<1x32xf32> to vector<8x32xf32>
      %16 = arith.addf %13, %15 : vector<8x32xf32>
      %c0_14 = arith.constant 0 : index
      %c0_15 = arith.constant 0 : index
      %17 = vector.load %arg6[%c0_14, %c0_15] : memref<8x32xf32, #tpu.memory_space<vmem>>, vector<8x32xf32>
      tpu.vector_store %arg6[%c0_14, %c0_15], %16 {strides = array<i32>} : memref<8x32xf32, #tpu.memory_space<vmem>>, vector<8x32xf32>,
    } else {
    }
    return
  }
  func.func @transform_0(%arg0: i32, %arg1: i32, %arg2: i32) -> (i32, i32) {
    %c0_i32 = arith.constant 0 : i32
    return %arg0, %arg2 : i32, i32
  }
  func.func @transform_1(%arg0: i32, %arg1: i32, %arg2: i32) -> (i32, i32) {
    %c0_i32 = arith.constant 0 : i32
    return %arg2, %arg1 : i32, i32
  }
  func.func @transform_2(%arg0: i32, %arg1: i32, %arg2: i32) -> (i32, i32) {
    %c0_i32 = arith.constant 0 : i32
    %c0_i32_0 = arith.constant 0 : i32
    return %c0_i32, %arg1 : i32, i32
  }
  func.func @transform_3(%arg0: i32, %arg1: i32, %arg2: i32) -> (i32, i32) {
    %c0_i32 = arith.constant 0 : i32
    return %arg0, %arg1 : i32, i32
  }
}

module attributes {stable_mosaic.version = 11 : i64} {
  func.func @_ln_linear_kernel(%arg0: i32, %arg1: i32, %arg2: memref<8x32xf32, #tpu.memory_space<vmem>>, %arg3: memref<1x32xf32, #tpu.memory_space<vmem>>, %arg4: memref<1x32xf32, #tpu.memory_space<vmem>>, %arg5: memref<32x96xbf16, #tpu.memory_space<vmem>>, %arg6: memref<1x96xf32, #tpu.memory_space<vmem>>, %arg7: memref<8x96xbf16, #tpu.memory_space<vmem>>) attributes {dimension_semantics = [#tpu.dimension_semantics<parallel>, #tpu.dimension_semantics<parallel>], iteration_bounds = array<i64: 1, 1>, scalar_prefetch = 0 : i64, scratch_operands = 0 : i64, tpu.core_type = #tpu.core_type<tc>, window_params = [{transform_indices = @transform_0, window_bounds = array<i64: 8, 32>}, {pipeline_mode = #tpu.pipeline_mode<synchronous>, transform_indices = @transform_1, window_bounds = array<i64: 1, 32>}, {pipeline_mode = #tpu.pipeline_mode<synchronous>, transform_indices = @transform_2, window_bounds = array<i64: 1, 32>}, {transform_indices = @transform_3, window_bounds = array<i64: 32, 96>}, {transform_indices = @transform_4, window_bounds = array<i64: 1, 96>}, {transform_indices = @transform_5, window_bounds = array<i64: 8, 96>}]} {
    %c0 = arith.constant 0 : index
    %c0_0 = arith.constant 0 : index
    %0 = vector.load %arg2[%c0, %c0_0] : memref<8x32xf32, #tpu.memory_space<vmem>>, vector<8x32xf32>
    %cst = arith.constant dense<0.000000e+00> : vector<8xf32>
    %1 = vector.multi_reduction <add>, %0, %cst [1] : vector<8x32xf32> to vector<8xf32>
    %2 = vector.shape_cast %1 : vector<8xf32> to vector<8x1xf32>
    %cst_1 = arith.constant 3.200000e+01 : f32
    %3 = vector.broadcast %cst_1 : f32 to vector<8x1xf32>
    %4 = arith.divf %2, %3 : vector<8x1xf32>
    %5 = vector.broadcast %4 : vector<8x1xf32> to vector<8x32xf32>
    %6 = arith.subf %0, %5 : vector<8x32xf32>
    %7 = arith.mulf %6, %6 : vector<8x32xf32>
    %cst_2 = arith.constant dense<0.000000e+00> : vector<8xf32>
    %8 = vector.multi_reduction <add>, %7, %cst_2 [1] : vector<8x32xf32> to vector<8xf32>
    %9 = vector.shape_cast %8 : vector<8xf32> to vector<8x1xf32>
    %cst_3 = arith.constant 3.200000e+01 : f32
    %10 = vector.broadcast %cst_3 : f32 to vector<8x1xf32>
    %11 = arith.divf %9, %10 : vector<8x1xf32>
    %cst_4 = arith.constant 9.99999974E-6 : f32
    %12 = vector.broadcast %cst_4 : f32 to vector<8x1xf32>
    %13 = arith.addf %11, %12 : vector<8x1xf32>
    %14 = math.rsqrt %13 : vector<8x1xf32>
    %15 = vector.broadcast %14 : vector<8x1xf32> to vector<8x32xf32>
    %16 = arith.mulf %6, %15 : vector<8x32xf32>
    %c0_5 = arith.constant 0 : index
    %c0_6 = arith.constant 0 : index
    %17 = vector.load %arg3[%c0_5, %c0_6] : memref<1x32xf32, #tpu.memory_space<vmem>>, vector<1x32xf32>
    %18 = vector.broadcast %17 : vector<1x32xf32> to vector<8x32xf32>
    %19 = arith.mulf %16, %18 : vector<8x32xf32>
    %c0_7 = arith.constant 0 : index
    %c0_8 = arith.constant 0 : index
    %20 = vector.load %arg4[%c0_7, %c0_8] : memref<1x32xf32, #tpu.memory_space<vmem>>, vector<1x32xf32>
    %21 = vector.broadcast %20 : vector<1x32xf32> to vector<8x32xf32>
    %22 = arith.addf %19, %21 : vector<8x32xf32>
    %23 = arith.truncf %22 : vector<8x32xf32> to vector<8x32xbf16>
    %c0_9 = arith.constant 0 : index
    %c0_10 = arith.constant 0 : index
    %24 = vector.load %arg5[%c0_9, %c0_10] : memref<32x96xbf16, #tpu.memory_space<vmem>>, vector<32x96xbf16>
    %cst_11 = arith.constant dense<0.000000e+00> : vector<8x96xf32>
    %25 = tpu.matmul %23, %24, %cst_11 {dimension_numbers = #tpu.dot_dimension_numbers<[1], [0], [0], [1], [0, 0, 1, 1], [], []>} : vector<8x32xbf16>, vector<32x96xbf16>, vector<8x96xf32> -> vector<8x96xf32>
    %c0_12 = arith.constant 0 : index
    %c0_13 = arith.constant 0 : index
    %26 = vector.load %arg6[%c0_12, %c0_13] : memref<1x96xf32, #tpu.memory_space<vmem>>, vector<1x96xf32>
    %27 = vector.broadcast %26 : vector<1x96xf32> to vector<8x96xf32>
    %28 = arith.addf %25, %27 : vector<8x96xf32>
    %29 = arith.truncf %28 : vector<8x96xf32> to vector<8x96xbf16>
    %c0_14 = arith.constant 0 : index
    %c0_15 = arith.constant 0 : index
    %30 = vector.load %arg7[%c0_14, %c0_15] : memref<8x96xbf16, #tpu.memory_space<vmem>>, vector<8x96xbf16>
    tpu.vector_store %arg7[%c0_14, %c0_15], %29 {strides = array<i32>} : memref<8x96xbf16, #tpu.memory_space<vmem>>, vector<8x96xbf16>,
    return
  }
  func.func @transform_0(%arg0: i32, %arg1: i32) -> (i32, i32) {
    %c0_i32 = arith.constant 0 : i32
    %c0_i32_0 = arith.constant 0 : i32
    return %arg0, %c0_i32 : i32, i32
  }
  func.func @transform_1(%arg0: i32, %arg1: i32) -> (i32, i32) {
    %c0_i32 = arith.constant 0 : i32
    %c0_i32_0 = arith.constant 0 : i32
    %c0_i32_1 = arith.constant 0 : i32
    return %c0_i32, %c0_i32_0 : i32, i32
  }
  func.func @transform_2(%arg0: i32, %arg1: i32) -> (i32, i32) {
    %c0_i32 = arith.constant 0 : i32
    %c0_i32_0 = arith.constant 0 : i32
    %c0_i32_1 = arith.constant 0 : i32
    return %c0_i32, %c0_i32_0 : i32, i32
  }
  func.func @transform_3(%arg0: i32, %arg1: i32) -> (i32, i32) {
    %c0_i32 = arith.constant 0 : i32
    %c0_i32_0 = arith.constant 0 : i32
    return %c0_i32, %arg1 : i32, i32
  }
  func.func @transform_4(%arg0: i32, %arg1: i32) -> (i32, i32) {
    %c0_i32 = arith.constant 0 : i32
    %c0_i32_0 = arith.constant 0 : i32
    return %c0_i32, %arg1 : i32, i32
  }
  func.func @transform_5(%arg0: i32, %arg1: i32) -> (i32, i32) {
    %c0_i32 = arith.constant 0 : i32
    return %arg0, %arg1 : i32, i32
  }
}

module attributes {stable_mosaic.version = 11 : i64} {
  func.func @_attn_kernel(%arg0: i32, %arg1: memref<1x2x4x16xbf16, #tpu.memory_space<vmem>>, %arg2: memref<1x2x4x16xbf16, #tpu.memory_space<vmem>>, %arg3: memref<1x2x4x16xbf16, #tpu.memory_space<vmem>>, %arg4: memref<1x2x4x16xbf16, #tpu.memory_space<vmem>>) attributes {dimension_semantics = [#tpu.dimension_semantics<parallel>], iteration_bounds = array<i64: 2>, scalar_prefetch = 0 : i64, scratch_operands = 0 : i64, tpu.core_type = #tpu.core_type<tc>, window_params = [{transform_indices = @transform_0, window_bounds = array<i64: 1, 2, 4, 16>}, {transform_indices = @transform_1, window_bounds = array<i64: 1, 2, 4, 16>}, {transform_indices = @transform_2, window_bounds = array<i64: 1, 2, 4, 16>}, {transform_indices = @transform_3, window_bounds = array<i64: 1, 2, 4, 16>}]} {
    %c0 = arith.constant 0 : index
    %c0_0 = arith.constant 0 : index
    %c0_1 = arith.constant 0 : index
    %c0_2 = arith.constant 0 : index
    %0 = vector.load %arg1[%c0, %c0_0, %c0_1, %c0_2] : memref<1x2x4x16xbf16, #tpu.memory_space<vmem>>, vector<1x2x4x16xbf16>
    %1 = vector.shape_cast %0 : vector<1x2x4x16xbf16> to vector<2x4x16xbf16>
    %c0_3 = arith.constant 0 : index
    %c0_4 = arith.constant 0 : index
    %c0_5 = arith.constant 0 : index
    %c0_6 = arith.constant 0 : index
    %2 = vector.load %arg2[%c0_3, %c0_4, %c0_5, %c0_6] : memref<1x2x4x16xbf16, #tpu.memory_space<vmem>>, vector<1x2x4x16xbf16>
    %3 = vector.shape_cast %2 : vector<1x2x4x16xbf16> to vector<2x4x16xbf16>
    %c0_7 = arith.constant 0 : index
    %c0_8 = arith.constant 0 : index
    %c0_9 = arith.constant 0 : index
    %c0_10 = arith.constant 0 : index
    %4 = vector.load %arg3[%c0_7, %c0_8, %c0_9, %c0_10] : memref<1x2x4x16xbf16, #tpu.memory_space<vmem>>, vector<1x2x4x16xbf16>
    %5 = vector.shape_cast %4 : vector<1x2x4x16xbf16> to vector<2x4x16xbf16>
    "tpu.trace_start"() <{level = 10 : i32, message = "htd,hsd->hts"}> : () -> ()
    %cst = arith.constant dense<0.000000e+00> : vector<2x4x4xf32>
    %6 = tpu.matmul %1, %3, %cst {dimension_numbers = #tpu.dot_dimension_numbers<[2], [2], [1], [1], [0, 0, 0, 1, 1, 1], [0], [0]>} : vector<2x4x16xbf16>, vector<2x4x16xbf16>, vector<2x4x4xf32> -> vector<2x4x4xf32>
    "tpu.trace_stop"() : () -> ()
    %cst_11 = arith.constant 2.500000e-01 : f32
    %7 = vector.broadcast %cst_11 : f32 to vector<2x4x4xf32>
    %8 = arith.mulf %6, %7 : vector<2x4x4xf32>
    %9 = tpu.iota {dimensions = array<i32: 0>} : vector<4x4xi32>
    %10 = tpu.iota {dimensions = array<i32: 1>} : vector<4x4xi32>
    %11 = arith.cmpi sle, %10, %9 : vector<4x4xi32>
    %12 = vector.shape_cast %11 : vector<4x4xi1> to vector<1x4x4xi1>
    %cst_12 = arith.constant -1.000000e+30 : f32
    %13 = vector.shape_cast %12 : vector<1x4x4xi1> to vector<1x4x4xi1>
    %14 = vector.broadcast %13 : vector<1x4x4xi1> to vector<2x4x4xi1>
    %15 = vector.broadcast %cst_12 : f32 to vector<2x4x4xf32>
    %16 = arith.select %14, %8, %15 : vector<2x4x4xi1>, vector<2x4x4xf32>
    %cst_13 = arith.constant dense<0xFF800000> : vector<2x4xf32>
    %17 = vector.multi_reduction <maximumf>, %16, %cst_13 [2] : vector<2x4x4xf32> to vector<2x4xf32>
    %18 = vector.shape_cast %17 : vector<2x4xf32> to vector<2x4x1xf32>
    %19 = vector.broadcast %18 : vector<2x4x1xf32> to vector<2x4x4xf32>
    %20 = arith.subf %16, %19 : vector<2x4x4xf32>
    %21 = math.exp %20 : vector<2x4x4xf32>
    %cst_14 = arith.constant dense<0.000000e+00> : vector<2x4xf32>
    %22 = vector.multi_reduction <add>, %21, %cst_14 [2] : vector<2x4x4xf32> to vector<2x4xf32>
    %23 = vector.shape_cast %22 : vector<2x4xf32> to vector<2x4x1xf32>
    %24 = tpu.reciprocal %23 {approx = true} : vector<2x4x1xf32> -> vector<2x4x1xf32>
    %25 = vector.broadcast %24 : vector<2x4x1xf32> to vector<2x4x4xf32>
    %26 = arith.mulf %21, %25 : vector<2x4x4xf32>
    %27 = arith.truncf %26 : vector<2x4x4xf32> to vector<2x4x4xbf16>
    "tpu.trace_start"() <{level = 10 : i32, message = "hts,hsd->htd"}> : () -> ()
    %cst_15 = arith.constant dense<0.000000e+00> : vector<2x4x16xf32>
    %28 = tpu.matmul %27, %5, %cst_15 {dimension_numbers = #tpu.dot_dimension_numbers<[2], [1], [1], [2], [0, 0, 0, 1, 1, 2], [0], [0]>} : vector<2x4x4xbf16>, vector<2x4x16xbf16>, vector<2x4x16xf32> -> vector<2x4x16xf32>
    "tpu.trace_stop"() : () -> ()
    %29 = arith.truncf %28 : vector<2x4x16xf32> to vector<2x4x16xbf16>
    %c0_16 = arith.constant 0 : index
    %c0_17 = arith.constant 0 : index
    %c0_18 = arith.constant 0 : index
    %c0_19 = arith.constant 0 : index
    %30 = vector.load %arg4[%c0_16, %c0_17, %c0_18, %c0_19] : memref<1x2x4x16xbf16, #tpu.memory_space<vmem>>, vector<1x2x4x16xbf16>
    %31 = vector.shape_cast %30 : vector<1x2x4x16xbf16> to vector<2x4x16xbf16>
    %32 = vector.shape_cast %29 : vector<2x4x16xbf16> to vector<1x2x4x16xbf16>
    tpu.vector_store %arg4[%c0_16, %c0_17, %c0_18, %c0_19], %32 {strides = array<i32>} : memref<1x2x4x16xbf16, #tpu.memory_space<vmem>>, vector<1x2x4x16xbf16>,
    return
  }
  func.func @transform_0(%arg0: i32) -> (i32, i32, i32, i32) {
    %c0_i32 = arith.constant 0 : i32
    %c0_i32_0 = arith.constant 0 : i32
    %c0_i32_1 = arith.constant 0 : i32
    %c0_i32_2 = arith.constant 0 : i32
    return %arg0, %c0_i32, %c0_i32_0, %c0_i32_1 : i32, i32, i32, i32
  }
  func.func @transform_1(%arg0: i32) -> (i32, i32, i32, i32) {
    %c0_i32 = arith.constant 0 : i32
    %c0_i32_0 = arith.constant 0 : i32
    %c0_i32_1 = arith.constant 0 : i32
    %c0_i32_2 = arith.constant 0 : i32
    return %arg0, %c0_i32, %c0_i32_0, %c0_i32_1 : i32, i32, i32, i32
  }
  func.func @transform_2(%arg0: i32) -> (i32, i32, i32, i32) {
    %c0_i32 = arith.constant 0 : i32
    %c0_i32_0 = arith.constant 0 : i32
    %c0_i32_1 = arith.constant 0 : i32
    %c0_i32_2 = arith.constant 0 : i32
    return %arg0, %c0_i32, %c0_i32_0, %c0_i32_1 : i32, i32, i32, i32
  }
  func.func @transform_3(%arg0: i32) -> (i32, i32, i32, i32) {
    %c0_i32 = arith.constant 0 : i32
    %c0_i32_0 = arith.constant 0 : i32
    %c0_i32_1 = arith.constant 0 : i32
    %c0_i32_2 = arith.constant 0 : i32
    return %arg0, %c0_i32, %c0_i32_0, %c0_i32_1 : i32, i32, i32, i32
  }
}

module attributes {stable_mosaic.version = 11 : i64} {
  func.func @_linear_kernel(%arg0: i32, %arg1: i32, %arg2: i32, %arg3: memref<8x32xbf16, #tpu.memory_space<vmem>>, %arg4: memref<32x32xbf16, #tpu.memory_space<vmem>>, %arg5: memref<1x32xf32, #tpu.memory_space<vmem>>, %arg6: memref<8x32xf32, #tpu.memory_space<vmem>>, %arg7: memref<8x32xf32, #tpu.memory_space<vmem>>, %arg8: memref<8x32xf32, #tpu.memory_space<vmem>>) attributes {dimension_semantics = [#tpu.dimension_semantics<parallel>, #tpu.dimension_semantics<parallel>, #tpu.dimension_semantics<arbitrary>], iteration_bounds = array<i64: 1, 1, 1>, scalar_prefetch = 0 : i64, scratch_operands = 1 : i64, tpu.core_type = #tpu.core_type<tc>, window_params = [{transform_indices = @transform_0, window_bounds = array<i64: 8, 32>}, {transform_indices = @transform_1, window_bounds = array<i64: 32, 32>}, {transform_indices = @transform_2, window_bounds = array<i64: 1, 32>}, {transform_indices = @transform_3, window_bounds = array<i64: 8, 32>}, {transform_indices = @transform_4, window_bounds = array<i64: 8, 32>}]} {
    %c0_i32 = arith.constant 0 : i32
    %0 = arith.cmpi eq, %arg2, %c0_i32 : i32
    %1 = arith.extui %0 : i1 to i32
    %c0_i32_0 = arith.constant 0 : i32
    %2 = arith.cmpi ne, %1, %c0_i32_0 : i32
    scf.if %2 {
      %cst_10 = arith.constant 0.000000e+00 : f32
      %12 = vector.broadcast %cst_10 : f32 to vector<8x32xf32>
      %c0_11 = arith.constant 0 : index
      %c0_12 = arith.constant 0 : index
      %13 = vector.load %arg8[%c0_11, %c0_12] : memref<8x32xf32, #tpu.memory_space<vmem>>, vector<8x32xf32>
      tpu.vector_store %arg8[%c0_11, %c0_12], %12 {strides = array<i32>} : memref<8x32xf32, #tpu.memory_space<vmem>>, vector<8x32xf32>,
    } else {
    }
    %c0 = arith.constant 0 : index
    %c0_1 = arith.constant 0 : index
    %3 = vector.load %arg8[%c0, %c0_1] : memref<8x32xf32, #tpu.memory_space<vmem>>, vector<8x32xf32>
    %c0_2 = arith.constant 0 : index
    %c0_3 = arith.constant 0 : index
    %4 = vector.load %arg3[%c0_2, %c0_3] : memref<8x32xbf16, #tpu.memory_space<vmem>>, vector<8x32xbf16>
    %c0_4 = arith.constant 0 : index
    %c0_5 = arith.constant 0 : index
    %5 = vector.load %arg4[%c0_4, %c0_5] : memref<32x32xbf16, #tpu.memory_space<vmem>>, vector<32x32xbf16>
    %cst = arith.constant dense<0.000000e+00> : vector<8x32xf32>
    %6 = tpu.matmul %4, %5, %cst {dimension_numbers = #tpu.dot_dimension_numbers<[1], [0], [0], [1], [0, 0, 1, 1], [], []>} : vector<8x32xbf16>, vector<32x32xbf16>, vector<8x32xf32> -> vector<8x32xf32>
    %7 = arith.addf %3, %6 : vector<8x32xf32>
    %c0_6 = arith.constant 0 : index
    %c0_7 = arith.constant 0 : index
    %8 = vector.load %arg8[%c0_6, %c0_7] : memref<8x32xf32, #tpu.memory_space<vmem>>, vector<8x32xf32>
    tpu.vector_store %arg8[%c0_6, %c0_7], %7 {strides = array<i32>} : memref<8x32xf32, #tpu.memory_space<vmem>>, vector<8x32xf32>,
    %c0_i32_8 = arith.constant 0 : i32
    %9 = arith.cmpi eq, %arg2, %c0_i32_8 : i32
    %10 = arith.extui %9 : i1 to i32
    %c0_i32_9 = arith.constant 0 : i32
    %11 = arith.cmpi ne, %10, %c0_i32_9 : i32
    scf.if %11 {
      %c0_10 = arith.constant 0 : index
      %c0_11 = arith.constant 0 : index
      %12 = vector.load %arg8[%c0_10, %c0_11] : memref<8x32xf32, #tpu.memory_space<vmem>>, vector<8x32xf32>
      %c0_12 = arith.constant 0 : index
      %c0_13 = arith.constant 0 : index
      %13 = vector.load %arg5[%c0_12, %c0_13] : memref<1x32xf32, #tpu.memory_space<vmem>>, vector<1x32xf32>
      %14 = vector.broadcast %13 : vector<1x32xf32> to vector<8x32xf32>
      %15 = arith.addf %12, %14 : vector<8x32xf32>
      %c0_14 = arith.constant 0 : index
      %c0_15 = arith.constant 0 : index
      %16 = vector.load %arg6[%c0_14, %c0_15] : memref<8x32xf32, #tpu.memory_space<vmem>>, vector<8x32xf32>
      %17 = arith.addf %15, %16 : vector<8x32xf32>
      %c0_16 = arith.constant 0 : index
      %c0_17 = arith.constant 0 : index
      %18 = vector.load %arg7[%c0_16, %c0_17] : memref<8x32xf32, #tpu.memory_space<vmem>>, vector<8x32xf32>
      tpu.vector_store %arg7[%c0_16, %c0_17], %17 {strides = array<i32>} : memref<8x32xf32, #tpu.memory_space<vmem>>, vector<8x32xf32>,
    } else {
    }
    return
  }
  func.func @transform_0(%arg0: i32, %arg1: i32, %arg2: i32) -> (i32, i32) {
    %c0_i32 = arith.constant 0 : i32
    return %arg0, %arg2 : i32, i32
  }
  func.func @transform_1(%arg0: i32, %arg1: i32, %arg2: i32) -> (i32, i32) {
    %c0_i32 = arith.constant 0 : i32
    return %arg2, %arg1 : i32, i32
  }
  func.func @transform_2(%arg0: i32, %arg1: i32, %arg2: i32) -> (i32, i32) {
    %c0_i32 = arith.constant 0 : i32
    %c0_i32_0 = arith.constant 0 : i32
    return %c0_i32, %arg1 : i32, i32
  }
  func.func @transform_3(%arg0: i32, %arg1: i32, %arg2: i32) -> (i32, i32) {
    %c0_i32 = arith.constant 0 : i32
    return %arg0, %arg1 : i32, i32
  }
  func.func @transform_4(%arg0: i32, %arg1: i32, %arg2: i32) -> (i32, i32) {
    %c0_i32 = arith.constant 0 : i32
    return %arg0, %arg1 : i32, i32
  }
}

module attributes {stable_mosaic.version = 11 : i64} {
  func.func @_ln_linear_kernel(%arg0: i32, %arg1: i32, %arg2: memref<8x32xf32, #tpu.memory_space<vmem>>, %arg3: memref<1x32xf32, #tpu.memory_space<vmem>>, %arg4: memref<1x32xf32, #tpu.memory_space<vmem>>, %arg5: memref<32x128xbf16, #tpu.memory_space<vmem>>, %arg6: memref<1x128xf32, #tpu.memory_space<vmem>>, %arg7: memref<8x128xbf16, #tpu.memory_space<vmem>>) attributes {dimension_semantics = [#tpu.dimension_semantics<parallel>, #tpu.dimension_semantics<parallel>], iteration_bounds = array<i64: 1, 1>, scalar_prefetch = 0 : i64, scratch_operands = 0 : i64, tpu.core_type = #tpu.core_type<tc>, window_params = [{transform_indices = @transform_0, window_bounds = array<i64: 8, 32>}, {pipeline_mode = #tpu.pipeline_mode<synchronous>, transform_indices = @transform_1, window_bounds = array<i64: 1, 32>}, {pipeline_mode = #tpu.pipeline_mode<synchronous>, transform_indices = @transform_2, window_bounds = array<i64: 1, 32>}, {transform_indices = @transform_3, window_bounds = array<i64: 32, 128>}, {transform_indices = @transform_4, window_bounds = array<i64: 1, 128>}, {transform_indices = @transform_5, window_bounds = array<i64: 8, 128>}]} {
    %c0 = arith.constant 0 : index
    %c0_0 = arith.constant 0 : index
    %0 = vector.load %arg2[%c0, %c0_0] : memref<8x32xf32, #tpu.memory_space<vmem>>, vector<8x32xf32>
    %cst = arith.constant dense<0.000000e+00> : vector<8xf32>
    %1 = vector.multi_reduction <add>, %0, %cst [1] : vector<8x32xf32> to vector<8xf32>
    %2 = vector.shape_cast %1 : vector<8xf32> to vector<8x1xf32>
    %cst_1 = arith.constant 3.200000e+01 : f32
    %3 = vector.broadcast %cst_1 : f32 to vector<8x1xf32>
    %4 = arith.divf %2, %3 : vector<8x1xf32>
    %5 = vector.broadcast %4 : vector<8x1xf32> to vector<8x32xf32>
    %6 = arith.subf %0, %5 : vector<8x32xf32>
    %7 = arith.mulf %6, %6 : vector<8x32xf32>
    %cst_2 = arith.constant dense<0.000000e+00> : vector<8xf32>
    %8 = vector.multi_reduction <add>, %7, %cst_2 [1] : vector<8x32xf32> to vector<8xf32>
    %9 = vector.shape_cast %8 : vector<8xf32> to vector<8x1xf32>
    %cst_3 = arith.constant 3.200000e+01 : f32
    %10 = vector.broadcast %cst_3 : f32 to vector<8x1xf32>
    %11 = arith.divf %9, %10 : vector<8x1xf32>
    %cst_4 = arith.constant 9.99999974E-6 : f32
    %12 = vector.broadcast %cst_4 : f32 to vector<8x1xf32>
    %13 = arith.addf %11, %12 : vector<8x1xf32>
    %14 = math.rsqrt %13 : vector<8x1xf32>
    %15 = vector.broadcast %14 : vector<8x1xf32> to vector<8x32xf32>
    %16 = arith.mulf %6, %15 : vector<8x32xf32>
    %c0_5 = arith.constant 0 : index
    %c0_6 = arith.constant 0 : index
    %17 = vector.load %arg3[%c0_5, %c0_6] : memref<1x32xf32, #tpu.memory_space<vmem>>, vector<1x32xf32>
    %18 = vector.broadcast %17 : vector<1x32xf32> to vector<8x32xf32>
    %19 = arith.mulf %16, %18 : vector<8x32xf32>
    %c0_7 = arith.constant 0 : index
    %c0_8 = arith.constant 0 : index
    %20 = vector.load %arg4[%c0_7, %c0_8] : memref<1x32xf32, #tpu.memory_space<vmem>>, vector<1x32xf32>
    %21 = vector.broadcast %20 : vector<1x32xf32> to vector<8x32xf32>
    %22 = arith.addf %19, %21 : vector<8x32xf32>
    %23 = arith.truncf %22 : vector<8x32xf32> to vector<8x32xbf16>
    %c0_9 = arith.constant 0 : index
    %c0_10 = arith.constant 0 : index
    %24 = vector.load %arg5[%c0_9, %c0_10] : memref<32x128xbf16, #tpu.memory_space<vmem>>, vector<32x128xbf16>
    %cst_11 = arith.constant dense<0.000000e+00> : vector<8x128xf32>
    %25 = tpu.matmul %23, %24, %cst_11 {dimension_numbers = #tpu.dot_dimension_numbers<[1], [0], [0], [1], [0, 0, 1, 1], [], []>} : vector<8x32xbf16>, vector<32x128xbf16>, vector<8x128xf32> -> vector<8x128xf32>
    %c0_12 = arith.constant 0 : index
    %c0_13 = arith.constant 0 : index
    %26 = vector.load %arg6[%c0_12, %c0_13] : memref<1x128xf32, #tpu.memory_space<vmem>>, vector<1x128xf32>
    %27 = vector.broadcast %26 : vector<1x128xf32> to vector<8x128xf32>
    %28 = arith.addf %25, %27 : vector<8x128xf32>
    %cst_14 = arith.constant 5.000000e-01 : f32
    %29 = vector.broadcast %cst_14 : f32 to vector<8x128xf32>
    %30 = arith.mulf %29, %28 : vector<8x128xf32>
    %cst_15 = arith.constant 4.471500e-02 : f32
    %31 = vector.broadcast %cst_15 : f32 to vector<8x128xf32>
    %32 = arith.mulf %31, %28 : vector<8x128xf32>
    %33 = arith.mulf %32, %28 : vector<8x128xf32>
    %34 = arith.mulf %33, %28 : vector<8x128xf32>
    %35 = arith.addf %28, %34 : vector<8x128xf32>
    %cst_16 = arith.constant 0.797884583 : f32
    %36 = vector.broadcast %cst_16 : f32 to vector<8x128xf32>
    %37 = arith.mulf %36, %35 : vector<8x128xf32>
    %38 = math.tanh %37 : vector<8x128xf32>
    %cst_17 = arith.constant 1.000000e+00 : f32
    %39 = vector.broadcast %cst_17 : f32 to vector<8x128xf32>
    %40 = arith.addf %39, %38 : vector<8x128xf32>
    %41 = arith.mulf %30, %40 : vector<8x128xf32>
    %42 = arith.truncf %41 : vector<8x128xf32> to vector<8x128xbf16>
    %c0_18 = arith.constant 0 : index
    %c0_19 = arith.constant 0 : index
    %43 = vector.load %arg7[%c0_18, %c0_19] : memref<8x128xbf16, #tpu.memory_space<vmem>>, vector<8x128xbf16>
    tpu.vector_store %arg7[%c0_18, %c0_19], %42 {strides = array<i32>} : memref<8x128xbf16, #tpu.memory_space<vmem>>, vector<8x128xbf16>,
    return
  }
  func.func @transform_0(%arg0: i32, %arg1: i32) -> (i32, i32) {
    %c0_i32 = arith.constant 0 : i32
    %c0_i32_0 = arith.constant 0 : i32
    return %arg0, %c0_i32 : i32, i32
  }
  func.func @transform_1(%arg0: i32, %arg1: i32) -> (i32, i32) {
    %c0_i32 = arith.constant 0 : i32
    %c0_i32_0 = arith.constant 0 : i32
    %c0_i32_1 = arith.constant 0 : i32
    return %c0_i32, %c0_i32_0 : i32, i32
  }
  func.func @transform_2(%arg0: i32, %arg1: i32) -> (i32, i32) {
    %c0_i32 = arith.constant 0 : i32
    %c0_i32_0 = arith.constant 0 : i32
    %c0_i32_1 = arith.constant 0 : i32
    return %c0_i32, %c0_i32_0 : i32, i32
  }
  func.func @transform_3(%arg0: i32, %arg1: i32) -> (i32, i32) {
    %c0_i32 = arith.constant 0 : i32
    %c0_i32_0 = arith.constant 0 : i32
    return %c0_i32, %arg1 : i32, i32
  }
  func.func @transform_4(%arg0: i32, %arg1: i32) -> (i32, i32) {
    %c0_i32 = arith.constant 0 : i32
    %c0_i32_0 = arith.constant 0 : i32
    return %c0_i32, %arg1 : i32, i32
  }
  func.func @transform_5(%arg0: i32, %arg1: i32) -> (i32, i32) {
    %c0_i32 = arith.constant 0 : i32
    return %arg0, %arg1 : i32, i32
  }
}

module attributes {stable_mosaic.version = 11 : i64} {
  func.func @_linear_kernel(%arg0: i32, %arg1: i32, %arg2: i32, %arg3: memref<8x128xbf16, #tpu.memory_space<vmem>>, %arg4: memref<128x32xbf16, #tpu.memory_space<vmem>>, %arg5: memref<1x32xf32, #tpu.memory_space<vmem>>, %arg6: memref<8x32xf32, #tpu.memory_space<vmem>>, %arg7: memref<8x32xf32, #tpu.memory_space<vmem>>, %arg8: memref<8x32xf32, #tpu.memory_space<vmem>>) attributes {dimension_semantics = [#tpu.dimension_semantics<parallel>, #tpu.dimension_semantics<parallel>, #tpu.dimension_semantics<arbitrary>], iteration_bounds = array<i64: 1, 1, 1>, scalar_prefetch = 0 : i64, scratch_operands = 1 : i64, tpu.core_type = #tpu.core_type<tc>, window_params = [{transform_indices = @transform_0, window_bounds = array<i64: 8, 128>}, {transform_indices = @transform_1, window_bounds = array<i64: 128, 32>}, {transform_indices = @transform_2, window_bounds = array<i64: 1, 32>}, {transform_indices = @transform_3, window_bounds = array<i64: 8, 32>}, {transform_indices = @transform_4, window_bounds = array<i64: 8, 32>}]} {
    %c0_i32 = arith.constant 0 : i32
    %0 = arith.cmpi eq, %arg2, %c0_i32 : i32
    %1 = arith.extui %0 : i1 to i32
    %c0_i32_0 = arith.constant 0 : i32
    %2 = arith.cmpi ne, %1, %c0_i32_0 : i32
    scf.if %2 {
      %cst_10 = arith.constant 0.000000e+00 : f32
      %12 = vector.broadcast %cst_10 : f32 to vector<8x32xf32>
      %c0_11 = arith.constant 0 : index
      %c0_12 = arith.constant 0 : index
      %13 = vector.load %arg8[%c0_11, %c0_12] : memref<8x32xf32, #tpu.memory_space<vmem>>, vector<8x32xf32>
      tpu.vector_store %arg8[%c0_11, %c0_12], %12 {strides = array<i32>} : memref<8x32xf32, #tpu.memory_space<vmem>>, vector<8x32xf32>,
    } else {
    }
    %c0 = arith.constant 0 : index
    %c0_1 = arith.constant 0 : index
    %3 = vector.load %arg8[%c0, %c0_1] : memref<8x32xf32, #tpu.memory_space<vmem>>, vector<8x32xf32>
    %c0_2 = arith.constant 0 : index
    %c0_3 = arith.constant 0 : index
    %4 = vector.load %arg3[%c0_2, %c0_3] : memref<8x128xbf16, #tpu.memory_space<vmem>>, vector<8x128xbf16>
    %c0_4 = arith.constant 0 : index
    %c0_5 = arith.constant 0 : index
    %5 = vector.load %arg4[%c0_4, %c0_5] : memref<128x32xbf16, #tpu.memory_space<vmem>>, vector<128x32xbf16>
    %cst = arith.constant dense<0.000000e+00> : vector<8x32xf32>
    %6 = tpu.matmul %4, %5, %cst {dimension_numbers = #tpu.dot_dimension_numbers<[1], [0], [0], [1], [0, 0, 1, 1], [], []>} : vector<8x128xbf16>, vector<128x32xbf16>, vector<8x32xf32> -> vector<8x32xf32>
    %7 = arith.addf %3, %6 : vector<8x32xf32>
    %c0_6 = arith.constant 0 : index
    %c0_7 = arith.constant 0 : index
    %8 = vector.load %arg8[%c0_6, %c0_7] : memref<8x32xf32, #tpu.memory_space<vmem>>, vector<8x32xf32>
    tpu.vector_store %arg8[%c0_6, %c0_7], %7 {strides = array<i32>} : memref<8x32xf32, #tpu.memory_space<vmem>>, vector<8x32xf32>,
    %c0_i32_8 = arith.constant 0 : i32
    %9 = arith.cmpi eq, %arg2, %c0_i32_8 : i32
    %10 = arith.extui %9 : i1 to i32
    %c0_i32_9 = arith.constant 0 : i32
    %11 = arith.cmpi ne, %10, %c0_i32_9 : i32
    scf.if %11 {
      %c0_10 = arith.constant 0 : index
      %c0_11 = arith.constant 0 : index
      %12 = vector.load %arg8[%c0_10, %c0_11] : memref<8x32xf32, #tpu.memory_space<vmem>>, vector<8x32xf32>
      %c0_12 = arith.constant 0 : index
      %c0_13 = arith.constant 0 : index
      %13 = vector.load %arg5[%c0_12, %c0_13] : memref<1x32xf32, #tpu.memory_space<vmem>>, vector<1x32xf32>
      %14 = vector.broadcast %13 : vector<1x32xf32> to vector<8x32xf32>
      %15 = arith.addf %12, %14 : vector<8x32xf32>
      %c0_14 = arith.constant 0 : index
      %c0_15 = arith.constant 0 : index
      %16 = vector.load %arg6[%c0_14, %c0_15] : memref<8x32xf32, #tpu.memory_space<vmem>>, vector<8x32xf32>
      %17 = arith.addf %15, %16 : vector<8x32xf32>
      %c0_16 = arith.constant 0 : index
      %c0_17 = arith.constant 0 : index
      %18 = vector.load %arg7[%c0_16, %c0_17] : memref<8x32xf32, #tpu.memory_space<vmem>>, vector<8x32xf32>
      tpu.vector_store %arg7[%c0_16, %c0_17], %17 {strides = array<i32>} : memref<8x32xf32, #tpu.memory_space<vmem>>, vector<8x32xf32>,
    } else {
    }
    return
  }
  func.func @transform_0(%arg0: i32, %arg1: i32, %arg2: i32) -> (i32, i32) {
    %c0_i32 = arith.constant 0 : i32
    return %arg0, %arg2 : i32, i32
  }
  func.func @transform_1(%arg0: i32, %arg1: i32, %arg2: i32) -> (i32, i32) {
    %c0_i32 = arith.constant 0 : i32
    return %arg2, %arg1 : i32, i32
  }
  func.func @transform_2(%arg0: i32, %arg1: i32, %arg2: i32) -> (i32, i32) {
    %c0_i32 = arith.constant 0 : i32
    %c0_i32_0 = arith.constant 0 : i32
    return %c0_i32, %arg1 : i32, i32
  }
  func.func @transform_3(%arg0: i32, %arg1: i32, %arg2: i32) -> (i32, i32) {
    %c0_i32 = arith.constant 0 : i32
    return %arg0, %arg1 : i32, i32
  }
  func.func @transform_4(%arg0: i32, %arg1: i32, %arg2: i32) -> (i32, i32) {
    %c0_i32 = arith.constant 0 : i32
    return %arg0, %arg1 : i32, i32
  }
}

module attributes {stable_mosaic.version = 11 : i64} {
  func.func @_layernorm_kernel(%arg0: i32, %arg1: memref<8x32xf32, #tpu.memory_space<vmem>>, %arg2: memref<1x32xf32, #tpu.memory_space<vmem>>, %arg3: memref<1x32xf32, #tpu.memory_space<vmem>>, %arg4: memref<8x32xf32, #tpu.memory_space<vmem>>) attributes {dimension_semantics = [#tpu.dimension_semantics<parallel>], iteration_bounds = array<i64: 1>, scalar_prefetch = 0 : i64, scratch_operands = 0 : i64, tpu.core_type = #tpu.core_type<tc>, window_params = [{transform_indices = @transform_0, window_bounds = array<i64: 8, 32>}, {pipeline_mode = #tpu.pipeline_mode<synchronous>, transform_indices = @transform_1, window_bounds = array<i64: 1, 32>}, {pipeline_mode = #tpu.pipeline_mode<synchronous>, transform_indices = @transform_2, window_bounds = array<i64: 1, 32>}, {transform_indices = @transform_3, window_bounds = array<i64: 8, 32>}]} {
    %c0 = arith.constant 0 : index
    %c0_0 = arith.constant 0 : index
    %0 = vector.load %arg1[%c0, %c0_0] : memref<8x32xf32, #tpu.memory_space<vmem>>, vector<8x32xf32>
    %cst = arith.constant dense<0.000000e+00> : vector<8xf32>
    %1 = vector.multi_reduction <add>, %0, %cst [1] : vector<8x32xf32> to vector<8xf32>
    %2 = vector.shape_cast %1 : vector<8xf32> to vector<8x1xf32>
    %cst_1 = arith.constant 3.200000e+01 : f32
    %3 = vector.broadcast %cst_1 : f32 to vector<8x1xf32>
    %4 = arith.divf %2, %3 : vector<8x1xf32>
    %5 = vector.broadcast %4 : vector<8x1xf32> to vector<8x32xf32>
    %6 = arith.subf %0, %5 : vector<8x32xf32>
    %7 = arith.mulf %6, %6 : vector<8x32xf32>
    %cst_2 = arith.constant dense<0.000000e+00> : vector<8xf32>
    %8 = vector.multi_reduction <add>, %7, %cst_2 [1] : vector<8x32xf32> to vector<8xf32>
    %9 = vector.shape_cast %8 : vector<8xf32> to vector<8x1xf32>
    %cst_3 = arith.constant 3.200000e+01 : f32
    %10 = vector.broadcast %cst_3 : f32 to vector<8x1xf32>
    %11 = arith.divf %9, %10 : vector<8x1xf32>
    %cst_4 = arith.constant 9.99999974E-6 : f32
    %12 = vector.broadcast %cst_4 : f32 to vector<8x1xf32>
    %13 = arith.addf %11, %12 : vector<8x1xf32>
    %14 = math.rsqrt %13 : vector<8x1xf32>
    %15 = vector.broadcast %14 : vector<8x1xf32> to vector<8x32xf32>
    %16 = arith.mulf %6, %15 : vector<8x32xf32>
    %c0_5 = arith.constant 0 : index
    %c0_6 = arith.constant 0 : index
    %17 = vector.load %arg2[%c0_5, %c0_6] : memref<1x32xf32, #tpu.memory_space<vmem>>, vector<1x32xf32>
    %18 = vector.broadcast %17 : vector<1x32xf32> to vector<8x32xf32>
    %19 = arith.mulf %16, %18 : vector<8x32xf32>
    %c0_7 = arith.constant 0 : index
    %c0_8 = arith.constant 0 : index
    %20 = vector.load %arg3[%c0_7, %c0_8] : memref<1x32xf32, #tpu.memory_space<vmem>>, vector<1x32xf32>
    %21 = vector.broadcast %20 : vector<1x32xf32> to vector<8x32xf32>
    %22 = arith.addf %19, %21 : vector<8x32xf32>
    %c0_9 = arith.constant 0 : index
    %c0_10 = arith.constant 0 : index
    %23 = vector.load %arg4[%c0_9, %c0_10] : memref<8x32xf32, #tpu.memory_space<vmem>>, vector<8x32xf32>
    tpu.vector_store %arg4[%c0_9, %c0_10], %22 {strides = array<i32>} : memref<8x32xf32, #tpu.memory_space<vmem>>, vector<8x32xf32>,
    return
  }
  func.func @transform_0(%arg0: i32) -> (i32, i32) {
    %c0_i32 = arith.constant 0 : i32
    %c0_i32_0 = arith.constant 0 : i32
    return %arg0, %c0_i32 : i32, i32
  }
  func.func @transform_1(%arg0: i32) -> (i32, i32) {
    %c0_i32 = arith.constant 0 : i32
    %c0_i32_0 = arith.constant 0 : i32
    %c0_i32_1 = arith.constant 0 : i32
    return %c0_i32, %c0_i32_0 : i32, i32
  }
  func.func @transform_2(%arg0: i32) -> (i32, i32) {
    %c0_i32 = arith.constant 0 : i32
    %c0_i32_0 = arith.constant 0 : i32
    %c0_i32_1 = arith.constant 0 : i32
    return %c0_i32, %c0_i32_0 : i32, i32
  }
  func.func @transform_3(%arg0: i32) -> (i32, i32) {
    %c0_i32 = arith.constant 0 : i32
    %c0_i32_0 = arith.constant 0 : i32
    return %arg0, %c0_i32 : i32, i32
  }
}

module attributes {stable_mosaic.version = 11 : i64} {
  func.func @_ln_linear_kernel(%arg0: i32, %arg1: i32, %arg2: memref<8x32xf32, #tpu.memory_space<vmem>>, %arg3: memref<1x32xf32, #tpu.memory_space<vmem>>, %arg4: memref<1x32xf32, #tpu.memory_space<vmem>>, %arg5: memref<32x16xbf16, #tpu.memory_space<vmem>>, %arg6: memref<1x16xf32, #tpu.memory_space<vmem>>, %arg7: memref<8x16xf32, #tpu.memory_space<vmem>>) attributes {dimension_semantics = [#tpu.dimension_semantics<parallel>, #tpu.dimension_semantics<parallel>], iteration_bounds = array<i64: 1, 1>, scalar_prefetch = 0 : i64, scratch_operands = 0 : i64, tpu.core_type = #tpu.core_type<tc>, window_params = [{transform_indices = @transform_0, window_bounds = array<i64: 8, 32>}, {pipeline_mode = #tpu.pipeline_mode<synchronous>, transform_indices = @transform_1, window_bounds = array<i64: 1, 32>}, {pipeline_mode = #tpu.pipeline_mode<synchronous>, transform_indices = @transform_2, window_bounds = array<i64: 1, 32>}, {transform_indices = @transform_3, window_bounds = array<i64: 32, 16>}, {transform_indices = @transform_4, window_bounds = array<i64: 1, 16>}, {transform_indices = @transform_5, window_bounds = array<i64: 8, 16>}]} {
    %c0 = arith.constant 0 : index
    %c0_0 = arith.constant 0 : index
    %0 = vector.load %arg2[%c0, %c0_0] : memref<8x32xf32, #tpu.memory_space<vmem>>, vector<8x32xf32>
    %cst = arith.constant dense<0.000000e+00> : vector<8xf32>
    %1 = vector.multi_reduction <add>, %0, %cst [1] : vector<8x32xf32> to vector<8xf32>
    %2 = vector.shape_cast %1 : vector<8xf32> to vector<8x1xf32>
    %cst_1 = arith.constant 3.200000e+01 : f32
    %3 = vector.broadcast %cst_1 : f32 to vector<8x1xf32>
    %4 = arith.divf %2, %3 : vector<8x1xf32>
    %5 = vector.broadcast %4 : vector<8x1xf32> to vector<8x32xf32>
    %6 = arith.subf %0, %5 : vector<8x32xf32>
    %7 = arith.mulf %6, %6 : vector<8x32xf32>
    %cst_2 = arith.constant dense<0.000000e+00> : vector<8xf32>
    %8 = vector.multi_reduction <add>, %7, %cst_2 [1] : vector<8x32xf32> to vector<8xf32>
    %9 = vector.shape_cast %8 : vector<8xf32> to vector<8x1xf32>
    %cst_3 = arith.constant 3.200000e+01 : f32
    %10 = vector.broadcast %cst_3 : f32 to vector<8x1xf32>
    %11 = arith.divf %9, %10 : vector<8x1xf32>
    %cst_4 = arith.constant 9.99999974E-6 : f32
    %12 = vector.broadcast %cst_4 : f32 to vector<8x1xf32>
    %13 = arith.addf %11, %12 : vector<8x1xf32>
    %14 = math.rsqrt %13 : vector<8x1xf32>
    %15 = vector.broadcast %14 : vector<8x1xf32> to vector<8x32xf32>
    %16 = arith.mulf %6, %15 : vector<8x32xf32>
    %c0_5 = arith.constant 0 : index
    %c0_6 = arith.constant 0 : index
    %17 = vector.load %arg3[%c0_5, %c0_6] : memref<1x32xf32, #tpu.memory_space<vmem>>, vector<1x32xf32>
    %18 = vector.broadcast %17 : vector<1x32xf32> to vector<8x32xf32>
    %19 = arith.mulf %16, %18 : vector<8x32xf32>
    %c0_7 = arith.constant 0 : index
    %c0_8 = arith.constant 0 : index
    %20 = vector.load %arg4[%c0_7, %c0_8] : memref<1x32xf32, #tpu.memory_space<vmem>>, vector<1x32xf32>
    %21 = vector.broadcast %20 : vector<1x32xf32> to vector<8x32xf32>
    %22 = arith.addf %19, %21 : vector<8x32xf32>
    %23 = arith.truncf %22 : vector<8x32xf32> to vector<8x32xbf16>
    %c0_9 = arith.constant 0 : index
    %c0_10 = arith.constant 0 : index
    %24 = vector.load %arg5[%c0_9, %c0_10] : memref<32x16xbf16, #tpu.memory_space<vmem>>, vector<32x16xbf16>
    %cst_11 = arith.constant dense<0.000000e+00> : vector<8x16xf32>
    %25 = tpu.matmul %23, %24, %cst_11 {dimension_numbers = #tpu.dot_dimension_numbers<[1], [0], [0], [1], [0, 0, 1, 1], [], []>} : vector<8x32xbf16>, vector<32x16xbf16>, vector<8x16xf32> -> vector<8x16xf32>
    %c0_12 = arith.constant 0 : index
    %c0_13 = arith.constant 0 : index
    %26 = vector.load %arg6[%c0_12, %c0_13] : memref<1x16xf32, #tpu.memory_space<vmem>>, vector<1x16xf32>
    %27 = vector.broadcast %26 : vector<1x16xf32> to vector<8x16xf32>
    %28 = arith.addf %25, %27 : vector<8x16xf32>
    %c0_14 = arith.constant 0 : index
    %c0_15 = arith.constant 0 : index
    %29 = vector.load %arg7[%c0_14, %c0_15] : memref<8x16xf32, #tpu.memory_space<vmem>>, vector<8x16xf32>
    tpu.vector_store %arg7[%c0_14, %c0_15], %28 {strides = array<i32>} : memref<8x16xf32, #tpu.memory_space<vmem>>, vector<8x16xf32>,
    return
  }
  func.func @transform_0(%arg0: i32, %arg1: i32) -> (i32, i32) {
    %c0_i32 = arith.constant 0 : i32
    %c0_i32_0 = arith.constant 0 : i32
    return %arg0, %c0_i32 : i32, i32
  }
  func.func @transform_1(%arg0: i32, %arg1: i32) -> (i32, i32) {
    %c0_i32 = arith.constant 0 : i32
    %c0_i32_0 = arith.constant 0 : i32
    %c0_i32_1 = arith.constant 0 : i32
    return %c0_i32, %c0_i32_0 : i32, i32
  }
  func.func @transform_2(%arg0: i32, %arg1: i32) -> (i32, i32) {
    %c0_i32 = arith.constant 0 : i32
    %c0_i32_0 = arith.constant 0 : i32
    %c0_i32_1 = arith.constant 0 : i32
    return %c0_i32, %c0_i32_0 : i32, i32
  }
  func.func @transform_3(%arg0: i32, %arg1: i32) -> (i32, i32) {
    %c0_i32 = arith.constant 0 : i32
    %c0_i32_0 = arith.constant 0 : i32
    return %c0_i32, %arg1 : i32, i32
  }
  func.func @transform_4(%arg0: i32, %arg1: i32) -> (i32, i32) {
    %c0_i32 = arith.constant 0 : i32
    %c0_i32_0 = arith.constant 0 : i32
    return %c0_i32, %arg1 : i32, i32
  }
  func.func @transform_5(%arg0: i32, %arg1: i32) -> (i32, i32) {
    %c0_i32 = arith.constant 0 : i32
    return %arg0, %arg1 : i32, i32
  }
}

module attributes {stable_mosaic.version = 11 : i64} {
  func.func @_linear_kernel(%arg0: i32, %arg1: i32, %arg2: i32, %arg3: memref<32x8xf32, #tpu.memory_space<vmem>>, %arg4: memref<8x4xbf16, #tpu.memory_space<vmem>>, %arg5: memref<1x4xf32, #tpu.memory_space<vmem>>, %arg6: memref<32x4xf32, #tpu.memory_space<vmem>>, %arg7: memref<32x4xf32, #tpu.memory_space<vmem>>) attributes {dimension_semantics = [#tpu.dimension_semantics<parallel>, #tpu.dimension_semantics<parallel>, #tpu.dimension_semantics<arbitrary>], iteration_bounds = array<i64: 1, 1, 1>, scalar_prefetch = 0 : i64, scratch_operands = 1 : i64, tpu.core_type = #tpu.core_type<tc>, window_params = [{transform_indices = @transform_0, window_bounds = array<i64: 32, 8>}, {transform_indices = @transform_1, window_bounds = array<i64: 8, 4>}, {transform_indices = @transform_2, window_bounds = array<i64: 1, 4>}, {transform_indices = @transform_3, window_bounds = array<i64: 32, 4>}]} {
    %c0_i32 = arith.constant 0 : i32
    %0 = arith.cmpi eq, %arg2, %c0_i32 : i32
    %1 = arith.extui %0 : i1 to i32
    %c0_i32_0 = arith.constant 0 : i32
    %2 = arith.cmpi ne, %1, %c0_i32_0 : i32
    scf.if %2 {
      %cst_10 = arith.constant 0.000000e+00 : f32
      %13 = vector.broadcast %cst_10 : f32 to vector<32x4xf32>
      %c0_11 = arith.constant 0 : index
      %c0_12 = arith.constant 0 : index
      %14 = vector.load %arg7[%c0_11, %c0_12] : memref<32x4xf32, #tpu.memory_space<vmem>>, vector<32x4xf32>
      tpu.vector_store %arg7[%c0_11, %c0_12], %13 {strides = array<i32>} : memref<32x4xf32, #tpu.memory_space<vmem>>, vector<32x4xf32>,
    } else {
    }
    %c0 = arith.constant 0 : index
    %c0_1 = arith.constant 0 : index
    %3 = vector.load %arg7[%c0, %c0_1] : memref<32x4xf32, #tpu.memory_space<vmem>>, vector<32x4xf32>
    %c0_2 = arith.constant 0 : index
    %c0_3 = arith.constant 0 : index
    %4 = vector.load %arg3[%c0_2, %c0_3] : memref<32x8xf32, #tpu.memory_space<vmem>>, vector<32x8xf32>
    %5 = arith.truncf %4 : vector<32x8xf32> to vector<32x8xbf16>
    %c0_4 = arith.constant 0 : index
    %c0_5 = arith.constant 0 : index
    %6 = vector.load %arg4[%c0_4, %c0_5] : memref<8x4xbf16, #tpu.memory_space<vmem>>, vector<8x4xbf16>
    %cst = arith.constant dense<0.000000e+00> : vector<32x4xf32>
    %7 = tpu.matmul %5, %6, %cst {dimension_numbers = #tpu.dot_dimension_numbers<[1], [0], [0], [1], [0, 0, 1, 1], [], []>} : vector<32x8xbf16>, vector<8x4xbf16>, vector<32x4xf32> -> vector<32x4xf32>
    %8 = arith.addf %3, %7 : vector<32x4xf32>
    %c0_6 = arith.constant 0 : index
    %c0_7 = arith.constant 0 : index
    %9 = vector.load %arg7[%c0_6, %c0_7] : memref<32x4xf32, #tpu.memory_space<vmem>>, vector<32x4xf32>
    tpu.vector_store %arg7[%c0_6, %c0_7], %8 {strides = array<i32>} : memref<32x4xf32, #tpu.memory_space<vmem>>, vector<32x4xf32>,
    %c0_i32_8 = arith.constant 0 : i32
    %10 = arith.cmpi eq, %arg2, %c0_i32_8 : i32
    %11 = arith.extui %10 : i1 to i32
    %c0_i32_9 = arith.constant 0 : i32
    %12 = arith.cmpi ne, %11, %c0_i32_9 : i32
    scf.if %12 {
      %c0_10 = arith.constant 0 : index
      %c0_11 = arith.constant 0 : index
      %13 = vector.load %arg7[%c0_10, %c0_11] : memref<32x4xf32, #tpu.memory_space<vmem>>, vector<32x4xf32>
      %c0_12 = arith.constant 0 : index
      %c0_13 = arith.constant 0 : index
      %14 = vector.load %arg5[%c0_12, %c0_13] : memref<1x4xf32, #tpu.memory_space<vmem>>, vector<1x4xf32>
      %15 = vector.broadcast %14 : vector<1x4xf32> to vector<32x4xf32>
      %16 = arith.addf %13, %15 : vector<32x4xf32>
      %c0_14 = arith.constant 0 : index
      %c0_15 = arith.constant 0 : index
      %17 = vector.load %arg6[%c0_14, %c0_15] : memref<32x4xf32, #tpu.memory_space<vmem>>, vector<32x4xf32>
      tpu.vector_store %arg6[%c0_14, %c0_15], %16 {strides = array<i32>} : memref<32x4xf32, #tpu.memory_space<vmem>>, vector<32x4xf32>,
    } else {
    }
    return
  }
  func.func @transform_0(%arg0: i32, %arg1: i32, %arg2: i32) -> (i32, i32) {
    %c0_i32 = arith.constant 0 : i32
    return %arg0, %arg2 : i32, i32
  }
  func.func @transform_1(%arg0: i32, %arg1: i32, %arg2: i32) -> (i32, i32) {
    %c0_i32 = arith.constant 0 : i32
    return %arg2, %arg1 : i32, i32
  }
  func.func @transform_2(%arg0: i32, %arg1: i32, %arg2: i32) -> (i32, i32) {
    %c0_i32 = arith.constant 0 : i32
    %c0_i32_0 = arith.constant 0 : i32
    return %c0_i32, %arg1 : i32, i32
  }
  func.func @transform_3(%arg0: i32, %arg1: i32, %arg2: i32) -> (i32, i32) {
    %c0_i32 = arith.constant 0 : i32
    return %arg0, %arg1 : i32, i32
  }
}

</mosaic_0001>

<llo_original>
// kernel: model_forward.28
$region0: #{model_forward.28}
  #allocation0 [shape = 'u32[]', space=smem, size = 0x4, offset = 0x4, fixed_abs, tag = 'smem constant byte address 0x4 - core index']
  #allocation1 [shape = 'u32[144,128]{1,0:T(1,128)}', space=vmem, size = 0x12000, scoped, tag = 'internal scratch']
  %s0 = inlined_call_operand.vmem [shape: f32[64,32], index: 0, kind: input, shape index: {}]
  %s1 = inlined_call_operand.vmem [shape: f32[1,32], index: 1, kind: input, shape index: {}]
  %s2 = inlined_call_operand.vmem [shape: f32[1,32], index: 2, kind: input, shape index: {}]
  %s3 = inlined_call_operand.vmem [shape: bf16[32,96], index: 3, kind: input, shape index: {}]
  %s4 = inlined_call_operand.vmem [shape: f32[1,96], index: 4, kind: input, shape index: {}]
  %s5 = inlined_call_operand.vmem [shape: bf16[64,96], index: 5, kind: output, shape index: {}]
  %s6 = sld [smem:[#allocation0]]
  $region30: #{model_forward.28} parent=0
    _
  %s8 = ssub.s32 1, %s6
  %s9 = scalar_select 0, %s8, %s6
  // Predicated region
  $region2: #{model_forward.28} parent=0 // pred_check
    _
  $region3: #{model_forward.28} parent=0 // pred_check_branch
    %11 = sbr.rel (0) target = $region5
  $region4: #{model_forward.28} parent=0 // pred_region
    _
  $region5: #{model_forward.28} parent=0 // pred_fallthru
    _
  // Predicated region
  $region6: #{model_forward.28} parent=0 // pred_check
    _
  $region7: #{model_forward.28} parent=0 // pred_check_branch
    %13 = sbr.rel (0) target = $region9
  $region8: #{model_forward.28} parent=0 // pred_region
    _
  $region9: #{model_forward.28} parent=0 // pred_fallthru
    _
  // Predicated region
  $region10: #{model_forward.28} parent=0 // pred_check
    _
  $region11: #{model_forward.28} parent=0 // pred_check_branch
    %15 = sbr.rel (0) target = $region13
  $region12: #{model_forward.28} parent=0 // pred_region
    _
  $region13: #{model_forward.28} parent=0 // pred_fallthru
    _
  // Predicated region
  $region14: #{model_forward.28} parent=0 // pred_check
    _
  $region15: #{model_forward.28} parent=0 // pred_check_branch
    %17 = sbr.rel (0) target = $region17
  $region16: #{model_forward.28} parent=0 // pred_region
    _
  $region17: #{model_forward.28} parent=0 // pred_fallthru
    _
  // Predicated region
  $region18: #{model_forward.28} parent=0 // pred_check
    _
  $region19: #{model_forward.28} parent=0 // pred_check_branch
    %19 = sbr.rel (0) target = $region21
  $region20: #{model_forward.28} parent=0 // pred_region
    _
  $region21: #{model_forward.28} parent=0 // pred_fallthru
    _
  %v21 = vld [vmem:[%s0] sm:$0xff]
  %v22 = vld [vmem:[%s0 + $0x8] sm:$0xff]
  %v23 = vld [vmem:[%s0 + $0x10] sm:$0xff]
  %v24 = vld [vmem:[%s0 + $0x18] sm:$0xff]
  %v25 = vld [vmem:[%s0 + $0x20] sm:$0xff]
  %v26 = vld [vmem:[%s0 + $0x28] sm:$0xff]
  %v27 = vld [vmem:[%s0 + $0x30] sm:$0xff]
  %v28 = vld [vmem:[%s0 + $0x38] sm:$0xff]
  %vm29 = vcmask 261120
  %v30 = vsel %vm29, %v21, 0.0
  %31 = vadd.xlane.f32.xlu0 %v30
  %v32 = vpop.xlane.xlu0 %31
  %v33 = vsel %vm29, %v22, 0.0
  %34 = vadd.xlane.f32.xlu0 %v33
  %v35 = vpop.xlane.xlu0 %34
  %v36 = vsel %vm29, %v23, 0.0
  %37 = vadd.xlane.f32.xlu0 %v36
  %v38 = vpop.xlane.xlu0 %37
  %v39 = vsel %vm29, %v24, 0.0
  %40 = vadd.xlane.f32.xlu0 %v39
  %v41 = vpop.xlane.xlu0 %40
  %v42 = vsel %vm29, %v25, 0.0
  %43 = vadd.xlane.f32.xlu0 %v42
  %v44 = vpop.xlane.xlu0 %43
  %v45 = vsel %vm29, %v26, 0.0
  %46 = vadd.xlane.f32.xlu0 %v45
  %v47 = vpop.xlane.xlu0 %46
  %v48 = vsel %vm29, %v27, 0.0
  %49 = vadd.xlane.f32.xlu0 %v48
  %v50 = vpop.xlane.xlu0 %49
  %v51 = vsel %vm29, %v28, 0.0
  %52 = vadd.xlane.f32.xlu0 %v51
  %v53 = vpop.xlane.xlu0 %52
  %v54 = vrcp.pop 32.0
  %v55 = vmul.f32 %v32, %v54
  %v56 = vmul.f32 %v35, %v54
  %v57 = vmul.f32 %v38, %v54
  %v58 = vmul.f32 %v41, %v54
  %v59 = vmul.f32 %v44, %v54
  %v60 = vmul.f32 %v47, %v54
  %v61 = vmul.f32 %v50, %v54
  %v62 = vmul.f32 %v53, %v54
  %v63 = vsub.f32 %v21, %v55
  %v64 = vsub.f32 %v22, %v56
  %v65 = vsub.f32 %v23, %v57
  %v66 = vsub.f32 %v24, %v58
  %v67 = vsub.f32 %v25, %v59
  %v68 = vsub.f32 %v26, %v60
  %v69 = vsub.f32 %v27, %v61
  %v70 = vsub.f32 %v28, %v62
  %v71 = vmul.f32 %v63, %v63
  %v72 = vmul.f32 %v64, %v64
  %v73 = vmul.f32 %v65, %v65
  %v74 = vmul.f32 %v66, %v66
  %v75 = vmul.f32 %v67, %v67
  %v76 = vmul.f32 %v68, %v68
  %v77 = vmul.f32 %v69, %v69
  %v78 = vmul.f32 %v70, %v70
  %v79 = vsel %vm29, %v71, 0.0
  %80 = vadd.xlane.f32.xlu0 %v79
  %v81 = vpop.xlane.xlu0 %80
  %v82 = vsel %vm29, %v72, 0.0
  %83 = vadd.xlane.f32.xlu0 %v82
  %v84 = vpop.xlane.xlu0 %83
  %v85 = vsel %vm29, %v73, 0.0
  %86 = vadd.xlane.f32.xlu0 %v85
  %v87 = vpop.xlane.xlu0 %86
  %v88 = vsel %vm29, %v74, 0.0
  %89 = vadd.xlane.f32.xlu0 %v88
  %v90 = vpop.xlane.xlu0 %89
  %v91 = vsel %vm29, %v75, 0.0
  %92 = vadd.xlane.f32.xlu0 %v91
  %v93 = vpop.xlane.xlu0 %92
  %v94 = vsel %vm29, %v76, 0.0
  %95 = vadd.xlane.f32.xlu0 %v94
  %v96 = vpop.xlane.xlu0 %95
  %v97 = vsel %vm29, %v77, 0.0
  %98 = vadd.xlane.f32.xlu0 %v97
  %v99 = vpop.xlane.xlu0 %98
  %v100 = vsel %vm29, %v78, 0.0
  %101 = vadd.xlane.f32.xlu0 %v100
  %v102 = vpop.xlane.xlu0 %101
  %v103 = vmul.f32 %v81, %v54
  %v104 = vmul.f32 %v84, %v54
  %v105 = vmul.f32 %v87, %v54
  %v106 = vmul.f32 %v90, %v54
  %v107 = vmul.f32 %v93, %v54
  %v108 = vmul.f32 %v96, %v54
  %v109 = vmul.f32 %v99, %v54
  %v110 = vmul.f32 %v102, %v54
  %v111 = vadd.f32 %v103, 1e-05
  %v112 = vadd.f32 %v104, 1e-05
  %v113 = vadd.f32 %v105, 1e-05
  %v114 = vadd.f32 %v106, 1e-05
  %v115 = vadd.f32 %v107, 1e-05
  %v116 = vadd.f32 %v108, 1e-05
  %v117 = vadd.f32 %v109, 1e-05
  %v118 = vadd.f32 %v110, 1e-05
  %v119 = vrsqrt.pop %v111
  %v120 = vrsqrt.pop %v112
  %v121 = vrsqrt.pop %v113
  %v122 = vrsqrt.pop %v114
  %v123 = vrsqrt.pop %v115
  %v124 = vrsqrt.pop %v116
  %v125 = vrsqrt.pop %v117
  %v126 = vrsqrt.pop %v118
  %v127 = vmul.f32 %v63, %v119
  %v128 = vmul.f32 %v64, %v120
  %v129 = vmul.f32 %v65, %v121
  %v130 = vmul.f32 %v66, %v122
  %v131 = vmul.f32 %v67, %v123
  %v132 = vmul.f32 %v68, %v124
  %v133 = vmul.f32 %v69, %v125
  %v134 = vmul.f32 %v70, %v126
  %v135 = vld [vmem:[%s1] sm:$0x1]
  %v137 = vlaneseq
  %v138 = vshrl.u32 %v137, 7
  %v139 = vsub.s32 0, %v138
  %v140 = vrot.slane %v135, %v139
  %v142 = vmul.f32 %v127, %v140
  %v143 = vmul.f32 %v128, %v140
  %v144 = vmul.f32 %v129, %v140
  %v145 = vmul.f32 %v130, %v140
  %v146 = vmul.f32 %v131, %v140
  %v147 = vmul.f32 %v132, %v140
  %v148 = vmul.f32 %v133, %v140
  %v149 = vmul.f32 %v134, %v140
  %v150 = vld [vmem:[%s2] sm:$0x1]
  %v152 = vlaneseq
  %v153 = vshrl.u32 %v152, 7
  %v154 = vsub.s32 0, %v153
  %v155 = vrot.slane %v150, %v154
  %v157 = vadd.f32 %v142, %v155
  %v158 = vadd.f32 %v143, %v155
  %v159 = vadd.f32 %v144, %v155
  %v160 = vadd.f32 %v145, %v155
  %v161 = vadd.f32 %v146, %v155
  %v162 = vadd.f32 %v147, %v155
  %v163 = vadd.f32 %v148, %v155
  %v164 = vadd.f32 %v149, %v155
  %v165 = vpack.c.bf16 %v158, %v157
  %v166 = vpack.c.bf16 %v160, %v159
  %v167 = vpack.c.bf16 %v162, %v161
  %v168 = vpack.c.bf16 %v164, %v163
  %v169 = vld [vmem:[%s3] sm:$0xf]
  %v170 = vld [vmem:[%s3 + $0x4] sm:$0xf]
  %v171 = vld [vmem:[%s3 + $0x8] sm:$0xf]
  %v172 = vld [vmem:[%s3 + $0xc] sm:$0xf]
  %v173 = vld [vmem:[%s4] sm:$0x1]
  %v175 = vlaneseq
  %v176 = vshrl.u32 %v175, 7
  %v177 = vsub.s32 0, %v176
  %v178 = vrot.slane %v173, %v177
  %v184 = vunpack.c.l.b16 %v169
  %v185 = vunpack.c.l.b16 %v170
  %v186 = vunpack.c.l.b16 %v171
  %v187 = vunpack.c.l.b16 %v172
  %v188 = vpack.c.b16 %v185, %v184
  %v189 = vpack.c.b16 %v187, %v186
  %v193 = vsel %vm29, %v165, 0
  %v196 = vsel %vm29, %v166, 0
  %v199 = vsel %vm29, %v167, 0
  %v202 = vsel %vm29, %v168, 0
  %204 = vmatprep.subr.bf16.mxu0 0
  %205 = vmatpush1.bf16.msra.mxu0 %v188
  %206 = vmatprep.subr.bf16.mxu0 0
  %207 = vmatpush1.bf16.msra.mxu0 %v189
  %208 = vmatprep.subr.bf16.mxu0 0
  %209 = vmatpush1.bf16.msra.mxu0 0
  %210 = vmatprep.subr.bf16.mxu0 0
  %211 = vmatpush1.bf16.msra.mxu0 0
  %212 = vmatprep.subr.bf16.mxu0 0
  %213 = vmatpush1.bf16.msra.mxu0 0
  %214 = vmatprep.subr.bf16.mxu0 0
  %215 = vmatpush1.bf16.msra.mxu0 0
  %216 = vmatprep.subr.bf16.mxu0 0
  %217 = vmatpush1.bf16.msra.mxu0 0
  %218 = vmatprep.subr.bf16.mxu0 0
  %219 = vmatpush1.bf16.msra.mxu0 0
  %220 = vmatprep.subr.bf16.mxu0 0
  %221 = vmatpush1.bf16.msra.mxu0 0
  %222 = vmatprep.subr.bf16.mxu0 0
  %223 = vmatpush1.bf16.msra.mxu0 0
  %224 = vmatprep.subr.bf16.mxu0 0
  %225 = vmatpush1.bf16.msra.mxu0 0
  %226 = vmatprep.subr.bf16.mxu0 0
  %227 = vmatpush1.bf16.msra.mxu0 0
  %228 = vmatprep.subr.bf16.mxu0 0
  %229 = vmatpush1.bf16.msra.mxu0 0
  %230 = vmatprep.subr.bf16.mxu0 0
  %231 = vmatpush1.bf16.msra.mxu0 0
  %232 = vmatprep.subr.bf16.mxu0 0
  %233 = vmatpush1.bf16.msra.mxu0 0
  %234 = vmatprep.subr.bf16.mxu0 0
  %235 = vmatpush1.bf16.msra.mxu0 0
  %236 = vmatprep.mubr.bf16.mxu0 0
  %237 = vmatmul.mubr.bf16.gmra.mrb[0].mxu0 %v193
  %v238 = vpop.f32.mrb[0].mxu0
  %v239 = vadd.f32 %v178, %v238
  %v240 = vpop.f32.mrb[0].mxu0
  %v241 = vpop.f32.mrb[0].mxu0
  %v242 = vadd.f32 %v178, %v241
  %v243 = vpop.f32.mrb[0].mxu0
  %244 = vmatprep.mubr.bf16.mxu0 0
  %245 = vmatmul.mubr.bf16.gmra.mrb[0].mxu0 %v196
  %v246 = vpop.f32.mrb[0].mxu0
  %v247 = vadd.f32 %v178, %v246
  %v248 = vpop.f32.mrb[0].mxu0
  %v249 = vpop.f32.mrb[0].mxu0
  %v250 = vadd.f32 %v178, %v249
  %v251 = vpop.f32.mrb[0].mxu0
  %252 = vmatprep.mubr.bf16.mxu0 0
  %253 = vmatmul.mubr.bf16.gmra.mrb[0].mxu0 %v199
  %v254 = vpop.f32.mrb[0].mxu0
  %v255 = vadd.f32 %v178, %v254
  %v256 = vpop.f32.mrb[0].mxu0
  %v257 = vpop.f32.mrb[0].mxu0
  %v258 = vadd.f32 %v178, %v257
  %v259 = vpop.f32.mrb[0].mxu0
  %260 = vmatprep.mubr.bf16.mxu0 0
  %261 = vmatmul.mubr.bf16.gmra.mrb[0].mxu0 %v202
  %v262 = vpop.f32.mrb[0].mxu0
  %v263 = vadd.f32 %v178, %v262
  %v264 = vpop.f32.mrb[0].mxu0
  %v265 = vpop.f32.mrb[0].mxu0
  %v266 = vadd.f32 %v178, %v265
  %v267 = vpop.f32.mrb[0].mxu0
  %268 = vdwg.mxu0
  %v269 = vpack.c.bf16 %v242, %v239
  %v270 = vpack.c.bf16 %v250, %v247
  %v271 = vpack.c.bf16 %v258, %v255
  %v272 = vpack.c.bf16 %v266, %v263
  %v277 = vunpack.c.l.b16 %v269
  %v278 = vunpack.c.h.b16 %v269
  %v279 = vunpack.c.l.b16 %v270
  %v280 = vunpack.c.h.b16 %v270
  %v281 = vunpack.c.l.b16 %v271
  %v282 = vunpack.c.h.b16 %v271
  %v283 = vunpack.c.l.b16 %v272
  %v284 = vunpack.c.h.b16 %v272
  %v285 = vpack.c.b16 %v277, %v277
  %v286 = vpack.c.b16 %v278, %v278
  %v287 = vpack.c.b16 %v279, %v279
  %v288 = vpack.c.b16 %v280, %v280
  %v289 = vpack.c.b16 %v281, %v281
  %v290 = vpack.c.b16 %v282, %v282
  %v291 = vpack.c.b16 %v283, %v283
  %v292 = vpack.c.b16 %v284, %v284
  %vm301 = vcmask 781312
  %302 = vst.msk [vmem:[%s5] sm:$0xf] %vm301, %v285
  %303 = vst.msk [vmem:[%s5 + $0x4] sm:$0xf] %vm301, %v286
  %304 = vst.msk [vmem:[%s5 + $0x8] sm:$0xf] %vm301, %v287
  %305 = vst.msk [vmem:[%s5 + $0xc] sm:$0xf] %vm301, %v288
  %306 = vst.msk [vmem:[%s5 + $0x10] sm:$0xf] %vm301, %v289
  %307 = vst.msk [vmem:[%s5 + $0x14] sm:$0xf] %vm301, %v290
  %308 = vst.msk [vmem:[%s5 + $0x18] sm:$0xf] %vm301, %v291
  %309 = vst.msk [vmem:[%s5 + $0x1c] sm:$0xf] %vm301, %v292
  // Predicated region
  $region22: #{model_forward.28} parent=0 // pred_check
    _
  $region23: #{model_forward.28} parent=0 // pred_check_branch
    %311 = sbr.rel (0) target = $region25
  $region24: #{model_forward.28} parent=0 // pred_region
    _
  $region25: #{model_forward.28} parent=0 // pred_fallthru
    _
  // Predicated region
  $region26: #{model_forward.28} parent=0 // pred_check
    _
  $region27: #{model_forward.28} parent=0 // pred_check_branch
    %313 = sbr.rel (0) target = $region29
  $region28: #{model_forward.28} parent=0 // pred_region
    _
  $region29: #{model_forward.28} parent=0 // pred_fallthru
    _

// kernel: model_forward.27
$region0: #{model_forward.27}
  #allocation0 [shape = 'u32[]', space=smem, size = 0x4, offset = 0x4, fixed_abs, tag = 'smem constant byte address 0x4 - core index']
  #allocation1 [shape = 'u32[144,128]{1,0:T(1,128)}', space=vmem, size = 0x12000, scoped, tag = 'internal scratch']
  #allocation2 [shape = 'f32[64,32]{1,0:T(8,128)}', space=vmem, size = 0x8000, scoped, tag = 'scratch operand']
  %s0 = inlined_call_operand.vmem [shape: f32[64,8], index: 0, kind: input, shape index: {}]
  %s1 = inlined_call_operand.vmem [shape: bf16[8,32], index: 1, kind: input, shape index: {}]
  %s2 = inlined_call_operand.vmem [shape: f32[1,32], index: 2, kind: input, shape index: {}]
  %s3 = inlined_call_operand.vmem [shape: f32[64,32], index: 3, kind: output, shape index: {}]
  %s4 = sld [smem:[#allocation0]]
  $region30: #{model_forward.27} parent=0
    _
  %s6 = ssub.s32 1, %s4
  %s7 = scalar_select 0, %s6, %s4
  // Predicated region
  $region2: #{model_forward.27} parent=0 // pred_check
    _
  $region3: #{model_forward.27} parent=0 // pred_check_branch
    %9 = sbr.rel (0) target = $region5
  $region4: #{model_forward.27} parent=0 // pred_region
    _
  $region5: #{model_forward.27} parent=0 // pred_fallthru
    _
  // Predicated region
  $region6: #{model_forward.27} parent=0 // pred_check
    _
  $region7: #{model_forward.27} parent=0 // pred_check_branch
    %11 = sbr.rel (0) target = $region9
  $region8: #{model_forward.27} parent=0 // pred_region
    _
  $region9: #{model_forward.27} parent=0 // pred_fallthru
    _
  // Predicated region
  $region10: #{model_forward.27} parent=0 // pred_check
    _
  $region11: #{model_forward.27} parent=0 // pred_check_branch
    %13 = sbr.rel (0) target = $region13
  $region12: #{model_forward.27} parent=0 // pred_region
    _
  $region13: #{model_forward.27} parent=0 // pred_fallthru
    _
  %p15 = scmp.eq.s32.totalorder 0, 0
  // Predicated region
  $region14: #{model_forward.27} parent=0 // pred_check
    %p16 = pneg %p15
  $region15: #{model_forward.27} parent=0 // pred_check_branch
    %18 = sbr.rel (%p16) target = $region17
  $region16: #{model_forward.27} parent=0 // pred_region
    %vm19 = vcmask 261120
    %20 = vst.msk [vmem:[#allocation2] sm:$0xff] %vm19, 0.0
    %21 = vst.msk [vmem:[#allocation2 + $0x8] sm:$0xff] %vm19, 0.0
    %22 = vst.msk [vmem:[#allocation2 + $0x10] sm:$0xff] %vm19, 0.0
    %23 = vst.msk [vmem:[#allocation2 + $0x18] sm:$0xff] %vm19, 0.0
    %24 = vst.msk [vmem:[#allocation2 + $0x20] sm:$0xff] %vm19, 0.0
    %25 = vst.msk [vmem:[#allocation2 + $0x28] sm:$0xff] %vm19, 0.0
    %26 = vst.msk [vmem:[#allocation2 + $0x30] sm:$0xff] %vm19, 0.0
    %27 = vst.msk [vmem:[#allocation2 + $0x38] sm:$0xff] %vm19, 0.0
  $region17: #{model_forward.27} parent=0 // pred_fallthru
    _
  %v28 = vld [vmem:[#allocation2] sm:$0xff]
  %v29 = vld [vmem:[#allocation2 + $0x8] sm:$0xff]
  %v30 = vld [vmem:[#allocation2 + $0x10] sm:$0xff]
  %v31 = vld [vmem:[#allocation2 + $0x18] sm:$0xff]
  %v32 = vld [vmem:[#allocation2 + $0x20] sm:$0xff]
  %v33 = vld [vmem:[#allocation2 + $0x28] sm:$0xff]
  %v34 = vld [vmem:[#allocation2 + $0x30] sm:$0xff]
  %v35 = vld [vmem:[#allocation2 + $0x38] sm:$0xff]
  %v36 = vld [vmem:[%s0] sm:$0xff]
  %v37 = vld [vmem:[%s0 + $0x8] sm:$0xff]
  %v38 = vld [vmem:[%s0 + $0x10] sm:$0xff]
  %v39 = vld [vmem:[%s0 + $0x18] sm:$0xff]
  %v40 = vld [vmem:[%s0 + $0x20] sm:$0xff]
  %v41 = vld [vmem:[%s0 + $0x28] sm:$0xff]
  %v42 = vld [vmem:[%s0 + $0x30] sm:$0xff]
  %v43 = vld [vmem:[%s0 + $0x38] sm:$0xff]
  %v44 = vpack.c.bf16 %v37, %v36
  %v45 = vpack.c.bf16 %v39, %v38
  %v46 = vpack.c.bf16 %v41, %v40
  %v47 = vpack.c.bf16 %v43, %v42
  %v48 = vld [vmem:[%s1] sm:$0xf]
  %vm49 = vcmask 64512
  %v51 = vsel %vm49, %v44, 0
  %v54 = vsel %vm49, %v45, 0
  %v57 = vsel %vm49, %v46, 0
  %v60 = vsel %vm49, %v47, 0
  %vm62 = vcmask 1043456
  %v64 = vsel %vm62, %v48, 0
  %66 = vmatprep.subr.bf16.mxu0 0
  %67 = vmatpush1.bf16.msra.mxu0 %v64
  %68 = vmatprep.subr.bf16.mxu0 0
  %69 = vmatpush1.bf16.msra.mxu0 0
  %70 = vmatprep.subr.bf16.mxu0 0
  %71 = vmatpush1.bf16.msra.mxu0 0
  %72 = vmatprep.subr.bf16.mxu0 0
  %73 = vmatpush1.bf16.msra.mxu0 0
  %74 = vmatprep.subr.bf16.mxu0 0
  %75 = vmatpush1.bf16.msra.mxu0 0
  %76 = vmatprep.subr.bf16.mxu0 0
  %77 = vmatpush1.bf16.msra.mxu0 0
  %78 = vmatprep.subr.bf16.mxu0 0
  %79 = vmatpush1.bf16.msra.mxu0 0
  %80 = vmatprep.subr.bf16.mxu0 0
  %81 = vmatpush1.bf16.msra.mxu0 0
  %82 = vmatprep.subr.bf16.mxu0 0
  %83 = vmatpush1.bf16.msra.mxu0 0
  %84 = vmatprep.subr.bf16.mxu0 0
  %85 = vmatpush1.bf16.msra.mxu0 0
  %86 = vmatprep.subr.bf16.mxu0 0
  %87 = vmatpush1.bf16.msra.mxu0 0
  %88 = vmatprep.subr.bf16.mxu0 0
  %89 = vmatpush1.bf16.msra.mxu0 0
  %90 = vmatprep.subr.bf16.mxu0 0
  %91 = vmatpush1.bf16.msra.mxu0 0
  %92 = vmatprep.subr.bf16.mxu0 0
  %93 = vmatpush1.bf16.msra.mxu0 0
  %94 = vmatprep.subr.bf16.mxu0 0
  %95 = vmatpush1.bf16.msra.mxu0 0
  %96 = vmatprep.subr.bf16.mxu0 0
  %97 = vmatpush1.bf16.msra.mxu0 0
  %98 = vmatprep.mubr.bf16.mxu0 0
  %99 = vmatmul.mubr.bf16.gmra.mrb[0].mxu0 %v51
  %v100 = vpop.f32.mrb[0].mxu0
  %v101 = vadd.f32 0.0, %v100
  %v102 = vpop.f32.mrb[0].mxu0
  %v103 = vpop.f32.mrb[0].mxu0
  %v104 = vadd.f32 0.0, %v103
  %v105 = vpop.f32.mrb[0].mxu0
  %106 = vmatprep.mubr.bf16.mxu0 0
  %107 = vmatmul.mubr.bf16.gmra.mrb[0].mxu0 %v54
  %v108 = vpop.f32.mrb[0].mxu0
  %v109 = vadd.f32 0.0, %v108
  %v110 = vpop.f32.mrb[0].mxu0
  %v111 = vpop.f32.mrb[0].mxu0
  %v112 = vadd.f32 0.0, %v111
  %v113 = vpop.f32.mrb[0].mxu0
  %114 = vmatprep.mubr.bf16.mxu0 0
  %115 = vmatmul.mubr.bf16.gmra.mrb[0].mxu0 %v57
  %v116 = vpop.f32.mrb[0].mxu0
  %v117 = vadd.f32 0.0, %v116
  %v118 = vpop.f32.mrb[0].mxu0
  %v119 = vpop.f32.mrb[0].mxu0
  %v120 = vadd.f32 0.0, %v119
  %v121 = vpop.f32.mrb[0].mxu0
  %122 = vmatprep.mubr.bf16.mxu0 0
  %123 = vmatmul.mubr.bf16.gmra.mrb[0].mxu0 %v60
  %v124 = vpop.f32.mrb[0].mxu0
  %v125 = vadd.f32 0.0, %v124
  %v126 = vpop.f32.mrb[0].mxu0
  %v127 = vpop.f32.mrb[0].mxu0
  %v128 = vadd.f32 0.0, %v127
  %v129 = vpop.f32.mrb[0].mxu0
  %130 = vdwg.mxu0
  %v131 = vadd.f32 %v28, %v101
  %v132 = vadd.f32 %v29, %v104
  %v133 = vadd.f32 %v30, %v109
  %v134 = vadd.f32 %v31, %v112
  %v135 = vadd.f32 %v32, %v117
  %v136 = vadd.f32 %v33, %v120
  %v137 = vadd.f32 %v34, %v125
  %v138 = vadd.f32 %v35, %v128
  %vm139 = vcmask 261120
  %140 = vst.msk [vmem:[#allocation2] sm:$0xff] %vm139, %v131
  %141 = vst.msk [vmem:[#allocation2 + $0x8] sm:$0xff] %vm139, %v132
  %142 = vst.msk [vmem:[#allocation2 + $0x10] sm:$0xff] %vm139, %v133
  %143 = vst.msk [vmem:[#allocation2 + $0x18] sm:$0xff] %vm139, %v134
  %144 = vst.msk [vmem:[#allocation2 + $0x20] sm:$0xff] %vm139, %v135
  %145 = vst.msk [vmem:[#allocation2 + $0x28] sm:$0xff] %vm139, %v136
  %146 = vst.msk [vmem:[#allocation2 + $0x30] sm:$0xff] %vm139, %v137
  %147 = vst.msk [vmem:[#allocation2 + $0x38] sm:$0xff] %vm139, %v138
  // Predicated region
  $region18: #{model_forward.27} parent=0 // pred_check
    %p148 = pneg %p15
  $region19: #{model_forward.27} parent=0 // pred_check_branch
    %150 = sbr.rel (%p148) target = $region21
  $region20: #{model_forward.27} parent=0 // pred_region
    %v151 = vld [vmem:[#allocation2] sm:$0xff]
    %v152 = vld [vmem:[#allocation2 + $0x8] sm:$0xff]
    %v153 = vld [vmem:[#allocation2 + $0x10] sm:$0xff]
    %v154 = vld [vmem:[#allocation2 + $0x18] sm:$0xff]
    %v155 = vld [vmem:[#allocation2 + $0x20] sm:$0xff]
    %v156 = vld [vmem:[#allocation2 + $0x28] sm:$0xff]
    %v157 = vld [vmem:[#allocation2 + $0x30] sm:$0xff]
    %v158 = vld [vmem:[#allocation2 + $0x38] sm:$0xff]
    %v159 = vld [vmem:[%s2] sm:$0x1]
    %v161 = vlaneseq
    %v162 = vshrl.u32 %v161, 7
    %v163 = vsub.s32 0, %v162
    %v164 = vrot.slane %v159, %v163
    %v166 = vadd.f32 %v151, %v164
    %v167 = vadd.f32 %v152, %v164
    %v168 = vadd.f32 %v153, %v164
    %v169 = vadd.f32 %v154, %v164
    %v170 = vadd.f32 %v155, %v164
    %v171 = vadd.f32 %v156, %v164
    %v172 = vadd.f32 %v157, %v164
    %v173 = vadd.f32 %v158, %v164
    %174 = vst.msk [vmem:[%s3] sm:$0xff] %vm139, %v166
    %175 = vst.msk [vmem:[%s3 + $0x8] sm:$0xff] %vm139, %v167
    %176 = vst.msk [vmem:[%s3 + $0x10] sm:$0xff] %vm139, %v168
    %177 = vst.msk [vmem:[%s3 + $0x18] sm:$0xff] %vm139, %v169
    %178 = vst.msk [vmem:[%s3 + $0x20] sm:$0xff] %vm139, %v170
    %179 = vst.msk [vmem:[%s3 + $0x28] sm:$0xff] %vm139, %v171
    %180 = vst.msk [vmem:[%s3 + $0x30] sm:$0xff] %vm139, %v172
    %181 = vst.msk [vmem:[%s3 + $0x38] sm:$0xff] %vm139, %v173
  $region21: #{model_forward.27} parent=0 // pred_fallthru
    _
  // Predicated region
  $region22: #{model_forward.27} parent=0 // pred_check
    _
  $region23: #{model_forward.27} parent=0 // pred_check_branch
    %183 = sbr.rel (0) target = $region25
  $region24: #{model_forward.27} parent=0 // pred_region
    _
  $region25: #{model_forward.27} parent=0 // pred_fallthru
    _
  // Predicated region
  $region26: #{model_forward.27} parent=0 // pred_check
    _
  $region27: #{model_forward.27} parent=0 // pred_check_branch
    %185 = sbr.rel (0) target = $region29
  $region28: #{model_forward.27} parent=0 // pred_region
    _
  $region29: #{model_forward.27} parent=0 // pred_fallthru
    _

// kernel: model_forward.29
$region0: #{model_forward.29}
  #allocation0 [shape = 'u32[]', space=smem, size = 0x4, offset = 0x4, fixed_abs, tag = 'smem constant byte address 0x4 - core index']
  #allocation1 [shape = 'u32[144,128]{1,0:T(1,128)}', space=vmem, size = 0x12000, scoped, tag = 'internal scratch']
  %s0 = inlined_call_operand.vmem [shape: bf16[4,2,16,16], index: 0, kind: input, shape index: {}]
  %s1 = inlined_call_operand.vmem [shape: bf16[4,2,16,16], index: 1, kind: input, shape index: {}]
  %s2 = inlined_call_operand.vmem [shape: bf16[4,2,16,16], index: 2, kind: input, shape index: {}]
  %s3 = inlined_call_operand.vmem [shape: bf16[4,2,16,16], index: 3, kind: output, shape index: {}]
  %s4 = sld [smem:[#allocation0]]
  $region45: #{model_forward.29} parent=0
    _
  %s6 = ssub.s32 1, %s4
  %s7 = scalar_select 0, %s6, %s4
  loop: start=0, step=1, limit=6
  $region2: #{model_forward.29} parent=0 // loop_pre_header
    _
  $region3: #{model_forward.29} parent=0 // loop_header
    %s9 = sphi 0, %s13
    %p10 = scmp.ge.s32.totalorder %s9, 6
    %s19 = sphi 0, %s21
    %s22 = sphi 0, %s19
    %s23 = sphi 0, %s22
    %s39 = sphi 0, %s23
    %s45 = sphi 0, %s47
    %s48 = sphi 0, %s45
    %s49 = sphi 0, %s48
    %s65 = sphi 0, %s49
    %s71 = sphi 0, %s73
    %s74 = sphi 0, %s71
    %s75 = sphi 0, %s74
    %s91 = sphi 0, %s75
    %s97 = sphi 0, %s99
    %s100 = sphi 0, %s97
    %s101 = sphi 0, %s100
    %s117 = sphi 0, %s101
  $region4: #{model_forward.29} parent=0 // loop_header_branch
    %12 = sbr.rel (%p10) target = $region8
  $region5: #{model_forward.29} parent=0 // loop_body
    %s14 = ssub.s32 %s9, 1
    %s15 = ssub.s32 %s9, 2
    %s16 = sadd.s32 %s9, 1
    %s17 = ssub.s32 %s9, %s16
    %p18 = scmp.eq.s32.totalorder %s17, 0
    %s20 = sadd.s32 %s19, 1
    %s21 = scalar_select %p18, %s19, %s20
    %p24 = pneg %p18
    %p25 = scmp.eq.s32.totalorder %s9, 3
    %p26 = por %p24, %p25
    %p27 = scmp.ne.s32.totalorder %s19, %s22
    %p28 = scmp.eq.s32.totalorder %s9, 0
    %p29 = por %p27, %p28
    %p30 = scmp.ne.s32.totalorder %s19, %s22
    %p31 = scmp.eq.s32.totalorder %s14, 3
    %p32 = por %p30, %p31
    %p33 = scmp.ne.s32.totalorder %s22, %s23
    %p34 = scmp.eq.s32.totalorder %s14, 0
    %p35 = por %p33, %p34
    %p36 = scmp.ne.s32.totalorder %s22, %s23
    %p37 = scmp.eq.s32.totalorder %s15, 3
    %p38 = por %p36, %p37
    %p40 = scmp.ne.s32.totalorder %s23, %s39
    %p41 = scmp.eq.s32.totalorder %s15, 0
    %p42 = por %p40, %p41
    %s43 = ssub.s32 %s9, %s16
    %p44 = scmp.eq.s32.totalorder %s43, 0
    %s46 = sadd.s32 %s45, 1
    %s47 = scalar_select %p44, %s45, %s46
    %p50 = pneg %p44
    %p51 = scmp.eq.s32.totalorder %s9, 3
    %p52 = por %p50, %p51
    %p53 = scmp.ne.s32.totalorder %s45, %s48
    %p54 = scmp.eq.s32.totalorder %s9, 0
    %p55 = por %p53, %p54
    %p56 = scmp.ne.s32.totalorder %s45, %s48
    %p57 = scmp.eq.s32.totalorder %s14, 3
    %p58 = por %p56, %p57
    %p59 = scmp.ne.s32.totalorder %s48, %s49
    %p60 = scmp.eq.s32.totalorder %s14, 0
    %p61 = por %p59, %p60
    %p62 = scmp.ne.s32.totalorder %s48, %s49
    %p63 = scmp.eq.s32.totalorder %s15, 3
    %p64 = por %p62, %p63
    %p66 = scmp.ne.s32.totalorder %s49, %s65
    %p67 = scmp.eq.s32.totalorder %s15, 0
    %p68 = por %p66, %p67
    %s69 = ssub.s32 %s9, %s16
    %p70 = scmp.eq.s32.totalorder %s69, 0
    %s72 = sadd.s32 %s71, 1
    %s73 = scalar_select %p70, %s71, %s72
    %p76 = pneg %p70
    %p77 = scmp.eq.s32.totalorder %s9, 3
    %p78 = por %p76, %p77
    %p79 = scmp.ne.s32.totalorder %s71, %s74
    %p80 = scmp.eq.s32.totalorder %s9, 0
    %p81 = por %p79, %p80
    %p82 = scmp.ne.s32.totalorder %s71, %s74
    %p83 = scmp.eq.s32.totalorder %s14, 3
    %p84 = por %p82, %p83
    %p85 = scmp.ne.s32.totalorder %s74, %s75
    %p86 = scmp.eq.s32.totalorder %s14, 0
    %p87 = por %p85, %p86
    %p88 = scmp.ne.s32.totalorder %s74, %s75
    %p89 = scmp.eq.s32.totalorder %s15, 3
    %p90 = por %p88, %p89
    %p92 = scmp.ne.s32.totalorder %s75, %s91
    %p93 = scmp.eq.s32.totalorder %s15, 0
    %p94 = por %p92, %p93
    %s95 = ssub.s32 %s9, %s16
    %p96 = scmp.eq.s32.totalorder %s95, 0
    %s98 = sadd.s32 %s97, 1
    %s99 = scalar_select %p96, %s97, %s98
    %p102 = pneg %p96
    %p103 = scmp.eq.s32.totalorder %s9, 3
    %p104 = por %p102, %p103
    %p105 = scmp.ne.s32.totalorder %s97, %s100
    %p106 = scmp.eq.s32.totalorder %s9, 0
    %p107 = por %p105, %p106
    %p108 = scmp.ne.s32.totalorder %s97, %s100
    %p109 = scmp.eq.s32.totalorder %s14, 3
    %p110 = por %p108, %p109
    %p111 = scmp.ne.s32.totalorder %s100, %s101
    %p112 = scmp.eq.s32.totalorder %s14, 0
    %p113 = por %p111, %p112
    %p114 = scmp.ne.s32.totalorder %s100, %s101
    %p115 = scmp.eq.s32.totalorder %s15, 3
    %p116 = por %p114, %p115
    %p118 = scmp.ne.s32.totalorder %s101, %s117
    %p119 = scmp.eq.s32.totalorder %s15, 0
    %p120 = por %p118, %p119
    %p121 = scmp.le.s32.totalorder 1, %s9
    %p122 = scmp.lt.s32.totalorder %s9, 5
    %p123 = pnand %p121, %p122
    %p124 = pneg %p123
    // Predicated region
    $region9: #{model_forward.29} parent=5 // pred_check
      _
    $region10: #{model_forward.29} parent=5 // pred_check_branch
      %126 = sbr.rel (%p123) target = $region12
    $region11: #{model_forward.29} parent=5 // pred_region
      %s127 = ssub.s32 %s9, 1
    $region12: #{model_forward.29} parent=5 // pred_fallthru
      _
    %p128 = scmp.lt.s32.totalorder %s9, 4
    // Predicated region
    $region13: #{model_forward.29} parent=5 // pred_check
      %p129 = pneg %p128
    $region14: #{model_forward.29} parent=5 // pred_check_branch
      %131 = sbr.rel (%p129) target = $region16
    $region15: #{model_forward.29} parent=5 // pred_region
      // Predicated region
      $region17: #{model_forward.29} parent=15 // pred_check
        %p132 = pneg %p29
      $region18: #{model_forward.29} parent=15 // pred_check_branch
        %134 = sbr.rel (%p132) target = $region20
      $region19: #{model_forward.29} parent=15 // pred_region
        %p135 = scmp.lt.s32.totalorder %s9, 3
        %s136 = scalar_select %p135, %s9, 3
        %s137 = smul.addr %s136, 4
        %s138 = smul.addr %s137, 4
        %s139 = scalar_lea.vmem %s0, %s138
      $region20: #{model_forward.29} parent=15 // pred_fallthru
        _
      // Predicated region
      $region21: #{model_forward.29} parent=15 // pred_check
        %p140 = pneg %p55
      $region22: #{model_forward.29} parent=15 // pred_check_branch
        %142 = sbr.rel (%p140) target = $region24
      $region23: #{model_forward.29} parent=15 // pred_region
        %p143 = scmp.lt.s32.totalorder %s9, 3
        %s144 = scalar_select %p143, %s9, 3
        %s145 = smul.addr %s144, 4
        %s146 = smul.addr %s145, 4
        %s147 = scalar_lea.vmem %s1, %s146
      $region24: #{model_forward.29} parent=15 // pred_fallthru
        _
      // Predicated region
      $region25: #{model_forward.29} parent=15 // pred_check
        %p148 = pneg %p81
      $region26: #{model_forward.29} parent=15 // pred_check_branch
        %150 = sbr.rel (%p148) target = $region28
      $region27: #{model_forward.29} parent=15 // pred_region
        %p151 = scmp.lt.s32.totalorder %s9, 3
        %s152 = scalar_select %p151, %s9, 3
        %s153 = smul.addr %s152, 4
        %s154 = smul.addr %s153, 4
        %s155 = scalar_lea.vmem %s2, %s154
      $region28: #{model_forward.29} parent=15 // pred_fallthru
        _
    $region16: #{model_forward.29} parent=5 // pred_fallthru
      _
    %p156 = scmp.le.s32.totalorder 1, %s9
    %p157 = scmp.lt.s32.totalorder %s9, 5
    %p158 = pnand %p156, %p157
    %p159 = pneg %p158
    // Predicated region
    $region29: #{model_forward.29} parent=5 // pred_check
      _
    $region30: #{model_forward.29} parent=5 // pred_check_branch
      %161 = sbr.rel (%p158) target = $region32
    $region31: #{model_forward.29} parent=5 // pred_region
      %s162 = ssub.s32 %s9, 1
      %p163 = scmp.lt.s32.totalorder %s14, 3
      %s164 = scalar_select %p163, %s14, 3
      %s165 = smul.addr %s164, 4
      %s166 = smul.addr %s165, 4
      %s167 = scalar_lea.vmem %s0, %s166
      %p168 = pneg %p35
      %p169 = pneg %p32
      %p170 = scmp.lt.s32.totalorder %s14, 3
      %s171 = scalar_select %p170, %s14, 3
      %s172 = smul.addr %s171, 4
      %s173 = smul.addr %s172, 4
      %s174 = scalar_lea.vmem %s1, %s173
      %p175 = pneg %p61
      %p176 = pneg %p58
      %p177 = scmp.lt.s32.totalorder %s14, 3
      %s178 = scalar_select %p177, %s14, 3
      %s179 = smul.addr %s178, 4
      %s180 = smul.addr %s179, 4
      %s181 = scalar_lea.vmem %s2, %s180
      %p182 = pneg %p87
      %p183 = pneg %p84
      %p184 = pneg %p113
      %p185 = pneg %p110
      %p186 = scmp.lt.s32.totalorder %s14, 3
      %s187 = scalar_select %p186, %s14, 3
      %s188 = smul.addr %s187, 4
      %s189 = smul.addr %s188, 4
      %s190 = scalar_lea.vmem %s3, %s189
      %p191 = scmp.lt.s32.totalorder %s14, 3
      %s192 = scalar_select %p191, %s14, 3
      %s193 = smul.addr %s192, 4
      %s194 = smul.addr %s193, 4
      %s195 = scalar_lea.vmem %s0, %s194
      %p196 = scmp.lt.s32.totalorder %s14, 3
      %s197 = scalar_select %p196, %s14, 3
      %s198 = smul.addr %s197, 4
      %s199 = smul.addr %s198, 4
      %s200 = scalar_lea.vmem %s1, %s199
      %p201 = scmp.lt.s32.totalorder %s14, 3
      %s202 = scalar_select %p201, %s14, 3
      %s203 = smul.addr %s202, 4
      %s204 = smul.addr %s203, 4
      %s205 = scalar_lea.vmem %s2, %s204
      %p206 = scmp.lt.s32.totalorder %s14, 3
      %s207 = scalar_select %p206, %s14, 3
      %s208 = smul.addr %s207, 4
      %s209 = smul.addr %s208, 4
      %s210 = scalar_lea.vmem %s3, %s209
      %v212 = vld [vmem:[%s195] sm:$0xf]
      %v213 = vld [vmem:[%s195 + $0x4] sm:$0xf]
      %v214 = vld [vmem:[%s195 + $0x8] sm:$0xf]
      %v215 = vld [vmem:[%s195 + $0xc] sm:$0xf]
      %v216 = vld [vmem:[%s200] sm:$0xf]
      %v217 = vld [vmem:[%s200 + $0x4] sm:$0xf]
      %v218 = vld [vmem:[%s200 + $0x8] sm:$0xf]
      %v219 = vld [vmem:[%s200 + $0xc] sm:$0xf]
      %v220 = vld [vmem:[%s205] sm:$0xf]
      %v221 = vld [vmem:[%s205 + $0x4] sm:$0xf]
      %v222 = vld [vmem:[%s205 + $0x8] sm:$0xf]
      %v223 = vld [vmem:[%s205 + $0xc] sm:$0xf]
      %v226 = vunpack.c.l.b16 %v212
      %v227 = vunpack.c.l.b16 %v213
      %v228 = vpack.c.b16 %v227, %v226
      %v231 = vunpack.c.l.b16 %v216
      %v232 = vunpack.c.l.b16 %v217
      %v233 = vpack.c.b16 %v232, %v231
      %vm234 = vcmask 130048
      %v236 = vsel %vm234, %v228, 0
      %v239 = vsel %vm234, %v233, 0
      %241 = vmatprep.subr.bf16.mxu0 0
      %242 = vmatpush1.bf16.xpose.msra.mxu0 %v239
      %243 = vmatprep.subr.bf16.mxu0 0
      %244 = vmatpush1.bf16.xpose.msra.mxu0 0
      %245 = vmatprep.subr.bf16.mxu0 0
      %246 = vmatpush1.bf16.xpose.msra.mxu0 0
      %247 = vmatprep.subr.bf16.mxu0 0
      %248 = vmatpush1.bf16.xpose.msra.mxu0 0
      %249 = vmatprep.subr.bf16.mxu0 0
      %250 = vmatpush1.bf16.xpose.msra.mxu0 0
      %251 = vmatprep.subr.bf16.mxu0 0
      %252 = vmatpush1.bf16.xpose.msra.mxu0 0
      %253 = vmatprep.subr.bf16.mxu0 0
      %254 = vmatpush1.bf16.xpose.msra.mxu0 0
      %255 = vmatprep.subr.bf16.mxu0 0
      %256 = vmatpush1.bf16.xpose.msra.mxu0 0
      %257 = vmatprep.subr.bf16.mxu0 0
      %258 = vmatpush1.bf16.xpose.msra.mxu0 0
      %259 = vmatprep.subr.bf16.mxu0 0
      %260 = vmatpush1.bf16.xpose.msra.mxu0 0
      %261 = vmatprep.subr.bf16.mxu0 0
      %262 = vmatpush1.bf16.xpose.msra.mxu0 0
      %263 = vmatprep.subr.bf16.mxu0 0
      %264 = vmatpush1.bf16.xpose.msra.mxu0 0
      %265 = vmatprep.subr.bf16.mxu0 0
      %266 = vmatpush1.bf16.xpose.msra.mxu0 0
      %267 = vmatprep.subr.bf16.mxu0 0
      %268 = vmatpush1.bf16.xpose.msra.mxu0 0
      %269 = vmatprep.subr.bf16.mxu0 0
      %270 = vmatpush1.bf16.xpose.msra.mxu0 0
      %271 = vmatprep.subr.bf16.mxu0 0
      %272 = vmatpush1.bf16.xpose.msra.mxu0 0
      %273 = vmatprep.mubr.bf16.mxu0 0
      %274 = vmatmul.mubr.bf16.gmra.mrb[0].mxu0 %v236
      %v275 = vpop.f32.mrb[0].mxu0
      %v276 = vadd.f32 0.0, %v275
      %v277 = vpop.f32.mrb[0].mxu0
      %v278 = vpop.f32.mrb[0].mxu0
      %v279 = vadd.f32 0.0, %v278
      %v280 = vpop.f32.mrb[0].mxu0
      %281 = vdwg.mxu0
      %v284 = vunpack.c.l.b16 %v214
      %v285 = vunpack.c.l.b16 %v215
      %v286 = vpack.c.b16 %v285, %v284
      %v289 = vunpack.c.l.b16 %v218
      %v290 = vunpack.c.l.b16 %v219
      %v291 = vpack.c.b16 %v290, %v289
      %v293 = vsel %vm234, %v286, 0
      %v296 = vsel %vm234, %v291, 0
      %298 = vmatprep.subr.bf16.mxu0 0
      %299 = vmatpush1.bf16.xpose.msra.mxu0 %v296
      %300 = vmatprep.subr.bf16.mxu0 0
      %301 = vmatpush1.bf16.xpose.msra.mxu0 0
      %302 = vmatprep.subr.bf16.mxu0 0
      %303 = vmatpush1.bf16.xpose.msra.mxu0 0
      %304 = vmatprep.subr.bf16.mxu0 0
      %305 = vmatpush1.bf16.xpose.msra.mxu0 0
      %306 = vmatprep.subr.bf16.mxu0 0
      %307 = vmatpush1.bf16.xpose.msra.mxu0 0
      %308 = vmatprep.subr.bf16.mxu0 0
      %309 = vmatpush1.bf16.xpose.msra.mxu0 0
      %310 = vmatprep.subr.bf16.mxu0 0
      %311 = vmatpush1.bf16.xpose.msra.mxu0 0
      %312 = vmatprep.subr.bf16.mxu0 0
      %313 = vmatpush1.bf16.xpose.msra.mxu0 0
      %314 = vmatprep.subr.bf16.mxu0 0
      %315 = vmatpush1.bf16.xpose.msra.mxu0 0
      %316 = vmatprep.subr.bf16.mxu0 0
      %317 = vmatpush1.bf16.xpose.msra.mxu0 0
      %318 = vmatprep.subr.bf16.mxu0 0
      %319 = vmatpush1.bf16.xpose.msra.mxu0 0
      %320 = vmatprep.subr.bf16.mxu0 0
      %321 = vmatpush1.bf16.xpose.msra.mxu0 0
      %322 = vmatprep.subr.bf16.mxu0 0
      %323 = vmatpush1.bf16.xpose.msra.mxu0 0
      %324 = vmatprep.subr.bf16.mxu0 0
      %325 = vmatpush1.bf16.xpose.msra.mxu0 0
      %326 = vmatprep.subr.bf16.mxu0 0
      %327 = vmatpush1.bf16.xpose.msra.mxu0 0
      %328 = vmatprep.subr.bf16.mxu0 0
      %329 = vmatpush1.bf16.xpose.msra.mxu0 0
      %330 = vmatprep.mubr.bf16.mxu0 0
      %331 = vmatmul.mubr.bf16.gmra.mrb[0].mxu0 %v293
      %v332 = vpop.f32.mrb[0].mxu0
      %v333 = vadd.f32 0.0, %v332
      %v334 = vpop.f32.mrb[0].mxu0
      %v335 = vpop.f32.mrb[0].mxu0
      %v336 = vadd.f32 0.0, %v335
      %v337 = vpop.f32.mrb[0].mxu0
      %338 = vdwg.mxu0
      %v339 = vmul.f32 %v276, 0.25
      %v340 = vmul.f32 %v279, 0.25
      %v341 = vmul.f32 %v333, 0.25
      %v342 = vmul.f32 %v336, 0.25
      %v343 = vlaneseq
      %v344 = vshrl.u32 %v343, 7
      %v345 = vadd.s32 %v344, 8
      %v346 = vlaneseq
      %v347 = vand.u32 %v346, 127
      %vm348 = vcmp.le.s32.totalorder %v347, %v344
      %vm349 = vcmp.le.s32.totalorder %v347, %v345
      %v350 = vsel %vm348, 1, 0
      %v351 = vsel %vm349, 1, 0
      %vm352 = vcmp.eq.s32.totalorder %v350, 1
      %vm353 = vcmp.eq.s32.totalorder %v351, 1
      %v354 = vsel %vm352, %v339, -1e+30
      %v355 = vsel %vm353, %v340, -1e+30
      %v356 = vsel %vm352, %v341, -1e+30
      %v357 = vsel %vm353, %v342, -1e+30
      %v358 = vsel %vm234, %v354, -inf
      %359 = vmax.xlane.f32.xlu0 %v358
      %v360 = vpop.xlane.xlu0 %359
      %v361 = vsel %vm234, %v355, -inf
      %362 = vmax.xlane.f32.xlu0 %v361
      %v363 = vpop.xlane.xlu0 %362
      %v364 = vsel %vm234, %v356, -inf
      %365 = vmax.xlane.f32.xlu0 %v364
      %v366 = vpop.xlane.xlu0 %365
      %v367 = vsel %vm234, %v357, -inf
      %368 = vmax.xlane.f32.xlu0 %v367
      %v369 = vpop.xlane.xlu0 %368
      %v370 = vsub.f32 %v354, %v360
      %v371 = vsub.f32 %v355, %v363
      %v372 = vsub.f32 %v356, %v366
      %v373 = vsub.f32 %v357, %v369
      %v374 = vmul.f32 %v370, 1.442695
      %v375 = vpow.pop %v374
      %v376 = vmul.f32 %v371, 1.442695
      %v377 = vpow.pop %v376
      %v378 = vmul.f32 %v372, 1.442695
      %v379 = vpow.pop %v378
      %v380 = vmul.f32 %v373, 1.442695
      %v381 = vpow.pop %v380
      %v382 = vsel %vm234, %v375, 0.0
      %383 = vadd.xlane.f32.xlu0 %v382
      %v384 = vpop.xlane.xlu0 %383
      %v385 = vsel %vm234, %v377, 0.0
      %386 = vadd.xlane.f32.xlu0 %v385
      %v387 = vpop.xlane.xlu0 %386
      %v388 = vsel %vm234, %v379, 0.0
      %389 = vadd.xlane.f32.xlu0 %v388
      %v390 = vpop.xlane.xlu0 %389
      %v391 = vsel %vm234, %v381, 0.0
      %392 = vadd.xlane.f32.xlu0 %v391
      %v393 = vpop.xlane.xlu0 %392
      %v394 = vrcp.pop %v384
      %v395 = vrcp.pop %v387
      %v396 = vrcp.pop %v390
      %v397 = vrcp.pop %v393
      %v398 = vmul.f32 %v375, %v394
      %v399 = vmul.f32 %v377, %v395
      %v400 = vmul.f32 %v379, %v396
      %v401 = vmul.f32 %v381, %v397
      %v402 = vpack.c.bf16 %v399, %v398
      %v403 = vpack.c.bf16 %v401, %v400
      %v406 = vunpack.c.l.b16 %v220
      %v407 = vunpack.c.l.b16 %v221
      %v408 = vpack.c.b16 %v407, %v406
      %v411 = vsel %vm234, %v402, 0
      %413 = vmatprep.subr.bf16.mxu0 0
      %414 = vmatpush1.bf16.msra.mxu0 %v408
      %415 = vmatprep.subr.bf16.mxu0 0
      %416 = vmatpush1.bf16.msra.mxu0 0
      %417 = vmatprep.subr.bf16.mxu0 0
      %418 = vmatpush1.bf16.msra.mxu0 0
      %419 = vmatprep.subr.bf16.mxu0 0
      %420 = vmatpush1.bf16.msra.mxu0 0
      %421 = vmatprep.subr.bf16.mxu0 0
      %422 = vmatpush1.bf16.msra.mxu0 0
      %423 = vmatprep.subr.bf16.mxu0 0
      %424 = vmatpush1.bf16.msra.mxu0 0
      %425 = vmatprep.subr.bf16.mxu0 0
      %426 = vmatpush1.bf16.msra.mxu0 0
      %427 = vmatprep.subr.bf16.mxu0 0
      %428 = vmatpush1.bf16.msra.mxu0 0
      %429 = vmatprep.subr.bf16.mxu0 0
      %430 = vmatpush1.bf16.msra.mxu0 0
      %431 = vmatprep.subr.bf16.mxu0 0
      %432 = vmatpush1.bf16.msra.mxu0 0
      %433 = vmatprep.subr.bf16.mxu0 0
      %434 = vmatpush1.bf16.msra.mxu0 0
      %435 = vmatprep.subr.bf16.mxu0 0
      %436 = vmatpush1.bf16.msra.mxu0 0
      %437 = vmatprep.subr.bf16.mxu0 0
      %438 = vmatpush1.bf16.msra.mxu0 0
      %439 = vmatprep.subr.bf16.mxu0 0
      %440 = vmatpush1.bf16.msra.mxu0 0
      %441 = vmatprep.subr.bf16.mxu0 0
      %442 = vmatpush1.bf16.msra.mxu0 0
      %443 = vmatprep.subr.bf16.mxu0 0
      %444 = vmatpush1.bf16.msra.mxu0 0
      %445 = vmatprep.mubr.bf16.mxu0 0
      %446 = vmatmul.mubr.bf16.gmra.mrb[0].mxu0 %v411
      %v447 = vpop.f32.mrb[0].mxu0
      %v448 = vadd.f32 0.0, %v447
      %v449 = vpop.f32.mrb[0].mxu0
      %v450 = vpop.f32.mrb[0].mxu0
      %v451 = vadd.f32 0.0, %v450
      %v452 = vpop.f32.mrb[0].mxu0
      %453 = vdwg.mxu0
      %v456 = vunpack.c.l.b16 %v222
      %v457 = vunpack.c.l.b16 %v223
      %v458 = vpack.c.b16 %v457, %v456
      %v461 = vsel %vm234, %v403, 0
      %463 = vmatprep.subr.bf16.mxu0 0
      %464 = vmatpush1.bf16.msra.mxu0 %v458
      %465 = vmatprep.subr.bf16.mxu0 0
      %466 = vmatpush1.bf16.msra.mxu0 0
      %467 = vmatprep.subr.bf16.mxu0 0
      %468 = vmatpush1.bf16.msra.mxu0 0
      %469 = vmatprep.subr.bf16.mxu0 0
      %470 = vmatpush1.bf16.msra.mxu0 0
      %471 = vmatprep.subr.bf16.mxu0 0
      %472 = vmatpush1.bf16.msra.mxu0 0
      %473 = vmatprep.subr.bf16.mxu0 0
      %474 = vmatpush1.bf16.msra.mxu0 0
      %475 = vmatprep.subr.bf16.mxu0 0
      %476 = vmatpush1.bf16.msra.mxu0 0
      %477 = vmatprep.subr.bf16.mxu0 0
      %478 = vmatpush1.bf16.msra.mxu0 0
      %479 = vmatprep.subr.bf16.mxu0 0
      %480 = vmatpush1.bf16.msra.mxu0 0
      %481 = vmatprep.subr.bf16.mxu0 0
      %482 = vmatpush1.bf16.msra.mxu0 0
      %483 = vmatprep.subr.bf16.mxu0 0
      %484 = vmatpush1.bf16.msra.mxu0 0
      %485 = vmatprep.subr.bf16.mxu0 0
      %486 = vmatpush1.bf16.msra.mxu0 0
      %487 = vmatprep.subr.bf16.mxu0 0
      %488 = vmatpush1.bf16.msra.mxu0 0
      %489 = vmatprep.subr.bf16.mxu0 0
      %490 = vmatpush1.bf16.msra.mxu0 0
      %491 = vmatprep.subr.bf16.mxu0 0
      %492 = vmatpush1.bf16.msra.mxu0 0
      %493 = vmatprep.subr.bf16.mxu0 0
      %494 = vmatpush1.bf16.msra.mxu0 0
      %495 = vmatprep.mubr.bf16.mxu0 0
      %496 = vmatmul.mubr.bf16.gmra.mrb[0].mxu0 %v461
      %v497 = vpop.f32.mrb[0].mxu0
      %v498 = vadd.f32 0.0, %v497
      %v499 = vpop.f32.mrb[0].mxu0
      %v500 = vpop.f32.mrb[0].mxu0
      %v501 = vadd.f32 0.0, %v500
      %v502 = vpop.f32.mrb[0].mxu0
      %503 = vdwg.mxu0
      %v504 = vpack.c.bf16 %v451, %v448
      %v505 = vpack.c.bf16 %v501, %v498
      %v508 = vunpack.c.l.b16 %v504
      %v509 = vunpack.c.h.b16 %v504
      %v510 = vunpack.c.l.b16 %v505
      %v511 = vunpack.c.h.b16 %v505
      %v512 = vpack.c.b16 %v508, %v508
      %v513 = vpack.c.b16 %v509, %v509
      %v514 = vpack.c.b16 %v510, %v510
      %v515 = vpack.c.b16 %v511, %v511
      %vm520 = vcmask 125952
      %521 = vst.msk [vmem:[%s210] sm:$0xf] %vm520, %v512
      %522 = vst.msk [vmem:[%s210 + $0x4] sm:$0xf] %vm520, %v513
      %523 = vst.msk [vmem:[%s210 + $0x8] sm:$0xf] %vm520, %v514
      %524 = vst.msk [vmem:[%s210 + $0xc] sm:$0xf] %vm520, %v515
      %p525 = scmp.lt.s32.totalorder %s14, 3
      %s526 = scalar_select %p525, %s14, 3
      %s527 = smul.addr %s526, 4
      %s528 = smul.addr %s527, 4
      %s529 = scalar_lea.vmem %s3, %s528
      // Predicated region
      $region33: #{model_forward.29} parent=31 // pred_check
        %p530 = pneg %p110
      $region34: #{model_forward.29} parent=31 // pred_check_branch
        %532 = sbr.rel (%p530) target = $region36
      $region35: #{model_forward.29} parent=31 // pred_region
        _
      $region36: #{model_forward.29} parent=31 // pred_fallthru
        _
    $region32: #{model_forward.29} parent=5 // pred_fallthru
      _
    %p533 = scmp.le.s32.totalorder 2, %s9
    // Predicated region
    $region37: #{model_forward.29} parent=5 // pred_check
      %p534 = pneg %p533
    $region38: #{model_forward.29} parent=5 // pred_check_branch
      %536 = sbr.rel (%p534) target = $region40
    $region39: #{model_forward.29} parent=5 // pred_region
      %s537 = ssub.s32 %s9, 2
      // Predicated region
      $region41: #{model_forward.29} parent=39 // pred_check
        %p538 = pneg %p116
      $region42: #{model_forward.29} parent=39 // pred_check_branch
        %540 = sbr.rel (%p538) target = $region44
      $region43: #{model_forward.29} parent=39 // pred_region
        %p541 = scmp.lt.s32.totalorder %s15, 3
        %s542 = scalar_select %p541, %s15, 3
        %s543 = smul.addr %s542, 4
        %s544 = smul.addr %s543, 4
        %s545 = scalar_lea.vmem %s3, %s544
      $region44: #{model_forward.29} parent=39 // pred_fallthru
        _
    $region40: #{model_forward.29} parent=5 // pred_fallthru
      _
  $region6: #{model_forward.29} parent=0 // loop_footer
    %s13 = sadd.s32 1, %s9
  $region7: #{model_forward.29} parent=0 // loop_footer_branch
    %8 = sbr.rel target = $region3
  $region8: #{model_forward.29} parent=0 // loop_exit
    _

// kernel: model_forward.30
$region0: #{model_forward.30}
  #allocation0 [shape = 'u32[]', space=smem, size = 0x4, offset = 0x4, fixed_abs, tag = 'smem constant byte address 0x4 - core index']
  #allocation1 [shape = 'u32[144,128]{1,0:T(1,128)}', space=vmem, size = 0x12000, scoped, tag = 'internal scratch']
  #allocation2 [shape = 'f32[64,32]{1,0:T(8,128)}', space=vmem, size = 0x8000, scoped, tag = 'scratch operand']
  %s0 = inlined_call_operand.vmem [shape: bf16[64,32], index: 0, kind: input, shape index: {}]
  %s1 = inlined_call_operand.vmem [shape: bf16[32,32], index: 1, kind: input, shape index: {}]
  %s2 = inlined_call_operand.vmem [shape: f32[1,32], index: 2, kind: input, shape index: {}]
  %s3 = inlined_call_operand.vmem [shape: f32[64,32], index: 3, kind: input, shape index: {}]
  %s4 = inlined_call_operand.vmem [shape: f32[64,32], index: 4, kind: output, shape index: {}]
  %s5 = sld [smem:[#allocation0]]
  $region34: #{model_forward.30} parent=0
    _
  %s7 = ssub.s32 1, %s5
  %s8 = scalar_select 0, %s7, %s5
  // Predicated region
  $region2: #{model_forward.30} parent=0 // pred_check
    _
  $region3: #{model_forward.30} parent=0 // pred_check_branch
    %10 = sbr.rel (0) target = $region5
  $region4: #{model_forward.30} parent=0 // pred_region
    _
  $region5: #{model_forward.30} parent=0 // pred_fallthru
    _
  // Predicated region
  $region6: #{model_forward.30} parent=0 // pred_check
    _
  $region7: #{model_forward.30} parent=0 // pred_check_branch
    %12 = sbr.rel (0) target = $region9
  $region8: #{model_forward.30} parent=0 // pred_region
    _
  $region9: #{model_forward.30} parent=0 // pred_fallthru
    _
  // Predicated region
  $region10: #{model_forward.30} parent=0 // pred_check
    _
  $region11: #{model_forward.30} parent=0 // pred_check_branch
    %14 = sbr.rel (0) target = $region13
  $region12: #{model_forward.30} parent=0 // pred_region
    _
  $region13: #{model_forward.30} parent=0 // pred_fallthru
    _
  // Predicated region
  $region14: #{model_forward.30} parent=0 // pred_check
    _
  $region15: #{model_forward.30} parent=0 // pred_check_branch
    %16 = sbr.rel (0) target = $region17
  $region16: #{model_forward.30} parent=0 // pred_region
    _
  $region17: #{model_forward.30} parent=0 // pred_fallthru
    _
  %p18 = scmp.eq.s32.totalorder 0, 0
  // Predicated region
  $region18: #{model_forward.30} parent=0 // pred_check
    %p19 = pneg %p18
  $region19: #{model_forward.30} parent=0 // pred_check_branch
    %21 = sbr.rel (%p19) target = $region21
  $region20: #{model_forward.30} parent=0 // pred_region
    %vm22 = vcmask 261120
    %23 = vst.msk [vmem:[#allocation2] sm:$0xff] %vm22, 0.0
    %24 = vst.msk [vmem:[#allocation2 + $0x8] sm:$0xff] %vm22, 0.0
    %25 = vst.msk [vmem:[#allocation2 + $0x10] sm:$0xff] %vm22, 0.0
    %26 = vst.msk [vmem:[#allocation2 + $0x18] sm:$0xff] %vm22, 0.0
    %27 = vst.msk [vmem:[#allocation2 + $0x20] sm:$0xff] %vm22, 0.0
    %28 = vst.msk [vmem:[#allocation2 + $0x28] sm:$0xff] %vm22, 0.0
    %29 = vst.msk [vmem:[#allocation2 + $0x30] sm:$0xff] %vm22, 0.0
    %30 = vst.msk [vmem:[#allocation2 + $0x38] sm:$0xff] %vm22, 0.0
  $region21: #{model_forward.30} parent=0 // pred_fallthru
    _
  %v31 = vld [vmem:[#allocation2] sm:$0xff]
  %v32 = vld [vmem:[#allocation2 + $0x8] sm:$0xff]
  %v33 = vld [vmem:[#allocation2 + $0x10] sm:$0xff]
  %v34 = vld [vmem:[#allocation2 + $0x18] sm:$0xff]
  %v35 = vld [vmem:[#allocation2 + $0x20] sm:$0xff]
  %v36 = vld [vmem:[#allocation2 + $0x28] sm:$0xff]
  %v37 = vld [vmem:[#allocation2 + $0x30] sm:$0xff]
  %v38 = vld [vmem:[#allocation2 + $0x38] sm:$0xff]
  %v39 = vld [vmem:[%s0] sm:$0xf]
  %v40 = vld [vmem:[%s0 + $0x4] sm:$0xf]
  %v41 = vld [vmem:[%s0 + $0x8] sm:$0xf]
  %v42 = vld [vmem:[%s0 + $0xc] sm:$0xf]
  %v43 = vld [vmem:[%s0 + $0x10] sm:$0xf]
  %v44 = vld [vmem:[%s0 + $0x14] sm:$0xf]
  %v45 = vld [vmem:[%s0 + $0x18] sm:$0xf]
  %v46 = vld [vmem:[%s0 + $0x1c] sm:$0xf]
  %v47 = vld [vmem:[%s1] sm:$0xf]
  %v48 = vld [vmem:[%s1 + $0x4] sm:$0xf]
  %v49 = vld [vmem:[%s1 + $0x8] sm:$0xf]
  %v50 = vld [vmem:[%s1 + $0xc] sm:$0xf]
  %v59 = vunpack.c.l.b16 %v39
  %v60 = vunpack.c.l.b16 %v40
  %v61 = vunpack.c.l.b16 %v41
  %v62 = vunpack.c.l.b16 %v42
  %v63 = vunpack.c.l.b16 %v43
  %v64 = vunpack.c.l.b16 %v44
  %v65 = vunpack.c.l.b16 %v45
  %v66 = vunpack.c.l.b16 %v46
  %v67 = vpack.c.b16 %v60, %v59
  %v68 = vpack.c.b16 %v62, %v61
  %v69 = vpack.c.b16 %v64, %v63
  %v70 = vpack.c.b16 %v66, %v65
  %v75 = vunpack.c.l.b16 %v47
  %v76 = vunpack.c.l.b16 %v48
  %v77 = vunpack.c.l.b16 %v49
  %v78 = vunpack.c.l.b16 %v50
  %v79 = vpack.c.b16 %v76, %v75
  %v80 = vpack.c.b16 %v78, %v77
  %vm83 = vcmask 261120
  %v85 = vsel %vm83, %v67, 0
  %v88 = vsel %vm83, %v68, 0
  %v91 = vsel %vm83, %v69, 0
  %v94 = vsel %vm83, %v70, 0
  %96 = vmatprep.subr.bf16.mxu0 0
  %97 = vmatpush1.bf16.msra.mxu0 %v79
  %98 = vmatprep.subr.bf16.mxu0 0
  %99 = vmatpush1.bf16.msra.mxu0 %v80
  %100 = vmatprep.subr.bf16.mxu0 0
  %101 = vmatpush1.bf16.msra.mxu0 0
  %102 = vmatprep.subr.bf16.mxu0 0
  %103 = vmatpush1.bf16.msra.mxu0 0
  %104 = vmatprep.subr.bf16.mxu0 0
  %105 = vmatpush1.bf16.msra.mxu0 0
  %106 = vmatprep.subr.bf16.mxu0 0
  %107 = vmatpush1.bf16.msra.mxu0 0
  %108 = vmatprep.subr.bf16.mxu0 0
  %109 = vmatpush1.bf16.msra.mxu0 0
  %110 = vmatprep.subr.bf16.mxu0 0
  %111 = vmatpush1.bf16.msra.mxu0 0
  %112 = vmatprep.subr.bf16.mxu0 0
  %113 = vmatpush1.bf16.msra.mxu0 0
  %114 = vmatprep.subr.bf16.mxu0 0
  %115 = vmatpush1.bf16.msra.mxu0 0
  %116 = vmatprep.subr.bf16.mxu0 0
  %117 = vmatpush1.bf16.msra.mxu0 0
  %118 = vmatprep.subr.bf16.mxu0 0
  %119 = vmatpush1.bf16.msra.mxu0 0
  %120 = vmatprep.subr.bf16.mxu0 0
  %121 = vmatpush1.bf16.msra.mxu0 0
  %122 = vmatprep.subr.bf16.mxu0 0
  %123 = vmatpush1.bf16.msra.mxu0 0
  %124 = vmatprep.subr.bf16.mxu0 0
  %125 = vmatpush1.bf16.msra.mxu0 0
  %126 = vmatprep.subr.bf16.mxu0 0
  %127 = vmatpush1.bf16.msra.mxu0 0
  %128 = vmatprep.mubr.bf16.mxu0 0
  %129 = vmatmul.mubr.bf16.gmra.mrb[0].mxu0 %v85
  %v130 = vpop.f32.mrb[0].mxu0
  %v131 = vadd.f32 0.0, %v130
  %v132 = vpop.f32.mrb[0].mxu0
  %v133 = vpop.f32.mrb[0].mxu0
  %v134 = vadd.f32 0.0, %v133
  %v135 = vpop.f32.mrb[0].mxu0
  %136 = vmatprep.mubr.bf16.mxu0 0
  %137 = vmatmul.mubr.bf16.gmra.mrb[0].mxu0 %v88
  %v138 = vpop.f32.mrb[0].mxu0
  %v139 = vadd.f32 0.0, %v138
  %v140 = vpop.f32.mrb[0].mxu0
  %v141 = vpop.f32.mrb[0].mxu0
  %v142 = vadd.f32 0.0, %v141
  %v143 = vpop.f32.mrb[0].mxu0
  %144 = vmatprep.mubr.bf16.mxu0 0
  %145 = vmatmul.mubr.bf16.gmra.mrb[0].mxu0 %v91
  %v146 = vpop.f32.mrb[0].mxu0
  %v147 = vadd.f32 0.0, %v146
  %v148 = vpop.f32.mrb[0].mxu0
  %v149 = vpop.f32.mrb[0].mxu0
  %v150 = vadd.f32 0.0, %v149
  %v151 = vpop.f32.mrb[0].mxu0
  %152 = vmatprep.mubr.bf16.mxu0 0
  %153 = vmatmul.mubr.bf16.gmra.mrb[0].mxu0 %v94
  %v154 = vpop.f32.mrb[0].mxu0
  %v155 = vadd.f32 0.0, %v154
  %v156 = vpop.f32.mrb[0].mxu0
  %v157 = vpop.f32.mrb[0].mxu0
  %v158 = vadd.f32 0.0, %v157
  %v159 = vpop.f32.mrb[0].mxu0
  %160 = vdwg.mxu0
  %v161 = vadd.f32 %v31, %v131
  %v162 = vadd.f32 %v32, %v134
  %v163 = vadd.f32 %v33, %v139
  %v164 = vadd.f32 %v34, %v142
  %v165 = vadd.f32 %v35, %v147
  %v166 = vadd.f32 %v36, %v150
  %v167 = vadd.f32 %v37, %v155
  %v168 = vadd.f32 %v38, %v158
  %169 = vst.msk [vmem:[#allocation2] sm:$0xff] %vm83, %v161
  %170 = vst.msk [vmem:[#allocation2 + $0x8] sm:$0xff] %vm83, %v162
  %171 = vst.msk [vmem:[#allocation2 + $0x10] sm:$0xff] %vm83, %v163
  %172 = vst.msk [vmem:[#allocation2 + $0x18] sm:$0xff] %vm83, %v164
  %173 = vst.msk [vmem:[#allocation2 + $0x20] sm:$0xff] %vm83, %v165
  %174 = vst.msk [vmem:[#allocation2 + $0x28] sm:$0xff] %vm83, %v166
  %175 = vst.msk [vmem:[#allocation2 + $0x30] sm:$0xff] %vm83, %v167
  %176 = vst.msk [vmem:[#allocation2 + $0x38] sm:$0xff] %vm83, %v168
  // Predicated region
  $region22: #{model_forward.30} parent=0 // pred_check
    %p177 = pneg %p18
  $region23: #{model_forward.30} parent=0 // pred_check_branch
    %179 = sbr.rel (%p177) target = $region25
  $region24: #{model_forward.30} parent=0 // pred_region
    %v180 = vld [vmem:[#allocation2] sm:$0xff]
    %v181 = vld [vmem:[#allocation2 + $0x8] sm:$0xff]
    %v182 = vld [vmem:[#allocation2 + $0x10] sm:$0xff]
    %v183 = vld [vmem:[#allocation2 + $0x18] sm:$0xff]
    %v184 = vld [vmem:[#allocation2 + $0x20] sm:$0xff]
    %v185 = vld [vmem:[#allocation2 + $0x28] sm:$0xff]
    %v186 = vld [vmem:[#allocation2 + $0x30] sm:$0xff]
    %v187 = vld [vmem:[#allocation2 + $0x38] sm:$0xff]
    %v188 = vld [vmem:[%s2] sm:$0x1]
    %v190 = vlaneseq
    %v191 = vshrl.u32 %v190, 7
    %v192 = vsub.s32 0, %v191
    %v193 = vrot.slane %v188, %v192
    %v195 = vadd.f32 %v180, %v193
    %v196 = vadd.f32 %v181, %v193
    %v197 = vadd.f32 %v182, %v193
    %v198 = vadd.f32 %v183, %v193
    %v199 = vadd.f32 %v184, %v193
    %v200 = vadd.f32 %v185, %v193
    %v201 = vadd.f32 %v186, %v193
    %v202 = vadd.f32 %v187, %v193
    %v203 = vld [vmem:[%s3] sm:$0xff]
    %v204 = vld [vmem:[%s3 + $0x8] sm:$0xff]
    %v205 = vld [vmem:[%s3 + $0x10] sm:$0xff]
    %v206 = vld [vmem:[%s3 + $0x18] sm:$0xff]
    %v207 = vld [vmem:[%s3 + $0x20] sm:$0xff]
    %v208 = vld [vmem:[%s3 + $0x28] sm:$0xff]
    %v209 = vld [vmem:[%s3 + $0x30] sm:$0xff]
    %v210 = vld [vmem:[%s3 + $0x38] sm:$0xff]
    %v211 = vadd.f32 %v195, %v203
    %v212 = vadd.f32 %v196, %v204
    %v213 = vadd.f32 %v197, %v205
    %v214 = vadd.f32 %v198, %v206
    %v215 = vadd.f32 %v199, %v207
    %v216 = vadd.f32 %v200, %v208
    %v217 = vadd.f32 %v201, %v209
    %v218 = vadd.f32 %v202, %v210
    %219 = vst.msk [vmem:[%s4] sm:$0xff] %vm83, %v211
    %220 = vst.msk [vmem:[%s4 + $0x8] sm:$0xff] %vm83, %v212
    %221 = vst.msk [vmem:[%s4 + $0x10] sm:$0xff] %vm83, %v213
    %222 = vst.msk [vmem:[%s4 + $0x18] sm:$0xff] %vm83, %v214
    %223 = vst.msk [vmem:[%s4 + $0x20] sm:$0xff] %vm83, %v215
    %224 = vst.msk [vmem:[%s4 + $0x28] sm:$0xff] %vm83, %v216
    %225 = vst.msk [vmem:[%s4 + $0x30] sm:$0xff] %vm83, %v217
    %226 = vst.msk [vmem:[%s4 + $0x38] sm:$0xff] %vm83, %v218
  $region25: #{model_forward.30} parent=0 // pred_fallthru
    _
  // Predicated region
  $region26: #{model_forward.30} parent=0 // pred_check
    _
  $region27: #{model_forward.30} parent=0 // pred_check_branch
    %228 = sbr.rel (0) target = $region29
  $region28: #{model_forward.30} parent=0 // pred_region
    _
  $region29: #{model_forward.30} parent=0 // pred_fallthru
    _
  // Predicated region
  $region30: #{model_forward.30} parent=0 // pred_check
    _
  $region31: #{model_forward.30} parent=0 // pred_check_branch
    %230 = sbr.rel (0) target = $region33
  $region32: #{model_forward.30} parent=0 // pred_region
    _
  $region33: #{model_forward.30} parent=0 // pred_fallthru
    _

// kernel: model_forward.31
$region0: #{model_forward.31}
  #allocation0 [shape = 'u32[]', space=smem, size = 0x4, offset = 0x4, fixed_abs, tag = 'smem constant byte address 0x4 - core index']
  #allocation1 [shape = 'u32[144,128]{1,0:T(1,128)}', space=vmem, size = 0x12000, scoped, tag = 'internal scratch']
  %s0 = inlined_call_operand.vmem [shape: f32[64,32], index: 0, kind: input, shape index: {}]
  %s1 = inlined_call_operand.vmem [shape: f32[1,32], index: 1, kind: input, shape index: {}]
  %s2 = inlined_call_operand.vmem [shape: f32[1,32], index: 2, kind: input, shape index: {}]
  %s3 = inlined_call_operand.vmem [shape: bf16[32,128], index: 3, kind: input, shape index: {}]
  %s4 = inlined_call_operand.vmem [shape: f32[1,128], index: 4, kind: input, shape index: {}]
  %s5 = inlined_call_operand.vmem [shape: bf16[64,128], index: 5, kind: output, shape index: {}]
  %s6 = sld [smem:[#allocation0]]
  $region30: #{model_forward.31} parent=0
    _
  %s8 = ssub.s32 1, %s6
  %s9 = scalar_select 0, %s8, %s6
  // Predicated region
  $region2: #{model_forward.31} parent=0 // pred_check
    _
  $region3: #{model_forward.31} parent=0 // pred_check_branch
    %11 = sbr.rel (0) target = $region5
  $region4: #{model_forward.31} parent=0 // pred_region
    _
  $region5: #{model_forward.31} parent=0 // pred_fallthru
    _
  // Predicated region
  $region6: #{model_forward.31} parent=0 // pred_check
    _
  $region7: #{model_forward.31} parent=0 // pred_check_branch
    %13 = sbr.rel (0) target = $region9
  $region8: #{model_forward.31} parent=0 // pred_region
    _
  $region9: #{model_forward.31} parent=0 // pred_fallthru
    _
  // Predicated region
  $region10: #{model_forward.31} parent=0 // pred_check
    _
  $region11: #{model_forward.31} parent=0 // pred_check_branch
    %15 = sbr.rel (0) target = $region13
  $region12: #{model_forward.31} parent=0 // pred_region
    _
  $region13: #{model_forward.31} parent=0 // pred_fallthru
    _
  // Predicated region
  $region14: #{model_forward.31} parent=0 // pred_check
    _
  $region15: #{model_forward.31} parent=0 // pred_check_branch
    %17 = sbr.rel (0) target = $region17
  $region16: #{model_forward.31} parent=0 // pred_region
    _
  $region17: #{model_forward.31} parent=0 // pred_fallthru
    _
  // Predicated region
  $region18: #{model_forward.31} parent=0 // pred_check
    _
  $region19: #{model_forward.31} parent=0 // pred_check_branch
    %19 = sbr.rel (0) target = $region21
  $region20: #{model_forward.31} parent=0 // pred_region
    _
  $region21: #{model_forward.31} parent=0 // pred_fallthru
    _
  %v21 = vld [vmem:[%s0] sm:$0xff]
  %v22 = vld [vmem:[%s0 + $0x8] sm:$0xff]
  %v23 = vld [vmem:[%s0 + $0x10] sm:$0xff]
  %v24 = vld [vmem:[%s0 + $0x18] sm:$0xff]
  %v25 = vld [vmem:[%s0 + $0x20] sm:$0xff]
  %v26 = vld [vmem:[%s0 + $0x28] sm:$0xff]
  %v27 = vld [vmem:[%s0 + $0x30] sm:$0xff]
  %v28 = vld [vmem:[%s0 + $0x38] sm:$0xff]
  %vm29 = vcmask 261120
  %v30 = vsel %vm29, %v21, 0.0
  %31 = vadd.xlane.f32.xlu0 %v30
  %v32 = vpop.xlane.xlu0 %31
  %v33 = vsel %vm29, %v22, 0.0
  %34 = vadd.xlane.f32.xlu0 %v33
  %v35 = vpop.xlane.xlu0 %34
  %v36 = vsel %vm29, %v23, 0.0
  %37 = vadd.xlane.f32.xlu0 %v36
  %v38 = vpop.xlane.xlu0 %37
  %v39 = vsel %vm29, %v24, 0.0
  %40 = vadd.xlane.f32.xlu0 %v39
  %v41 = vpop.xlane.xlu0 %40
  %v42 = vsel %vm29, %v25, 0.0
  %43 = vadd.xlane.f32.xlu0 %v42
  %v44 = vpop.xlane.xlu0 %43
  %v45 = vsel %vm29, %v26, 0.0
  %46 = vadd.xlane.f32.xlu0 %v45
  %v47 = vpop.xlane.xlu0 %46
  %v48 = vsel %vm29, %v27, 0.0
  %49 = vadd.xlane.f32.xlu0 %v48
  %v50 = vpop.xlane.xlu0 %49
  %v51 = vsel %vm29, %v28, 0.0
  %52 = vadd.xlane.f32.xlu0 %v51
  %v53 = vpop.xlane.xlu0 %52
  %v54 = vrcp.pop 32.0
  %v55 = vmul.f32 %v32, %v54
  %v56 = vmul.f32 %v35, %v54
  %v57 = vmul.f32 %v38, %v54
  %v58 = vmul.f32 %v41, %v54
  %v59 = vmul.f32 %v44, %v54
  %v60 = vmul.f32 %v47, %v54
  %v61 = vmul.f32 %v50, %v54
  %v62 = vmul.f32 %v53, %v54
  %v63 = vsub.f32 %v21, %v55
  %v64 = vsub.f32 %v22, %v56
  %v65 = vsub.f32 %v23, %v57
  %v66 = vsub.f32 %v24, %v58
  %v67 = vsub.f32 %v25, %v59
  %v68 = vsub.f32 %v26, %v60
  %v69 = vsub.f32 %v27, %v61
  %v70 = vsub.f32 %v28, %v62
  %v71 = vmul.f32 %v63, %v63
  %v72 = vmul.f32 %v64, %v64
  %v73 = vmul.f32 %v65, %v65
  %v74 = vmul.f32 %v66, %v66
  %v75 = vmul.f32 %v67, %v67
  %v76 = vmul.f32 %v68, %v68
  %v77 = vmul.f32 %v69, %v69
  %v78 = vmul.f32 %v70, %v70
  %v79 = vsel %vm29, %v71, 0.0
  %80 = vadd.xlane.f32.xlu0 %v79
  %v81 = vpop.xlane.xlu0 %80
  %v82 = vsel %vm29, %v72, 0.0
  %83 = vadd.xlane.f32.xlu0 %v82
  %v84 = vpop.xlane.xlu0 %83
  %v85 = vsel %vm29, %v73, 0.0
  %86 = vadd.xlane.f32.xlu0 %v85
  %v87 = vpop.xlane.xlu0 %86
  %v88 = vsel %vm29, %v74, 0.0
  %89 = vadd.xlane.f32.xlu0 %v88
  %v90 = vpop.xlane.xlu0 %89
  %v91 = vsel %vm29, %v75, 0.0
  %92 = vadd.xlane.f32.xlu0 %v91
  %v93 = vpop.xlane.xlu0 %92
  %v94 = vsel %vm29, %v76, 0.0
  %95 = vadd.xlane.f32.xlu0 %v94
  %v96 = vpop.xlane.xlu0 %95
  %v97 = vsel %vm29, %v77, 0.0
  %98 = vadd.xlane.f32.xlu0 %v97
  %v99 = vpop.xlane.xlu0 %98
  %v100 = vsel %vm29, %v78, 0.0
  %101 = vadd.xlane.f32.xlu0 %v100
  %v102 = vpop.xlane.xlu0 %101
  %v103 = vmul.f32 %v81, %v54
  %v104 = vmul.f32 %v84, %v54
  %v105 = vmul.f32 %v87, %v54
  %v106 = vmul.f32 %v90, %v54
  %v107 = vmul.f32 %v93, %v54
  %v108 = vmul.f32 %v96, %v54
  %v109 = vmul.f32 %v99, %v54
  %v110 = vmul.f32 %v102, %v54
  %v111 = vadd.f32 %v103, 1e-05
  %v112 = vadd.f32 %v104, 1e-05
  %v113 = vadd.f32 %v105, 1e-05
  %v114 = vadd.f32 %v106, 1e-05
  %v115 = vadd.f32 %v107, 1e-05
  %v116 = vadd.f32 %v108, 1e-05
  %v117 = vadd.f32 %v109, 1e-05
  %v118 = vadd.f32 %v110, 1e-05
  %v119 = vrsqrt.pop %v111
  %v120 = vrsqrt.pop %v112
  %v121 = vrsqrt.pop %v113
  %v122 = vrsqrt.pop %v114
  %v123 = vrsqrt.pop %v115
  %v124 = vrsqrt.pop %v116
  %v125 = vrsqrt.pop %v117
  %v126 = vrsqrt.pop %v118
  %v127 = vmul.f32 %v63, %v119
  %v128 = vmul.f32 %v64, %v120
  %v129 = vmul.f32 %v65, %v121
  %v130 = vmul.f32 %v66, %v122
  %v131 = vmul.f32 %v67, %v123
  %v132 = vmul.f32 %v68, %v124
  %v133 = vmul.f32 %v69, %v125
  %v134 = vmul.f32 %v70, %v126
  %v135 = vld [vmem:[%s1] sm:$0x1]
  %v137 = vlaneseq
  %v138 = vshrl.u32 %v137, 7
  %v139 = vsub.s32 0, %v138
  %v140 = vrot.slane %v135, %v139
  %v142 = vmul.f32 %v127, %v140
  %v143 = vmul.f32 %v128, %v140
  %v144 = vmul.f32 %v129, %v140
  %v145 = vmul.f32 %v130, %v140
  %v146 = vmul.f32 %v131, %v140
  %v147 = vmul.f32 %v132, %v140
  %v148 = vmul.f32 %v133, %v140
  %v149 = vmul.f32 %v134, %v140
  %v150 = vld [vmem:[%s2] sm:$0x1]
  %v152 = vlaneseq
  %v153 = vshrl.u32 %v152, 7
  %v154 = vsub.s32 0, %v153
  %v155 = vrot.slane %v150, %v154
  %v157 = vadd.f32 %v142, %v155
  %v158 = vadd.f32 %v143, %v155
  %v159 = vadd.f32 %v144, %v155
  %v160 = vadd.f32 %v145, %v155
  %v161 = vadd.f32 %v146, %v155
  %v162 = vadd.f32 %v147, %v155
  %v163 = vadd.f32 %v148, %v155
  %v164 = vadd.f32 %v149, %v155
  %v165 = vpack.c.bf16 %v158, %v157
  %v166 = vpack.c.bf16 %v160, %v159
  %v167 = vpack.c.bf16 %v162, %v161
  %v168 = vpack.c.bf16 %v164, %v163
  %v169 = vld [vmem:[%s3] sm:$0xf]
  %v170 = vld [vmem:[%s3 + $0x4] sm:$0xf]
  %v171 = vld [vmem:[%s3 + $0x8] sm:$0xf]
  %v172 = vld [vmem:[%s3 + $0xc] sm:$0xf]
  %v173 = vld [vmem:[%s4] sm:$0x1]
  %v175 = vlaneseq
  %v176 = vshrl.u32 %v175, 7
  %v177 = vsub.s32 0, %v176
  %v178 = vrot.slane %v173, %v177
  %v184 = vunpack.c.l.b16 %v169
  %v185 = vunpack.c.l.b16 %v170
  %v186 = vunpack.c.l.b16 %v171
  %v187 = vunpack.c.l.b16 %v172
  %v188 = vpack.c.b16 %v185, %v184
  %v189 = vpack.c.b16 %v187, %v186
  %v193 = vsel %vm29, %v165, 0
  %v196 = vsel %vm29, %v166, 0
  %v199 = vsel %vm29, %v167, 0
  %v202 = vsel %vm29, %v168, 0
  %204 = vmatprep.subr.bf16.mxu0 0
  %205 = vmatpush1.bf16.msra.mxu0 %v188
  %206 = vmatprep.subr.bf16.mxu0 0
  %207 = vmatpush1.bf16.msra.mxu0 %v189
  %208 = vmatprep.subr.bf16.mxu0 0
  %209 = vmatpush1.bf16.msra.mxu0 0
  %210 = vmatprep.subr.bf16.mxu0 0
  %211 = vmatpush1.bf16.msra.mxu0 0
  %212 = vmatprep.subr.bf16.mxu0 0
  %213 = vmatpush1.bf16.msra.mxu0 0
  %214 = vmatprep.subr.bf16.mxu0 0
  %215 = vmatpush1.bf16.msra.mxu0 0
  %216 = vmatprep.subr.bf16.mxu0 0
  %217 = vmatpush1.bf16.msra.mxu0 0
  %218 = vmatprep.subr.bf16.mxu0 0
  %219 = vmatpush1.bf16.msra.mxu0 0
  %220 = vmatprep.subr.bf16.mxu0 0
  %221 = vmatpush1.bf16.msra.mxu0 0
  %222 = vmatprep.subr.bf16.mxu0 0
  %223 = vmatpush1.bf16.msra.mxu0 0
  %224 = vmatprep.subr.bf16.mxu0 0
  %225 = vmatpush1.bf16.msra.mxu0 0
  %226 = vmatprep.subr.bf16.mxu0 0
  %227 = vmatpush1.bf16.msra.mxu0 0
  %228 = vmatprep.subr.bf16.mxu0 0
  %229 = vmatpush1.bf16.msra.mxu0 0
  %230 = vmatprep.subr.bf16.mxu0 0
  %231 = vmatpush1.bf16.msra.mxu0 0
  %232 = vmatprep.subr.bf16.mxu0 0
  %233 = vmatpush1.bf16.msra.mxu0 0
  %234 = vmatprep.subr.bf16.mxu0 0
  %235 = vmatpush1.bf16.msra.mxu0 0
  %236 = vmatprep.mubr.bf16.mxu0 0
  %237 = vmatmul.mubr.bf16.gmra.mrb[0].mxu0 %v193
  %v238 = vpop.f32.mrb[0].mxu0
  %v239 = vadd.f32 %v178, %v238
  %v240 = vpop.f32.mrb[0].mxu0
  %v241 = vpop.f32.mrb[0].mxu0
  %v242 = vadd.f32 %v178, %v241
  %v243 = vpop.f32.mrb[0].mxu0
  %244 = vmatprep.mubr.bf16.mxu0 0
  %245 = vmatmul.mubr.bf16.gmra.mrb[0].mxu0 %v196
  %v246 = vpop.f32.mrb[0].mxu0
  %v247 = vadd.f32 %v178, %v246
  %v248 = vpop.f32.mrb[0].mxu0
  %v249 = vpop.f32.mrb[0].mxu0
  %v250 = vadd.f32 %v178, %v249
  %v251 = vpop.f32.mrb[0].mxu0
  %252 = vmatprep.mubr.bf16.mxu0 0
  %253 = vmatmul.mubr.bf16.gmra.mrb[0].mxu0 %v199
  %v254 = vpop.f32.mrb[0].mxu0
  %v255 = vadd.f32 %v178, %v254
  %v256 = vpop.f32.mrb[0].mxu0
  %v257 = vpop.f32.mrb[0].mxu0
  %v258 = vadd.f32 %v178, %v257
  %v259 = vpop.f32.mrb[0].mxu0
  %260 = vmatprep.mubr.bf16.mxu0 0
  %261 = vmatmul.mubr.bf16.gmra.mrb[0].mxu0 %v202
  %v262 = vpop.f32.mrb[0].mxu0
  %v263 = vadd.f32 %v178, %v262
  %v264 = vpop.f32.mrb[0].mxu0
  %v265 = vpop.f32.mrb[0].mxu0
  %v266 = vadd.f32 %v178, %v265
  %v267 = vpop.f32.mrb[0].mxu0
  %268 = vdwg.mxu0
  %v269 = vmul.f32 %v239, 0.5
  %v270 = vmul.f32 %v242, 0.5
  %v271 = vmul.f32 %v247, 0.5
  %v272 = vmul.f32 %v250, 0.5
  %v273 = vmul.f32 %v255, 0.5
  %v274 = vmul.f32 %v258, 0.5
  %v275 = vmul.f32 %v263, 0.5
  %v276 = vmul.f32 %v266, 0.5
  %v277 = vmul.f32 %v239, 0.044715
  %v278 = vmul.f32 %v242, 0.044715
  %v279 = vmul.f32 %v247, 0.044715
  %v280 = vmul.f32 %v250, 0.044715
  %v281 = vmul.f32 %v255, 0.044715
  %v282 = vmul.f32 %v258, 0.044715
  %v283 = vmul.f32 %v263, 0.044715
  %v284 = vmul.f32 %v266, 0.044715
  %v285 = vmul.f32 %v277, %v239
  %v286 = vmul.f32 %v278, %v242
  %v287 = vmul.f32 %v279, %v247
  %v288 = vmul.f32 %v280, %v250
  %v289 = vmul.f32 %v281, %v255
  %v290 = vmul.f32 %v282, %v258
  %v291 = vmul.f32 %v283, %v263
  %v292 = vmul.f32 %v284, %v266
  %v293 = vmul.f32 %v285, %v239
  %v294 = vmul.f32 %v286, %v242
  %v295 = vmul.f32 %v287, %v247
  %v296 = vmul.f32 %v288, %v250
  %v297 = vmul.f32 %v289, %v255
  %v298 = vmul.f32 %v290, %v258
  %v299 = vmul.f32 %v291, %v263
  %v300 = vmul.f32 %v292, %v266
  %v301 = vadd.f32 %v239, %v293
  %v302 = vadd.f32 %v242, %v294
  %v303 = vadd.f32 %v247, %v295
  %v304 = vadd.f32 %v250, %v296
  %v305 = vadd.f32 %v255, %v297
  %v306 = vadd.f32 %v258, %v298
  %v307 = vadd.f32 %v263, %v299
  %v308 = vadd.f32 %v266, %v300
  %v309 = vmul.f32 %v301, 0.7978846
  %v310 = vmul.f32 %v302, 0.7978846
  %v311 = vmul.f32 %v303, 0.7978846
  %v312 = vmul.f32 %v304, 0.7978846
  %v313 = vmul.f32 %v305, 0.7978846
  %v314 = vmul.f32 %v306, 0.7978846
  %v315 = vmul.f32 %v307, 0.7978846
  %v316 = vmul.f32 %v308, 0.7978846
  %v317 = vtanh.pop %v309
  %v318 = vtanh.pop %v310
  %v319 = vtanh.pop %v311
  %v320 = vtanh.pop %v312
  %v321 = vtanh.pop %v313
  %v322 = vtanh.pop %v314
  %v323 = vtanh.pop %v315
  %v324 = vtanh.pop %v316
  %v325 = vadd.f32 %v317, 1.0
  %v326 = vadd.f32 %v318, 1.0
  %v327 = vadd.f32 %v319, 1.0
  %v328 = vadd.f32 %v320, 1.0
  %v329 = vadd.f32 %v321, 1.0
  %v330 = vadd.f32 %v322, 1.0
  %v331 = vadd.f32 %v323, 1.0
  %v332 = vadd.f32 %v324, 1.0
  %v333 = vmul.f32 %v269, %v325
  %v334 = vmul.f32 %v270, %v326
  %v335 = vmul.f32 %v271, %v327
  %v336 = vmul.f32 %v272, %v328
  %v337 = vmul.f32 %v273, %v329
  %v338 = vmul.f32 %v274, %v330
  %v339 = vmul.f32 %v275, %v331
  %v340 = vmul.f32 %v276, %v332
  %v341 = vpack.c.bf16 %v334, %v333
  %v342 = vpack.c.bf16 %v336, %v335
  %v343 = vpack.c.bf16 %v338, %v337
  %v344 = vpack.c.bf16 %v340, %v339
  %v349 = vunpack.c.l.b16 %v341
  %v350 = vunpack.c.h.b16 %v341
  %v351 = vunpack.c.l.b16 %v342
  %v352 = vunpack.c.h.b16 %v342
  %v353 = vunpack.c.l.b16 %v343
  %v354 = vunpack.c.h.b16 %v343
  %v355 = vunpack.c.l.b16 %v344
  %v356 = vunpack.c.h.b16 %v344
  %v357 = vpack.c.b16 %v349, %v349
  %v358 = vpack.c.b16 %v350, %v350
  %v359 = vpack.c.b16 %v351, %v351
  %v360 = vpack.c.b16 %v352, %v352
  %v361 = vpack.c.b16 %v353, %v353
  %v362 = vpack.c.b16 %v354, %v354
  %v363 = vpack.c.b16 %v355, %v355
  %v364 = vpack.c.b16 %v356, %v356
  %373 = vst [vmem:[%s5] sm:$0xf] %v357
  %374 = vst [vmem:[%s5 + $0x4] sm:$0xf] %v358
  %375 = vst [vmem:[%s5 + $0x8] sm:$0xf] %v359
  %376 = vst [vmem:[%s5 + $0xc] sm:$0xf] %v360
  %377 = vst [vmem:[%s5 + $0x10] sm:$0xf] %v361
  %378 = vst [vmem:[%s5 + $0x14] sm:$0xf] %v362
  %379 = vst [vmem:[%s5 + $0x18] sm:$0xf] %v363
  %380 = vst [vmem:[%s5 + $0x1c] sm:$0xf] %v364
  // Predicated region
  $region22: #{model_forward.31} parent=0 // pred_check
    _
  $region23: #{model_forward.31} parent=0 // pred_check_branch
    %382 = sbr.rel (0) target = $region25
  $region24: #{model_forward.31} parent=0 // pred_region
    _
  $region25: #{model_forward.31} parent=0 // pred_fallthru
    _
  // Predicated region
  $region26: #{model_forward.31} parent=0 // pred_check
    _
  $region27: #{model_forward.31} parent=0 // pred_check_branch
    %384 = sbr.rel (0) target = $region29
  $region28: #{model_forward.31} parent=0 // pred_region
    _
  $region29: #{model_forward.31} parent=0 // pred_fallthru
    _

// kernel: model_forward.32
$region0: #{model_forward.32}
  #allocation0 [shape = 'u32[]', space=smem, size = 0x4, offset = 0x4, fixed_abs, tag = 'smem constant byte address 0x4 - core index']
  #allocation1 [shape = 'u32[144,128]{1,0:T(1,128)}', space=vmem, size = 0x12000, scoped, tag = 'internal scratch']
  #allocation2 [shape = 'f32[64,32]{1,0:T(8,128)}', space=vmem, size = 0x8000, scoped, tag = 'scratch operand']
  %s0 = inlined_call_operand.vmem [shape: bf16[64,128], index: 0, kind: input, shape index: {}]
  %s1 = inlined_call_operand.vmem [shape: bf16[128,32], index: 1, kind: input, shape index: {}]
  %s2 = inlined_call_operand.vmem [shape: f32[1,32], index: 2, kind: input, shape index: {}]
  %s3 = inlined_call_operand.vmem [shape: f32[64,32], index: 3, kind: input, shape index: {}]
  %s4 = inlined_call_operand.vmem [shape: f32[64,32], index: 4, kind: output, shape index: {}]
  %s5 = sld [smem:[#allocation0]]
  $region34: #{model_forward.32} parent=0
    _
  %s7 = ssub.s32 1, %s5
  %s8 = scalar_select 0, %s7, %s5
  // Predicated region
  $region2: #{model_forward.32} parent=0 // pred_check
    _
  $region3: #{model_forward.32} parent=0 // pred_check_branch
    %10 = sbr.rel (0) target = $region5
  $region4: #{model_forward.32} parent=0 // pred_region
    _
  $region5: #{model_forward.32} parent=0 // pred_fallthru
    _
  // Predicated region
  $region6: #{model_forward.32} parent=0 // pred_check
    _
  $region7: #{model_forward.32} parent=0 // pred_check_branch
    %12 = sbr.rel (0) target = $region9
  $region8: #{model_forward.32} parent=0 // pred_region
    _
  $region9: #{model_forward.32} parent=0 // pred_fallthru
    _
  // Predicated region
  $region10: #{model_forward.32} parent=0 // pred_check
    _
  $region11: #{model_forward.32} parent=0 // pred_check_branch
    %14 = sbr.rel (0) target = $region13
  $region12: #{model_forward.32} parent=0 // pred_region
    _
  $region13: #{model_forward.32} parent=0 // pred_fallthru
    _
  // Predicated region
  $region14: #{model_forward.32} parent=0 // pred_check
    _
  $region15: #{model_forward.32} parent=0 // pred_check_branch
    %16 = sbr.rel (0) target = $region17
  $region16: #{model_forward.32} parent=0 // pred_region
    _
  $region17: #{model_forward.32} parent=0 // pred_fallthru
    _
  %p18 = scmp.eq.s32.totalorder 0, 0
  // Predicated region
  $region18: #{model_forward.32} parent=0 // pred_check
    %p19 = pneg %p18
  $region19: #{model_forward.32} parent=0 // pred_check_branch
    %21 = sbr.rel (%p19) target = $region21
  $region20: #{model_forward.32} parent=0 // pred_region
    %vm22 = vcmask 261120
    %23 = vst.msk [vmem:[#allocation2] sm:$0xff] %vm22, 0.0
    %24 = vst.msk [vmem:[#allocation2 + $0x8] sm:$0xff] %vm22, 0.0
    %25 = vst.msk [vmem:[#allocation2 + $0x10] sm:$0xff] %vm22, 0.0
    %26 = vst.msk [vmem:[#allocation2 + $0x18] sm:$0xff] %vm22, 0.0
    %27 = vst.msk [vmem:[#allocation2 + $0x20] sm:$0xff] %vm22, 0.0
    %28 = vst.msk [vmem:[#allocation2 + $0x28] sm:$0xff] %vm22, 0.0
    %29 = vst.msk [vmem:[#allocation2 + $0x30] sm:$0xff] %vm22, 0.0
    %30 = vst.msk [vmem:[#allocation2 + $0x38] sm:$0xff] %vm22, 0.0
  $region21: #{model_forward.32} parent=0 // pred_fallthru
    _
  %v31 = vld [vmem:[#allocation2] sm:$0xff]
  %v32 = vld [vmem:[#allocation2 + $0x8] sm:$0xff]
  %v33 = vld [vmem:[#allocation2 + $0x10] sm:$0xff]
  %v34 = vld [vmem:[#allocation2 + $0x18] sm:$0xff]
  %v35 = vld [vmem:[#allocation2 + $0x20] sm:$0xff]
  %v36 = vld [vmem:[#allocation2 + $0x28] sm:$0xff]
  %v37 = vld [vmem:[#allocation2 + $0x30] sm:$0xff]
  %v38 = vld [vmem:[#allocation2 + $0x38] sm:$0xff]
  %v39 = vld [vmem:[%s0] sm:$0xf]
  %v40 = vld [vmem:[%s0 + $0x4] sm:$0xf]
  %v41 = vld [vmem:[%s0 + $0x8] sm:$0xf]
  %v42 = vld [vmem:[%s0 + $0xc] sm:$0xf]
  %v43 = vld [vmem:[%s0 + $0x10] sm:$0xf]
  %v44 = vld [vmem:[%s0 + $0x14] sm:$0xf]
  %v45 = vld [vmem:[%s0 + $0x18] sm:$0xf]
  %v46 = vld [vmem:[%s0 + $0x1c] sm:$0xf]
  %v47 = vld [vmem:[%s1] sm:$0xf]
  %v48 = vld [vmem:[%s1 + $0x4] sm:$0xf]
  %v49 = vld [vmem:[%s1 + $0x8] sm:$0xf]
  %v50 = vld [vmem:[%s1 + $0xc] sm:$0xf]
  %v51 = vld [vmem:[%s1 + $0x10] sm:$0xf]
  %v52 = vld [vmem:[%s1 + $0x14] sm:$0xf]
  %v53 = vld [vmem:[%s1 + $0x18] sm:$0xf]
  %v54 = vld [vmem:[%s1 + $0x1c] sm:$0xf]
  %v55 = vld [vmem:[%s1 + $0x20] sm:$0xf]
  %v56 = vld [vmem:[%s1 + $0x24] sm:$0xf]
  %v57 = vld [vmem:[%s1 + $0x28] sm:$0xf]
  %v58 = vld [vmem:[%s1 + $0x2c] sm:$0xf]
  %v59 = vld [vmem:[%s1 + $0x30] sm:$0xf]
  %v60 = vld [vmem:[%s1 + $0x34] sm:$0xf]
  %v61 = vld [vmem:[%s1 + $0x38] sm:$0xf]
  %v62 = vld [vmem:[%s1 + $0x3c] sm:$0xf]
  %v71 = vunpack.c.l.b16 %v39
  %v72 = vunpack.c.l.b16 %v40
  %v73 = vunpack.c.l.b16 %v41
  %v74 = vunpack.c.l.b16 %v42
  %v75 = vunpack.c.l.b16 %v43
  %v76 = vunpack.c.l.b16 %v44
  %v77 = vunpack.c.l.b16 %v45
  %v78 = vunpack.c.l.b16 %v46
  %v79 = vpack.c.b16 %v72, %v71
  %v80 = vpack.c.b16 %v74, %v73
  %v81 = vpack.c.b16 %v76, %v75
  %v82 = vpack.c.b16 %v78, %v77
  %v103 = vunpack.c.l.b16 %v47
  %v104 = vunpack.c.l.b16 %v48
  %v105 = vunpack.c.l.b16 %v49
  %v106 = vunpack.c.l.b16 %v50
  %v107 = vunpack.c.l.b16 %v51
  %v108 = vunpack.c.l.b16 %v52
  %v109 = vunpack.c.l.b16 %v53
  %v110 = vunpack.c.l.b16 %v54
  %v111 = vunpack.c.l.b16 %v55
  %v112 = vunpack.c.l.b16 %v56
  %v113 = vunpack.c.l.b16 %v57
  %v114 = vunpack.c.l.b16 %v58
  %v115 = vunpack.c.l.b16 %v59
  %v116 = vunpack.c.l.b16 %v60
  %v117 = vunpack.c.l.b16 %v61
  %v118 = vunpack.c.l.b16 %v62
  %v119 = vpack.c.b16 %v104, %v103
  %v120 = vpack.c.b16 %v106, %v105
  %v121 = vpack.c.b16 %v108, %v107
  %v122 = vpack.c.b16 %v110, %v109
  %v123 = vpack.c.b16 %v112, %v111
  %v124 = vpack.c.b16 %v114, %v113
  %v125 = vpack.c.b16 %v116, %v115
  %v126 = vpack.c.b16 %v118, %v117
  %135 = vmatprep.subr.bf16.mxu0 0
  %136 = vmatpush1.bf16.msra.mxu0 %v119
  %137 = vmatprep.subr.bf16.mxu0 0
  %138 = vmatpush1.bf16.msra.mxu0 %v120
  %139 = vmatprep.subr.bf16.mxu0 0
  %140 = vmatpush1.bf16.msra.mxu0 %v121
  %141 = vmatprep.subr.bf16.mxu0 0
  %142 = vmatpush1.bf16.msra.mxu0 %v122
  %143 = vmatprep.subr.bf16.mxu0 0
  %144 = vmatpush1.bf16.msra.mxu0 %v123
  %145 = vmatprep.subr.bf16.mxu0 0
  %146 = vmatpush1.bf16.msra.mxu0 %v124
  %147 = vmatprep.subr.bf16.mxu0 0
  %148 = vmatpush1.bf16.msra.mxu0 %v125
  %149 = vmatprep.subr.bf16.mxu0 0
  %150 = vmatpush1.bf16.msra.mxu0 %v126
  %151 = vmatprep.subr.bf16.mxu0 0
  %152 = vmatpush1.bf16.msra.mxu0 0
  %153 = vmatprep.subr.bf16.mxu0 0
  %154 = vmatpush1.bf16.msra.mxu0 0
  %155 = vmatprep.subr.bf16.mxu0 0
  %156 = vmatpush1.bf16.msra.mxu0 0
  %157 = vmatprep.subr.bf16.mxu0 0
  %158 = vmatpush1.bf16.msra.mxu0 0
  %159 = vmatprep.subr.bf16.mxu0 0
  %160 = vmatpush1.bf16.msra.mxu0 0
  %161 = vmatprep.subr.bf16.mxu0 0
  %162 = vmatpush1.bf16.msra.mxu0 0
  %163 = vmatprep.subr.bf16.mxu0 0
  %164 = vmatpush1.bf16.msra.mxu0 0
  %165 = vmatprep.subr.bf16.mxu0 0
  %166 = vmatpush1.bf16.msra.mxu0 0
  %167 = vmatprep.mubr.bf16.mxu0 0
  %168 = vmatmul.mubr.bf16.gmra.mrb[0].mxu0 %v79
  %v169 = vpop.f32.mrb[0].mxu0
  %v170 = vadd.f32 0.0, %v169
  %v171 = vpop.f32.mrb[0].mxu0
  %v172 = vpop.f32.mrb[0].mxu0
  %v173 = vadd.f32 0.0, %v172
  %v174 = vpop.f32.mrb[0].mxu0
  %175 = vmatprep.mubr.bf16.mxu0 0
  %176 = vmatmul.mubr.bf16.gmra.mrb[0].mxu0 %v80
  %v177 = vpop.f32.mrb[0].mxu0
  %v178 = vadd.f32 0.0, %v177
  %v179 = vpop.f32.mrb[0].mxu0
  %v180 = vpop.f32.mrb[0].mxu0
  %v181 = vadd.f32 0.0, %v180
  %v182 = vpop.f32.mrb[0].mxu0
  %183 = vmatprep.mubr.bf16.mxu0 0
  %184 = vmatmul.mubr.bf16.gmra.mrb[0].mxu0 %v81
  %v185 = vpop.f32.mrb[0].mxu0
  %v186 = vadd.f32 0.0, %v185
  %v187 = vpop.f32.mrb[0].mxu0
  %v188 = vpop.f32.mrb[0].mxu0
  %v189 = vadd.f32 0.0, %v188
  %v190 = vpop.f32.mrb[0].mxu0
  %191 = vmatprep.mubr.bf16.mxu0 0
  %192 = vmatmul.mubr.bf16.gmra.mrb[0].mxu0 %v82
  %v193 = vpop.f32.mrb[0].mxu0
  %v194 = vadd.f32 0.0, %v193
  %v195 = vpop.f32.mrb[0].mxu0
  %v196 = vpop.f32.mrb[0].mxu0
  %v197 = vadd.f32 0.0, %v196
  %v198 = vpop.f32.mrb[0].mxu0
  %199 = vdwg.mxu0
  %v200 = vadd.f32 %v31, %v170
  %v201 = vadd.f32 %v32, %v173
  %v202 = vadd.f32 %v33, %v178
  %v203 = vadd.f32 %v34, %v181
  %v204 = vadd.f32 %v35, %v186
  %v205 = vadd.f32 %v36, %v189
  %v206 = vadd.f32 %v37, %v194
  %v207 = vadd.f32 %v38, %v197
  %vm208 = vcmask 261120
  %209 = vst.msk [vmem:[#allocation2] sm:$0xff] %vm208, %v200
  %210 = vst.msk [vmem:[#allocation2 + $0x8] sm:$0xff] %vm208, %v201
  %211 = vst.msk [vmem:[#allocation2 + $0x10] sm:$0xff] %vm208, %v202
  %212 = vst.msk [vmem:[#allocation2 + $0x18] sm:$0xff] %vm208, %v203
  %213 = vst.msk [vmem:[#allocation2 + $0x20] sm:$0xff] %vm208, %v204
  %214 = vst.msk [vmem:[#allocation2 + $0x28] sm:$0xff] %vm208, %v205
  %215 = vst.msk [vmem:[#allocation2 + $0x30] sm:$0xff] %vm208, %v206
  %216 = vst.msk [vmem:[#allocation2 + $0x38] sm:$0xff] %vm208, %v207
  // Predicated region
  $region22: #{model_forward.32} parent=0 // pred_check
    %p217 = pneg %p18
  $region23: #{model_forward.32} parent=0 // pred_check_branch
    %219 = sbr.rel (%p217) target = $region25
  $region24: #{model_forward.32} parent=0 // pred_region
    %v220 = vld [vmem:[#allocation2] sm:$0xff]
    %v221 = vld [vmem:[#allocation2 + $0x8] sm:$0xff]
    %v222 = vld [vmem:[#allocation2 + $0x10] sm:$0xff]
    %v223 = vld [vmem:[#allocation2 + $0x18] sm:$0xff]
    %v224 = vld [vmem:[#allocation2 + $0x20] sm:$0xff]
    %v225 = vld [vmem:[#allocation2 + $0x28] sm:$0xff]
    %v226 = vld [vmem:[#allocation2 + $0x30] sm:$0xff]
    %v227 = vld [vmem:[#allocation2 + $0x38] sm:$0xff]
    %v228 = vld [vmem:[%s2] sm:$0x1]
    %v230 = vlaneseq
    %v231 = vshrl.u32 %v230, 7
    %v232 = vsub.s32 0, %v231
    %v233 = vrot.slane %v228, %v232
    %v235 = vadd.f32 %v220, %v233
    %v236 = vadd.f32 %v221, %v233
    %v237 = vadd.f32 %v222, %v233
    %v238 = vadd.f32 %v223, %v233
    %v239 = vadd.f32 %v224, %v233
    %v240 = vadd.f32 %v225, %v233
    %v241 = vadd.f32 %v226, %v233
    %v242 = vadd.f32 %v227, %v233
    %v243 = vld [vmem:[%s3] sm:$0xff]
    %v244 = vld [vmem:[%s3 + $0x8] sm:$0xff]
    %v245 = vld [vmem:[%s3 + $0x10] sm:$0xff]
    %v246 = vld [vmem:[%s3 + $0x18] sm:$0xff]
    %v247 = vld [vmem:[%s3 + $0x20] sm:$0xff]
    %v248 = vld [vmem:[%s3 + $0x28] sm:$0xff]
    %v249 = vld [vmem:[%s3 + $0x30] sm:$0xff]
    %v250 = vld [vmem:[%s3 + $0x38] sm:$0xff]
    %v251 = vadd.f32 %v235, %v243
    %v252 = vadd.f32 %v236, %v244
    %v253 = vadd.f32 %v237, %v245
    %v254 = vadd.f32 %v238, %v246
    %v255 = vadd.f32 %v239, %v247
    %v256 = vadd.f32 %v240, %v248
    %v257 = vadd.f32 %v241, %v249
    %v258 = vadd.f32 %v242, %v250
    %259 = vst.msk [vmem:[%s4] sm:$0xff] %vm208, %v251
    %260 = vst.msk [vmem:[%s4 + $0x8] sm:$0xff] %vm208, %v252
    %261 = vst.msk [vmem:[%s4 + $0x10] sm:$0xff] %vm208, %v253
    %262 = vst.msk [vmem:[%s4 + $0x18] sm:$0xff] %vm208, %v254
    %263 = vst.msk [vmem:[%s4 + $0x20] sm:$0xff] %vm208, %v255
    %264 = vst.msk [vmem:[%s4 + $0x28] sm:$0xff] %vm208, %v256
    %265 = vst.msk [vmem:[%s4 + $0x30] sm:$0xff] %vm208, %v257
    %266 = vst.msk [vmem:[%s4 + $0x38] sm:$0xff] %vm208, %v258
  $region25: #{model_forward.32} parent=0 // pred_fallthru
    _
  // Predicated region
  $region26: #{model_forward.32} parent=0 // pred_check
    _
  $region27: #{model_forward.32} parent=0 // pred_check_branch
    %268 = sbr.rel (0) target = $region29
  $region28: #{model_forward.32} parent=0 // pred_region
    _
  $region29: #{model_forward.32} parent=0 // pred_fallthru
    _
  // Predicated region
  $region30: #{model_forward.32} parent=0 // pred_check
    _
  $region31: #{model_forward.32} parent=0 // pred_check_branch
    %270 = sbr.rel (0) target = $region33
  $region32: #{model_forward.32} parent=0 // pred_region
    _
  $region33: #{model_forward.32} parent=0 // pred_fallthru
    _

// kernel: model_forward.38
$region0: #{model_forward.38}
  #allocation0 [shape = 'u32[]', space=smem, size = 0x4, offset = 0x4, fixed_abs, tag = 'smem constant byte address 0x4 - core index']
  #allocation1 [shape = 'u32[144,128]{1,0:T(1,128)}', space=vmem, size = 0x12000, scoped, tag = 'internal scratch']
  %s0 = inlined_call_operand.vmem [shape: f32[64,32], index: 0, kind: input, shape index: {}]
  %s1 = inlined_call_operand.vmem [shape: f32[1,32], index: 1, kind: input, shape index: {}]
  %s2 = inlined_call_operand.vmem [shape: f32[1,32], index: 2, kind: input, shape index: {}]
  %s3 = inlined_call_operand.vmem [shape: f32[64,32], index: 3, kind: output, shape index: {}]
  %s4 = sld [smem:[#allocation0]]
  $region22: #{model_forward.38} parent=0
    _
  %s6 = ssub.s32 1, %s4
  %s7 = scalar_select 0, %s6, %s4
  // Predicated region
  $region2: #{model_forward.38} parent=0 // pred_check
    _
  $region3: #{model_forward.38} parent=0 // pred_check_branch
    %9 = sbr.rel (0) target = $region5
  $region4: #{model_forward.38} parent=0 // pred_region
    _
  $region5: #{model_forward.38} parent=0 // pred_fallthru
    _
  // Predicated region
  $region6: #{model_forward.38} parent=0 // pred_check
    _
  $region7: #{model_forward.38} parent=0 // pred_check_branch
    %11 = sbr.rel (0) target = $region9
  $region8: #{model_forward.38} parent=0 // pred_region
    _
  $region9: #{model_forward.38} parent=0 // pred_fallthru
    _
  // Predicated region
  $region10: #{model_forward.38} parent=0 // pred_check
    _
  $region11: #{model_forward.38} parent=0 // pred_check_branch
    %13 = sbr.rel (0) target = $region13
  $region12: #{model_forward.38} parent=0 // pred_region
    _
  $region13: #{model_forward.38} parent=0 // pred_fallthru
    _
  %v14 = vld [vmem:[%s0] sm:$0xff]
  %v15 = vld [vmem:[%s0 + $0x8] sm:$0xff]
  %v16 = vld [vmem:[%s0 + $0x10] sm:$0xff]
  %v17 = vld [vmem:[%s0 + $0x18] sm:$0xff]
  %v18 = vld [vmem:[%s0 + $0x20] sm:$0xff]
  %v19 = vld [vmem:[%s0 + $0x28] sm:$0xff]
  %v20 = vld [vmem:[%s0 + $0x30] sm:$0xff]
  %v21 = vld [vmem:[%s0 + $0x38] sm:$0xff]
  %vm22 = vcmask 261120
  %v23 = vsel %vm22, %v14, 0.0
  %24 = vadd.xlane.f32.xlu0 %v23
  %v25 = vpop.xlane.xlu0 %24
  %v26 = vsel %vm22, %v15, 0.0
  %27 = vadd.xlane.f32.xlu0 %v26
  %v28 = vpop.xlane.xlu0 %27
  %v29 = vsel %vm22, %v16, 0.0
  %30 = vadd.xlane.f32.xlu0 %v29
  %v31 = vpop.xlane.xlu0 %30
  %v32 = vsel %vm22, %v17, 0.0
  %33 = vadd.xlane.f32.xlu0 %v32
  %v34 = vpop.xlane.xlu0 %33
  %v35 = vsel %vm22, %v18, 0.0
  %36 = vadd.xlane.f32.xlu0 %v35
  %v37 = vpop.xlane.xlu0 %36
  %v38 = vsel %vm22, %v19, 0.0
  %39 = vadd.xlane.f32.xlu0 %v38
  %v40 = vpop.xlane.xlu0 %39
  %v41 = vsel %vm22, %v20, 0.0
  %42 = vadd.xlane.f32.xlu0 %v41
  %v43 = vpop.xlane.xlu0 %42
  %v44 = vsel %vm22, %v21, 0.0
  %45 = vadd.xlane.f32.xlu0 %v44
  %v46 = vpop.xlane.xlu0 %45
  %v47 = vrcp.pop 32.0
  %v48 = vmul.f32 %v25, %v47
  %v49 = vmul.f32 %v28, %v47
  %v50 = vmul.f32 %v31, %v47
  %v51 = vmul.f32 %v34, %v47
  %v52 = vmul.f32 %v37, %v47
  %v53 = vmul.f32 %v40, %v47
  %v54 = vmul.f32 %v43, %v47
  %v55 = vmul.f32 %v46, %v47
  %v56 = vsub.f32 %v14, %v48
  %v57 = vsub.f32 %v15, %v49
  %v58 = vsub.f32 %v16, %v50
  %v59 = vsub.f32 %v17, %v51
  %v60 = vsub.f32 %v18, %v52
  %v61 = vsub.f32 %v19, %v53
  %v62 = vsub.f32 %v20, %v54
  %v63 = vsub.f32 %v21, %v55
  %v64 = vmul.f32 %v56, %v56
  %v65 = vmul.f32 %v57, %v57
  %v66 = vmul.f32 %v58, %v58
  %v67 = vmul.f32 %v59, %v59
  %v68 = vmul.f32 %v60, %v60
  %v69 = vmul.f32 %v61, %v61
  %v70 = vmul.f32 %v62, %v62
  %v71 = vmul.f32 %v63, %v63
  %v72 = vsel %vm22, %v64, 0.0
  %73 = vadd.xlane.f32.xlu0 %v72
  %v74 = vpop.xlane.xlu0 %73
  %v75 = vsel %vm22, %v65, 0.0
  %76 = vadd.xlane.f32.xlu0 %v75
  %v77 = vpop.xlane.xlu0 %76
  %v78 = vsel %vm22, %v66, 0.0
  %79 = vadd.xlane.f32.xlu0 %v78
  %v80 = vpop.xlane.xlu0 %79
  %v81 = vsel %vm22, %v67, 0.0
  %82 = vadd.xlane.f32.xlu0 %v81
  %v83 = vpop.xlane.xlu0 %82
  %v84 = vsel %vm22, %v68, 0.0
  %85 = vadd.xlane.f32.xlu0 %v84
  %v86 = vpop.xlane.xlu0 %85
  %v87 = vsel %vm22, %v69, 0.0
  %88 = vadd.xlane.f32.xlu0 %v87
  %v89 = vpop.xlane.xlu0 %88
  %v90 = vsel %vm22, %v70, 0.0
  %91 = vadd.xlane.f32.xlu0 %v90
  %v92 = vpop.xlane.xlu0 %91
  %v93 = vsel %vm22, %v71, 0.0
  %94 = vadd.xlane.f32.xlu0 %v93
  %v95 = vpop.xlane.xlu0 %94
  %v96 = vmul.f32 %v74, %v47
  %v97 = vmul.f32 %v77, %v47
  %v98 = vmul.f32 %v80, %v47
  %v99 = vmul.f32 %v83, %v47
  %v100 = vmul.f32 %v86, %v47
  %v101 = vmul.f32 %v89, %v47
  %v102 = vmul.f32 %v92, %v47
  %v103 = vmul.f32 %v95, %v47
  %v104 = vadd.f32 %v96, 1e-05
  %v105 = vadd.f32 %v97, 1e-05
  %v106 = vadd.f32 %v98, 1e-05
  %v107 = vadd.f32 %v99, 1e-05
  %v108 = vadd.f32 %v100, 1e-05
  %v109 = vadd.f32 %v101, 1e-05
  %v110 = vadd.f32 %v102, 1e-05
  %v111 = vadd.f32 %v103, 1e-05
  %v112 = vrsqrt.pop %v104
  %v113 = vrsqrt.pop %v105
  %v114 = vrsqrt.pop %v106
  %v115 = vrsqrt.pop %v107
  %v116 = vrsqrt.pop %v108
  %v117 = vrsqrt.pop %v109
  %v118 = vrsqrt.pop %v110
  %v119 = vrsqrt.pop %v111
  %v120 = vmul.f32 %v56, %v112
  %v121 = vmul.f32 %v57, %v113
  %v122 = vmul.f32 %v58, %v114
  %v123 = vmul.f32 %v59, %v115
  %v124 = vmul.f32 %v60, %v116
  %v125 = vmul.f32 %v61, %v117
  %v126 = vmul.f32 %v62, %v118
  %v127 = vmul.f32 %v63, %v119
  %v128 = vld [vmem:[%s1] sm:$0x1]
  %v130 = vlaneseq
  %v131 = vshrl.u32 %v130, 7
  %v132 = vsub.s32 0, %v131
  %v133 = vrot.slane %v128, %v132
  %v135 = vmul.f32 %v120, %v133
  %v136 = vmul.f32 %v121, %v133
  %v137 = vmul.f32 %v122, %v133
  %v138 = vmul.f32 %v123, %v133
  %v139 = vmul.f32 %v124, %v133
  %v140 = vmul.f32 %v125, %v133
  %v141 = vmul.f32 %v126, %v133
  %v142 = vmul.f32 %v127, %v133
  %v143 = vld [vmem:[%s2] sm:$0x1]
  %v145 = vlaneseq
  %v146 = vshrl.u32 %v145, 7
  %v147 = vsub.s32 0, %v146
  %v148 = vrot.slane %v143, %v147
  %v150 = vadd.f32 %v135, %v148
  %v151 = vadd.f32 %v136, %v148
  %v152 = vadd.f32 %v137, %v148
  %v153 = vadd.f32 %v138, %v148
  %v154 = vadd.f32 %v139, %v148
  %v155 = vadd.f32 %v140, %v148
  %v156 = vadd.f32 %v141, %v148
  %v157 = vadd.f32 %v142, %v148
  %158 = vst.msk [vmem:[%s3] sm:$0xff] %vm22, %v150
  %159 = vst.msk [vmem:[%s3 + $0x8] sm:$0xff] %vm22, %v151
  %160 = vst.msk [vmem:[%s3 + $0x10] sm:$0xff] %vm22, %v152
  %161 = vst.msk [vmem:[%s3 + $0x18] sm:$0xff] %vm22, %v153
  %162 = vst.msk [vmem:[%s3 + $0x20] sm:$0xff] %vm22, %v154
  %163 = vst.msk [vmem:[%s3 + $0x28] sm:$0xff] %vm22, %v155
  %164 = vst.msk [vmem:[%s3 + $0x30] sm:$0xff] %vm22, %v156
  %165 = vst.msk [vmem:[%s3 + $0x38] sm:$0xff] %vm22, %v157
  // Predicated region
  $region14: #{model_forward.38} parent=0 // pred_check
    _
  $region15: #{model_forward.38} parent=0 // pred_check_branch
    %167 = sbr.rel (0) target = $region17
  $region16: #{model_forward.38} parent=0 // pred_region
    _
  $region17: #{model_forward.38} parent=0 // pred_fallthru
    _
  // Predicated region
  $region18: #{model_forward.38} parent=0 // pred_check
    _
  $region19: #{model_forward.38} parent=0 // pred_check_branch
    %169 = sbr.rel (0) target = $region21
  $region20: #{model_forward.38} parent=0 // pred_region
    _
  $region21: #{model_forward.38} parent=0 // pred_fallthru
    _

// kernel: model_forward.39
$region0: #{model_forward.39}
  #allocation0 [shape = 'u32[]', space=smem, size = 0x4, offset = 0x4, fixed_abs, tag = 'smem constant byte address 0x4 - core index']
  #allocation1 [shape = 'u32[144,128]{1,0:T(1,128)}', space=vmem, size = 0x12000, scoped, tag = 'internal scratch']
  %s0 = inlined_call_operand.vmem [shape: f32[32,64], index: 0, kind: input, shape index: {}]
  %s1 = inlined_call_operand.vmem [shape: f32[1,64], index: 1, kind: input, shape index: {}]
  %s2 = inlined_call_operand.vmem [shape: f32[1,64], index: 2, kind: input, shape index: {}]
  %s3 = inlined_call_operand.vmem [shape: bf16[64,4], index: 3, kind: input, shape index: {}]
  %s4 = inlined_call_operand.vmem [shape: f32[1,4], index: 4, kind: input, shape index: {}]
  %s5 = inlined_call_operand.vmem [shape: f32[32,4], index: 5, kind: output, shape index: {}]
  %s6 = sld [smem:[#allocation0]]
  $region30: #{model_forward.39} parent=0
    _
  %s8 = ssub.s32 1, %s6
  %s9 = scalar_select 0, %s8, %s6
  // Predicated region
  $region2: #{model_forward.39} parent=0 // pred_check
    _
  $region3: #{model_forward.39} parent=0 // pred_check_branch
    %11 = sbr.rel (0) target = $region5
  $region4: #{model_forward.39} parent=0 // pred_region
    _
  $region5: #{model_forward.39} parent=0 // pred_fallthru
    _
  // Predicated region
  $region6: #{model_forward.39} parent=0 // pred_check
    _
  $region7: #{model_forward.39} parent=0 // pred_check_branch
    %13 = sbr.rel (0) target = $region9
  $region8: #{model_forward.39} parent=0 // pred_region
    _
  $region9: #{model_forward.39} parent=0 // pred_fallthru
    _
  // Predicated region
  $region10: #{model_forward.39} parent=0 // pred_check
    _
  $region11: #{model_forward.39} parent=0 // pred_check_branch
    %15 = sbr.rel (0) target = $region13
  $region12: #{model_forward.39} parent=0 // pred_region
    _
  $region13: #{model_forward.39} parent=0 // pred_fallthru
    _
  // Predicated region
  $region14: #{model_forward.39} parent=0 // pred_check
    _
  $region15: #{model_forward.39} parent=0 // pred_check_branch
    %17 = sbr.rel (0) target = $region17
  $region16: #{model_forward.39} parent=0 // pred_region
    _
  $region17: #{model_forward.39} parent=0 // pred_fallthru
    _
  // Predicated region
  $region18: #{model_forward.39} parent=0 // pred_check
    _
  $region19: #{model_forward.39} parent=0 // pred_check_branch
    %19 = sbr.rel (0) target = $region21
  $region20: #{model_forward.39} parent=0 // pred_region
    _
  $region21: #{model_forward.39} parent=0 // pred_fallthru
    _
  %v21 = vld [vmem:[%s0] sm:$0xff]
  %v22 = vld [vmem:[%s0 + $0x8] sm:$0xff]
  %v23 = vld [vmem:[%s0 + $0x10] sm:$0xff]
  %v24 = vld [vmem:[%s0 + $0x18] sm:$0xff]
  %vm25 = vcmask 523264
  %v26 = vsel %vm25, %v21, 0.0
  %27 = vadd.xlane.f32.xlu0 %v26
  %v28 = vpop.xlane.xlu0 %27
  %v29 = vsel %vm25, %v22, 0.0
  %30 = vadd.xlane.f32.xlu0 %v29
  %v31 = vpop.xlane.xlu0 %30
  %v32 = vsel %vm25, %v23, 0.0
  %33 = vadd.xlane.f32.xlu0 %v32
  %v34 = vpop.xlane.xlu0 %33
  %v35 = vsel %vm25, %v24, 0.0
  %36 = vadd.xlane.f32.xlu0 %v35
  %v37 = vpop.xlane.xlu0 %36
  %v38 = vrcp.pop 64.0
  %v39 = vmul.f32 %v28, %v38
  %v40 = vmul.f32 %v31, %v38
  %v41 = vmul.f32 %v34, %v38
  %v42 = vmul.f32 %v37, %v38
  %v43 = vsub.f32 %v21, %v39
  %v44 = vsub.f32 %v22, %v40
  %v45 = vsub.f32 %v23, %v41
  %v46 = vsub.f32 %v24, %v42
  %v47 = vmul.f32 %v43, %v43
  %v48 = vmul.f32 %v44, %v44
  %v49 = vmul.f32 %v45, %v45
  %v50 = vmul.f32 %v46, %v46
  %v51 = vsel %vm25, %v47, 0.0
  %52 = vadd.xlane.f32.xlu0 %v51
  %v53 = vpop.xlane.xlu0 %52
  %v54 = vsel %vm25, %v48, 0.0
  %55 = vadd.xlane.f32.xlu0 %v54
  %v56 = vpop.xlane.xlu0 %55
  %v57 = vsel %vm25, %v49, 0.0
  %58 = vadd.xlane.f32.xlu0 %v57
  %v59 = vpop.xlane.xlu0 %58
  %v60 = vsel %vm25, %v50, 0.0
  %61 = vadd.xlane.f32.xlu0 %v60
  %v62 = vpop.xlane.xlu0 %61
  %v63 = vmul.f32 %v53, %v38
  %v64 = vmul.f32 %v56, %v38
  %v65 = vmul.f32 %v59, %v38
  %v66 = vmul.f32 %v62, %v38
  %v67 = vadd.f32 %v63, 1e-05
  %v68 = vadd.f32 %v64, 1e-05
  %v69 = vadd.f32 %v65, 1e-05
  %v70 = vadd.f32 %v66, 1e-05
  %v71 = vrsqrt.pop %v67
  %v72 = vrsqrt.pop %v68
  %v73 = vrsqrt.pop %v69
  %v74 = vrsqrt.pop %v70
  %v75 = vmul.f32 %v43, %v71
  %v76 = vmul.f32 %v44, %v72
  %v77 = vmul.f32 %v45, %v73
  %v78 = vmul.f32 %v46, %v74
  %v79 = vld [vmem:[%s1] sm:$0x1]
  %v81 = vlaneseq
  %v82 = vshrl.u32 %v81, 7
  %v83 = vsub.s32 0, %v82
  %v84 = vrot.slane %v79, %v83
  %v86 = vmul.f32 %v75, %v84
  %v87 = vmul.f32 %v76, %v84
  %v88 = vmul.f32 %v77, %v84
  %v89 = vmul.f32 %v78, %v84
  %v90 = vld [vmem:[%s2] sm:$0x1]
  %v92 = vlaneseq
  %v93 = vshrl.u32 %v92, 7
  %v94 = vsub.s32 0, %v93
  %v95 = vrot.slane %v90, %v94
  %v97 = vadd.f32 %v86, %v95
  %v98 = vadd.f32 %v87, %v95
  %v99 = vadd.f32 %v88, %v95
  %v100 = vadd.f32 %v89, %v95
  %v101 = vpack.c.bf16 %v98, %v97
  %v102 = vpack.c.bf16 %v100, %v99
  %v103 = vld [vmem:[%s3] sm:$0xf]
  %v104 = vld [vmem:[%s3 + $0x4] sm:$0xf]
  %v105 = vld [vmem:[%s3 + $0x8] sm:$0xf]
  %v106 = vld [vmem:[%s3 + $0xc] sm:$0xf]
  %v107 = vld [vmem:[%s3 + $0x10] sm:$0xf]
  %v108 = vld [vmem:[%s3 + $0x14] sm:$0xf]
  %v109 = vld [vmem:[%s3 + $0x18] sm:$0xf]
  %v110 = vld [vmem:[%s3 + $0x1c] sm:$0xf]
  %v111 = vld [vmem:[%s4] sm:$0x1]
  %v113 = vlaneseq
  %v114 = vshrl.u32 %v113, 7
  %v115 = vsub.s32 0, %v114
  %v116 = vrot.slane %v111, %v115
  %v126 = vunpack.c.l.b16 %v103
  %v127 = vunpack.c.l.b16 %v104
  %v128 = vunpack.c.l.b16 %v105
  %v129 = vunpack.c.l.b16 %v106
  %v130 = vunpack.c.l.b16 %v107
  %v131 = vunpack.c.l.b16 %v108
  %v132 = vunpack.c.l.b16 %v109
  %v133 = vunpack.c.l.b16 %v110
  %v134 = vpack.c.b16 %v127, %v126
  %v135 = vpack.c.b16 %v129, %v128
  %v136 = vpack.c.b16 %v131, %v130
  %v137 = vpack.c.b16 %v133, %v132
  %v143 = vsel %vm25, %v101, 0
  %v146 = vsel %vm25, %v102, 0
  %148 = vmatprep.subr.bf16.mxu0 0
  %149 = vmatpush1.bf16.msra.mxu0 %v134
  %150 = vmatprep.subr.bf16.mxu0 0
  %151 = vmatpush1.bf16.msra.mxu0 %v135
  %152 = vmatprep.subr.bf16.mxu0 0
  %153 = vmatpush1.bf16.msra.mxu0 %v136
  %154 = vmatprep.subr.bf16.mxu0 0
  %155 = vmatpush1.bf16.msra.mxu0 %v137
  %156 = vmatprep.subr.bf16.mxu0 0
  %157 = vmatpush1.bf16.msra.mxu0 0
  %158 = vmatprep.subr.bf16.mxu0 0
  %159 = vmatpush1.bf16.msra.mxu0 0
  %160 = vmatprep.subr.bf16.mxu0 0
  %161 = vmatpush1.bf16.msra.mxu0 0
  %162 = vmatprep.subr.bf16.mxu0 0
  %163 = vmatpush1.bf16.msra.mxu0 0
  %164 = vmatprep.subr.bf16.mxu0 0
  %165 = vmatpush1.bf16.msra.mxu0 0
  %166 = vmatprep.subr.bf16.mxu0 0
  %167 = vmatpush1.bf16.msra.mxu0 0
  %168 = vmatprep.subr.bf16.mxu0 0
  %169 = vmatpush1.bf16.msra.mxu0 0
  %170 = vmatprep.subr.bf16.mxu0 0
  %171 = vmatpush1.bf16.msra.mxu0 0
  %172 = vmatprep.subr.bf16.mxu0 0
  %173 = vmatpush1.bf16.msra.mxu0 0
  %174 = vmatprep.subr.bf16.mxu0 0
  %175 = vmatpush1.bf16.msra.mxu0 0
  %176 = vmatprep.subr.bf16.mxu0 0
  %177 = vmatpush1.bf16.msra.mxu0 0
  %178 = vmatprep.subr.bf16.mxu0 0
  %179 = vmatpush1.bf16.msra.mxu0 0
  %180 = vmatprep.mubr.bf16.mxu0 0
  %181 = vmatmul.mubr.bf16.gmra.mrb[0].mxu0 %v143
  %v182 = vpop.f32.mrb[0].mxu0
  %v183 = vadd.f32 %v116, %v182
  %v184 = vpop.f32.mrb[0].mxu0
  %v185 = vpop.f32.mrb[0].mxu0
  %v186 = vadd.f32 %v116, %v185
  %v187 = vpop.f32.mrb[0].mxu0
  %188 = vmatprep.mubr.bf16.mxu0 0
  %189 = vmatmul.mubr.bf16.gmra.mrb[0].mxu0 %v146
  %v190 = vpop.f32.mrb[0].mxu0
  %v191 = vadd.f32 %v116, %v190
  %v192 = vpop.f32.mrb[0].mxu0
  %v193 = vpop.f32.mrb[0].mxu0
  %v194 = vadd.f32 %v116, %v193
  %v195 = vpop.f32.mrb[0].mxu0
  %196 = vdwg.mxu0
  %vm197 = vcmask 31744
  %198 = vst.msk [vmem:[%s5] sm:$0xff] %vm197, %v183
  %199 = vst.msk [vmem:[%s5 + $0x8] sm:$0xff] %vm197, %v186
  %200 = vst.msk [vmem:[%s5 + $0x10] sm:$0xff] %vm197, %v191
  %201 = vst.msk [vmem:[%s5 + $0x18] sm:$0xff] %vm197, %v194
  // Predicated region
  $region22: #{model_forward.39} parent=0 // pred_check
    _
  $region23: #{model_forward.39} parent=0 // pred_check_branch
    %203 = sbr.rel (0) target = $region25
  $region24: #{model_forward.39} parent=0 // pred_region
    _
  $region25: #{model_forward.39} parent=0 // pred_fallthru
    _
  // Predicated region
  $region26: #{model_forward.39} parent=0 // pred_check
    _
  $region27: #{model_forward.39} parent=0 // pred_check_branch
    %205 = sbr.rel (0) target = $region29
  $region28: #{model_forward.39} parent=0 // pred_region
    _
  $region29: #{model_forward.39} parent=0 // pred_fallthru
    _

// kernel: model_forward.40
$region0: #{model_forward.40}
  #allocation0 [shape = 'u32[]', space=smem, size = 0x4, offset = 0x4, fixed_abs, tag = 'smem constant byte address 0x4 - core index']
  #allocation1 [shape = 'u32[144,128]{1,0:T(1,128)}', space=vmem, size = 0x12000, scoped, tag = 'internal scratch']
  #allocation2 [shape = 'f32[8,32]{1,0:T(8,128)}', space=vmem, size = 0x1000, scoped, tag = 'scratch operand']
  %s0 = inlined_call_operand.vmem [shape: f32[8,32], index: 0, kind: input, shape index: {}]
  %s1 = inlined_call_operand.vmem [shape: bf16[32,32], index: 1, kind: input, shape index: {}]
  %s2 = inlined_call_operand.vmem [shape: f32[1,32], index: 2, kind: input, shape index: {}]
  %s3 = inlined_call_operand.vmem [shape: f32[8,32], index: 3, kind: output, shape index: {}]
  %s4 = sld [smem:[#allocation0]]
  $region30: #{model_forward.40} parent=0
    _
  %s6 = ssub.s32 1, %s4
  %s7 = scalar_select 0, %s6, %s4
  // Predicated region
  $region2: #{model_forward.40} parent=0 // pred_check
    _
  $region3: #{model_forward.40} parent=0 // pred_check_branch
    %9 = sbr.rel (0) target = $region5
  $region4: #{model_forward.40} parent=0 // pred_region
    _
  $region5: #{model_forward.40} parent=0 // pred_fallthru
    _
  // Predicated region
  $region6: #{model_forward.40} parent=0 // pred_check
    _
  $region7: #{model_forward.40} parent=0 // pred_check_branch
    %11 = sbr.rel (0) target = $region9
  $region8: #{model_forward.40} parent=0 // pred_region
    _
  $region9: #{model_forward.40} parent=0 // pred_fallthru
    _
  // Predicated region
  $region10: #{model_forward.40} parent=0 // pred_check
    _
  $region11: #{model_forward.40} parent=0 // pred_check_branch
    %13 = sbr.rel (0) target = $region13
  $region12: #{model_forward.40} parent=0 // pred_region
    _
  $region13: #{model_forward.40} parent=0 // pred_fallthru
    _
  %p15 = scmp.eq.s32.totalorder 0, 0
  // Predicated region
  $region14: #{model_forward.40} parent=0 // pred_check
    %p16 = pneg %p15
  $region15: #{model_forward.40} parent=0 // pred_check_branch
    %18 = sbr.rel (%p16) target = $region17
  $region16: #{model_forward.40} parent=0 // pred_region
    %vm19 = vcmask 261120
    %20 = vst.msk [vmem:[#allocation2] sm:$0xff] %vm19, 0.0
  $region17: #{model_forward.40} parent=0 // pred_fallthru
    _
  %v21 = vld [vmem:[#allocation2] sm:$0xff]
  %v22 = vld [vmem:[%s0] sm:$0xff]
  %v23 = vpack.c.bf16 %v22, %v22
  %v24 = vld [vmem:[%s1] sm:$0xf]
  %v25 = vld [vmem:[%s1 + $0x4] sm:$0xf]
  %v26 = vld [vmem:[%s1 + $0x8] sm:$0xf]
  %v27 = vld [vmem:[%s1 + $0xc] sm:$0xf]
  %v32 = vunpack.c.l.b16 %v24
  %v33 = vunpack.c.l.b16 %v25
  %v34 = vunpack.c.l.b16 %v26
  %v35 = vunpack.c.l.b16 %v27
  %v36 = vpack.c.b16 %v33, %v32
  %v37 = vpack.c.b16 %v35, %v34
  %vm40 = vcmask 261120
  %v42 = vsel %vm40, %v23, 0
  %44 = vmatprep.subr.bf16.mxu0 0
  %45 = vmatpush1.bf16.msra.mxu0 %v36
  %46 = vmatprep.subr.bf16.mxu0 0
  %47 = vmatpush1.bf16.msra.mxu0 %v37
  %48 = vmatprep.subr.bf16.mxu0 0
  %49 = vmatpush1.bf16.msra.mxu0 0
  %50 = vmatprep.subr.bf16.mxu0 0
  %51 = vmatpush1.bf16.msra.mxu0 0
  %52 = vmatprep.subr.bf16.mxu0 0
  %53 = vmatpush1.bf16.msra.mxu0 0
  %54 = vmatprep.subr.bf16.mxu0 0
  %55 = vmatpush1.bf16.msra.mxu0 0
  %56 = vmatprep.subr.bf16.mxu0 0
  %57 = vmatpush1.bf16.msra.mxu0 0
  %58 = vmatprep.subr.bf16.mxu0 0
  %59 = vmatpush1.bf16.msra.mxu0 0
  %60 = vmatprep.subr.bf16.mxu0 0
  %61 = vmatpush1.bf16.msra.mxu0 0
  %62 = vmatprep.subr.bf16.mxu0 0
  %63 = vmatpush1.bf16.msra.mxu0 0
  %64 = vmatprep.subr.bf16.mxu0 0
  %65 = vmatpush1.bf16.msra.mxu0 0
  %66 = vmatprep.subr.bf16.mxu0 0
  %67 = vmatpush1.bf16.msra.mxu0 0
  %68 = vmatprep.subr.bf16.mxu0 0
  %69 = vmatpush1.bf16.msra.mxu0 0
  %70 = vmatprep.subr.bf16.mxu0 0
  %71 = vmatpush1.bf16.msra.mxu0 0
  %72 = vmatprep.subr.bf16.mxu0 0
  %73 = vmatpush1.bf16.msra.mxu0 0
  %74 = vmatprep.subr.bf16.mxu0 0
  %75 = vmatpush1.bf16.msra.mxu0 0
  %76 = vmatprep.mubr.bf16.mxu0 0
  %77 = vmatmul.mubr.bf16.gmra.mrb[0].mxu0 %v42
  %v78 = vpop.f32.mrb[0].mxu0
  %v79 = vadd.f32 0.0, %v78
  %v80 = vpop.f32.mrb[0].mxu0
  %v81 = vpop.f32.mrb[0].mxu0
  %v82 = vpop.f32.mrb[0].mxu0
  %83 = vdwg.mxu0
  %v84 = vadd.f32 %v21, %v79
  %85 = vst.msk [vmem:[#allocation2] sm:$0xff] %vm40, %v84
  // Predicated region
  $region18: #{model_forward.40} parent=0 // pred_check
    %p86 = pneg %p15
  $region19: #{model_forward.40} parent=0 // pred_check_branch
    %88 = sbr.rel (%p86) target = $region21
  $region20: #{model_forward.40} parent=0 // pred_region
    %v89 = vld [vmem:[#allocation2] sm:$0xff]
    %v90 = vld [vmem:[%s2] sm:$0x1]
    %v92 = vlaneseq
    %v93 = vshrl.u32 %v92, 7
    %v94 = vsub.s32 0, %v93
    %v95 = vrot.slane %v90, %v94
    %v97 = vadd.f32 %v89, %v95
    %98 = vst.msk [vmem:[%s3] sm:$0xff] %vm40, %v97
  $region21: #{model_forward.40} parent=0 // pred_fallthru
    _
  // Predicated region
  $region22: #{model_forward.40} parent=0 // pred_check
    _
  $region23: #{model_forward.40} parent=0 // pred_check_branch
    %100 = sbr.rel (0) target = $region25
  $region24: #{model_forward.40} parent=0 // pred_region
    _
  $region25: #{model_forward.40} parent=0 // pred_fallthru
    _
  // Predicated region
  $region26: #{model_forward.40} parent=0 // pred_check
    _
  $region27: #{model_forward.40} parent=0 // pred_check_branch
    %102 = sbr.rel (0) target = $region29
  $region28: #{model_forward.40} parent=0 // pred_region
    _
  $region29: #{model_forward.40} parent=0 // pred_fallthru
    _

// kernel: model_forward.41
$region0: #{model_forward.41}
  #allocation0 [shape = 'u32[]', space=smem, size = 0x4, offset = 0x4, fixed_abs, tag = 'smem constant byte address 0x4 - core index']
  #allocation1 [shape = 'u32[144,128]{1,0:T(1,128)}', space=vmem, size = 0x12000, scoped, tag = 'internal scratch']
  %s0 = inlined_call_operand.vmem [shape: f32[8,32], index: 0, kind: input, shape index: {}]
  %s1 = inlined_call_operand.vmem [shape: f32[1,32], index: 1, kind: input, shape index: {}]
  %s2 = inlined_call_operand.vmem [shape: f32[1,32], index: 2, kind: input, shape index: {}]
  %s3 = inlined_call_operand.vmem [shape: bf16[32,96], index: 3, kind: input, shape index: {}]
  %s4 = inlined_call_operand.vmem [shape: f32[1,96], index: 4, kind: input, shape index: {}]
  %s5 = inlined_call_operand.vmem [shape: bf16[8,96], index: 5, kind: output, shape index: {}]
  %s6 = sld [smem:[#allocation0]]
  $region30: #{model_forward.41} parent=0
    _
  %s8 = ssub.s32 1, %s6
  %s9 = scalar_select 0, %s8, %s6
  // Predicated region
  $region2: #{model_forward.41} parent=0 // pred_check
    _
  $region3: #{model_forward.41} parent=0 // pred_check_branch
    %11 = sbr.rel (0) target = $region5
  $region4: #{model_forward.41} parent=0 // pred_region
    _
  $region5: #{model_forward.41} parent=0 // pred_fallthru
    _
  // Predicated region
  $region6: #{model_forward.41} parent=0 // pred_check
    _
  $region7: #{model_forward.41} parent=0 // pred_check_branch
    %13 = sbr.rel (0) target = $region9
  $region8: #{model_forward.41} parent=0 // pred_region
    _
  $region9: #{model_forward.41} parent=0 // pred_fallthru
    _
  // Predicated region
  $region10: #{model_forward.41} parent=0 // pred_check
    _
  $region11: #{model_forward.41} parent=0 // pred_check_branch
    %15 = sbr.rel (0) target = $region13
  $region12: #{model_forward.41} parent=0 // pred_region
    _
  $region13: #{model_forward.41} parent=0 // pred_fallthru
    _
  // Predicated region
  $region14: #{model_forward.41} parent=0 // pred_check
    _
  $region15: #{model_forward.41} parent=0 // pred_check_branch
    %17 = sbr.rel (0) target = $region17
  $region16: #{model_forward.41} parent=0 // pred_region
    _
  $region17: #{model_forward.41} parent=0 // pred_fallthru
    _
  // Predicated region
  $region18: #{model_forward.41} parent=0 // pred_check
    _
  $region19: #{model_forward.41} parent=0 // pred_check_branch
    %19 = sbr.rel (0) target = $region21
  $region20: #{model_forward.41} parent=0 // pred_region
    _
  $region21: #{model_forward.41} parent=0 // pred_fallthru
    _
  %v21 = vld [vmem:[%s0] sm:$0xff]
  %vm22 = vcmask 261120
  %v23 = vsel %vm22, %v21, 0.0
  %24 = vadd.xlane.f32.xlu0 %v23
  %v25 = vpop.xlane.xlu0 %24
  %v26 = vrcp.pop 32.0
  %v27 = vmul.f32 %v25, %v26
  %v28 = vsub.f32 %v21, %v27
  %v29 = vmul.f32 %v28, %v28
  %v30 = vsel %vm22, %v29, 0.0
  %31 = vadd.xlane.f32.xlu0 %v30
  %v32 = vpop.xlane.xlu0 %31
  %v33 = vmul.f32 %v32, %v26
  %v34 = vadd.f32 %v33, 1e-05
  %v35 = vrsqrt.pop %v34
  %v36 = vmul.f32 %v28, %v35
  %v37 = vld [vmem:[%s1] sm:$0x1]
  %v39 = vlaneseq
  %v40 = vshrl.u32 %v39, 7
  %v41 = vsub.s32 0, %v40
  %v42 = vrot.slane %v37, %v41
  %v44 = vmul.f32 %v36, %v42
  %v45 = vld [vmem:[%s2] sm:$0x1]
  %v47 = vlaneseq
  %v48 = vshrl.u32 %v47, 7
  %v49 = vsub.s32 0, %v48
  %v50 = vrot.slane %v45, %v49
  %v52 = vadd.f32 %v44, %v50
  %v53 = vpack.c.bf16 %v52, %v52
  %v54 = vld [vmem:[%s3] sm:$0xf]
  %v55 = vld [vmem:[%s3 + $0x4] sm:$0xf]
  %v56 = vld [vmem:[%s3 + $0x8] sm:$0xf]
  %v57 = vld [vmem:[%s3 + $0xc] sm:$0xf]
  %v58 = vld [vmem:[%s4] sm:$0x1]
  %v60 = vlaneseq
  %v61 = vshrl.u32 %v60, 7
  %v62 = vsub.s32 0, %v61
  %v63 = vrot.slane %v58, %v62
  %v69 = vunpack.c.l.b16 %v54
  %v70 = vunpack.c.l.b16 %v55
  %v71 = vunpack.c.l.b16 %v56
  %v72 = vunpack.c.l.b16 %v57
  %v73 = vpack.c.b16 %v70, %v69
  %v74 = vpack.c.b16 %v72, %v71
  %v78 = vsel %vm22, %v53, 0
  %80 = vmatprep.subr.bf16.mxu0 0
  %81 = vmatpush1.bf16.msra.mxu0 %v73
  %82 = vmatprep.subr.bf16.mxu0 0
  %83 = vmatpush1.bf16.msra.mxu0 %v74
  %84 = vmatprep.subr.bf16.mxu0 0
  %85 = vmatpush1.bf16.msra.mxu0 0
  %86 = vmatprep.subr.bf16.mxu0 0
  %87 = vmatpush1.bf16.msra.mxu0 0
  %88 = vmatprep.subr.bf16.mxu0 0
  %89 = vmatpush1.bf16.msra.mxu0 0
  %90 = vmatprep.subr.bf16.mxu0 0
  %91 = vmatpush1.bf16.msra.mxu0 0
  %92 = vmatprep.subr.bf16.mxu0 0
  %93 = vmatpush1.bf16.msra.mxu0 0
  %94 = vmatprep.subr.bf16.mxu0 0
  %95 = vmatpush1.bf16.msra.mxu0 0
  %96 = vmatprep.subr.bf16.mxu0 0
  %97 = vmatpush1.bf16.msra.mxu0 0
  %98 = vmatprep.subr.bf16.mxu0 0
  %99 = vmatpush1.bf16.msra.mxu0 0
  %100 = vmatprep.subr.bf16.mxu0 0
  %101 = vmatpush1.bf16.msra.mxu0 0
  %102 = vmatprep.subr.bf16.mxu0 0
  %103 = vmatpush1.bf16.msra.mxu0 0
  %104 = vmatprep.subr.bf16.mxu0 0
  %105 = vmatpush1.bf16.msra.mxu0 0
  %106 = vmatprep.subr.bf16.mxu0 0
  %107 = vmatpush1.bf16.msra.mxu0 0
  %108 = vmatprep.subr.bf16.mxu0 0
  %109 = vmatpush1.bf16.msra.mxu0 0
  %110 = vmatprep.subr.bf16.mxu0 0
  %111 = vmatpush1.bf16.msra.mxu0 0
  %112 = vmatprep.mubr.bf16.mxu0 0
  %113 = vmatmul.mubr.bf16.gmra.mrb[0].mxu0 %v78
  %v114 = vpop.f32.mrb[0].mxu0
  %v115 = vadd.f32 %v63, %v114
  %v116 = vpop.f32.mrb[0].mxu0
  %v117 = vpop.f32.mrb[0].mxu0
  %v118 = vpop.f32.mrb[0].mxu0
  %119 = vdwg.mxu0
  %v120 = vpack.c.bf16 %v115, %v115
  %vm121 = vcmask 781312
  %122 = vst.msk [vmem:[%s5] sm:$0xf] %vm121, %v120
  // Predicated region
  $region22: #{model_forward.41} parent=0 // pred_check
    _
  $region23: #{model_forward.41} parent=0 // pred_check_branch
    %124 = sbr.rel (0) target = $region25
  $region24: #{model_forward.41} parent=0 // pred_region
    _
  $region25: #{model_forward.41} parent=0 // pred_fallthru
    _
  // Predicated region
  $region26: #{model_forward.41} parent=0 // pred_check
    _
  $region27: #{model_forward.41} parent=0 // pred_check_branch
    %126 = sbr.rel (0) target = $region29
  $region28: #{model_forward.41} parent=0 // pred_region
    _
  $region29: #{model_forward.41} parent=0 // pred_fallthru
    _

// kernel: model_forward.42
$region0: #{model_forward.42}
  #allocation0 [shape = 'u32[]', space=smem, size = 0x4, offset = 0x4, fixed_abs, tag = 'smem constant byte address 0x4 - core index']
  #allocation1 [shape = 'u32[144,128]{1,0:T(1,128)}', space=vmem, size = 0x12000, scoped, tag = 'internal scratch']
  %s0 = inlined_call_operand.vmem [shape: bf16[2,2,4,16], index: 0, kind: input, shape index: {}]
  %s1 = inlined_call_operand.vmem [shape: bf16[2,2,4,16], index: 1, kind: input, shape index: {}]
  %s2 = inlined_call_operand.vmem [shape: bf16[2,2,4,16], index: 2, kind: input, shape index: {}]
  %s3 = inlined_call_operand.vmem [shape: bf16[2,2,4,16], index: 3, kind: output, shape index: {}]
  %s4 = sld [smem:[#allocation0]]
  $region45: #{model_forward.42} parent=0
    _
  %s6 = ssub.s32 1, %s4
  %s7 = scalar_select 0, %s6, %s4
  loop: start=0, step=1, limit=4
  $region2: #{model_forward.42} parent=0 // loop_pre_header
    _
  $region3: #{model_forward.42} parent=0 // loop_header
    %s9 = sphi 0, %s13
    %p10 = scmp.ge.s32.totalorder %s9, 4
    %s19 = sphi 0, %s21
    %s22 = sphi 0, %s19
    %s23 = sphi 0, %s22
    %s39 = sphi 0, %s23
    %s45 = sphi 0, %s47
    %s48 = sphi 0, %s45
    %s49 = sphi 0, %s48
    %s65 = sphi 0, %s49
    %s71 = sphi 0, %s73
    %s74 = sphi 0, %s71
    %s75 = sphi 0, %s74
    %s91 = sphi 0, %s75
    %s97 = sphi 0, %s99
    %s100 = sphi 0, %s97
    %s101 = sphi 0, %s100
    %s117 = sphi 0, %s101
  $region4: #{model_forward.42} parent=0 // loop_header_branch
    %12 = sbr.rel (%p10) target = $region8
  $region5: #{model_forward.42} parent=0 // loop_body
    %s14 = ssub.s32 %s9, 1
    %s15 = ssub.s32 %s9, 2
    %s16 = sadd.s32 %s9, 1
    %s17 = ssub.s32 %s9, %s16
    %p18 = scmp.eq.s32.totalorder %s17, 0
    %s20 = sadd.s32 %s19, 1
    %s21 = scalar_select %p18, %s19, %s20
    %p24 = pneg %p18
    %p25 = scmp.eq.s32.totalorder %s9, 1
    %p26 = por %p24, %p25
    %p27 = scmp.ne.s32.totalorder %s19, %s22
    %p28 = scmp.eq.s32.totalorder %s9, 0
    %p29 = por %p27, %p28
    %p30 = scmp.ne.s32.totalorder %s19, %s22
    %p31 = scmp.eq.s32.totalorder %s14, 1
    %p32 = por %p30, %p31
    %p33 = scmp.ne.s32.totalorder %s22, %s23
    %p34 = scmp.eq.s32.totalorder %s14, 0
    %p35 = por %p33, %p34
    %p36 = scmp.ne.s32.totalorder %s22, %s23
    %p37 = scmp.eq.s32.totalorder %s15, 1
    %p38 = por %p36, %p37
    %p40 = scmp.ne.s32.totalorder %s23, %s39
    %p41 = scmp.eq.s32.totalorder %s15, 0
    %p42 = por %p40, %p41
    %s43 = ssub.s32 %s9, %s16
    %p44 = scmp.eq.s32.totalorder %s43, 0
    %s46 = sadd.s32 %s45, 1
    %s47 = scalar_select %p44, %s45, %s46
    %p50 = pneg %p44
    %p51 = scmp.eq.s32.totalorder %s9, 1
    %p52 = por %p50, %p51
    %p53 = scmp.ne.s32.totalorder %s45, %s48
    %p54 = scmp.eq.s32.totalorder %s9, 0
    %p55 = por %p53, %p54
    %p56 = scmp.ne.s32.totalorder %s45, %s48
    %p57 = scmp.eq.s32.totalorder %s14, 1
    %p58 = por %p56, %p57
    %p59 = scmp.ne.s32.totalorder %s48, %s49
    %p60 = scmp.eq.s32.totalorder %s14, 0
    %p61 = por %p59, %p60
    %p62 = scmp.ne.s32.totalorder %s48, %s49
    %p63 = scmp.eq.s32.totalorder %s15, 1
    %p64 = por %p62, %p63
    %p66 = scmp.ne.s32.totalorder %s49, %s65
    %p67 = scmp.eq.s32.totalorder %s15, 0
    %p68 = por %p66, %p67
    %s69 = ssub.s32 %s9, %s16
    %p70 = scmp.eq.s32.totalorder %s69, 0
    %s72 = sadd.s32 %s71, 1
    %s73 = scalar_select %p70, %s71, %s72
    %p76 = pneg %p70
    %p77 = scmp.eq.s32.totalorder %s9, 1
    %p78 = por %p76, %p77
    %p79 = scmp.ne.s32.totalorder %s71, %s74
    %p80 = scmp.eq.s32.totalorder %s9, 0
    %p81 = por %p79, %p80
    %p82 = scmp.ne.s32.totalorder %s71, %s74
    %p83 = scmp.eq.s32.totalorder %s14, 1
    %p84 = por %p82, %p83
    %p85 = scmp.ne.s32.totalorder %s74, %s75
    %p86 = scmp.eq.s32.totalorder %s14, 0
    %p87 = por %p85, %p86
    %p88 = scmp.ne.s32.totalorder %s74, %s75
    %p89 = scmp.eq.s32.totalorder %s15, 1
    %p90 = por %p88, %p89
    %p92 = scmp.ne.s32.totalorder %s75, %s91
    %p93 = scmp.eq.s32.totalorder %s15, 0
    %p94 = por %p92, %p93
    %s95 = ssub.s32 %s9, %s16
    %p96 = scmp.eq.s32.totalorder %s95, 0
    %s98 = sadd.s32 %s97, 1
    %s99 = scalar_select %p96, %s97, %s98
    %p102 = pneg %p96
    %p103 = scmp.eq.s32.totalorder %s9, 1
    %p104 = por %p102, %p103
    %p105 = scmp.ne.s32.totalorder %s97, %s100
    %p106 = scmp.eq.s32.totalorder %s9, 0
    %p107 = por %p105, %p106
    %p108 = scmp.ne.s32.totalorder %s97, %s100
    %p109 = scmp.eq.s32.totalorder %s14, 1
    %p110 = por %p108, %p109
    %p111 = scmp.ne.s32.totalorder %s100, %s101
    %p112 = scmp.eq.s32.totalorder %s14, 0
    %p113 = por %p111, %p112
    %p114 = scmp.ne.s32.totalorder %s100, %s101
    %p115 = scmp.eq.s32.totalorder %s15, 1
    %p116 = por %p114, %p115
    %p118 = scmp.ne.s32.totalorder %s101, %s117
    %p119 = scmp.eq.s32.totalorder %s15, 0
    %p120 = por %p118, %p119
    %p121 = scmp.le.s32.totalorder 1, %s9
    %p122 = scmp.lt.s32.totalorder %s9, 3
    %p123 = pnand %p121, %p122
    %p124 = pneg %p123
    // Predicated region
    $region9: #{model_forward.42} parent=5 // pred_check
      _
    $region10: #{model_forward.42} parent=5 // pred_check_branch
      %126 = sbr.rel (%p123) target = $region12
    $region11: #{model_forward.42} parent=5 // pred_region
      %s127 = ssub.s32 %s9, 1
    $region12: #{model_forward.42} parent=5 // pred_fallthru
      _
    %p128 = scmp.lt.s32.totalorder %s9, 2
    // Predicated region
    $region13: #{model_forward.42} parent=5 // pred_check
      %p129 = pneg %p128
    $region14: #{model_forward.42} parent=5 // pred_check_branch
      %131 = sbr.rel (%p129) target = $region16
    $region15: #{model_forward.42} parent=5 // pred_region
      // Predicated region
      $region17: #{model_forward.42} parent=15 // pred_check
        %p132 = pneg %p29
      $region18: #{model_forward.42} parent=15 // pred_check_branch
        %134 = sbr.rel (%p132) target = $region20
      $region19: #{model_forward.42} parent=15 // pred_region
        %p135 = scmp.lt.s32.totalorder %s9, 1
        %s136 = scalar_select %p135, %s9, 1
        %s137 = smul.addr %s136, 2
        %s138 = smul.addr %s137, 2
        %s139 = scalar_lea.vmem %s0, %s138
      $region20: #{model_forward.42} parent=15 // pred_fallthru
        _
      // Predicated region
      $region21: #{model_forward.42} parent=15 // pred_check
        %p140 = pneg %p55
      $region22: #{model_forward.42} parent=15 // pred_check_branch
        %142 = sbr.rel (%p140) target = $region24
      $region23: #{model_forward.42} parent=15 // pred_region
        %p143 = scmp.lt.s32.totalorder %s9, 1
        %s144 = scalar_select %p143, %s9, 1
        %s145 = smul.addr %s144, 2
        %s146 = smul.addr %s145, 2
        %s147 = scalar_lea.vmem %s1, %s146
      $region24: #{model_forward.42} parent=15 // pred_fallthru
        _
      // Predicated region
      $region25: #{model_forward.42} parent=15 // pred_check
        %p148 = pneg %p81
      $region26: #{model_forward.42} parent=15 // pred_check_branch
        %150 = sbr.rel (%p148) target = $region28
      $region27: #{model_forward.42} parent=15 // pred_region
        %p151 = scmp.lt.s32.totalorder %s9, 1
        %s152 = scalar_select %p151, %s9, 1
        %s153 = smul.addr %s152, 2
        %s154 = smul.addr %s153, 2
        %s155 = scalar_lea.vmem %s2, %s154
      $region28: #{model_forward.42} parent=15 // pred_fallthru
        _
    $region16: #{model_forward.42} parent=5 // pred_fallthru
      _
    %p156 = scmp.le.s32.totalorder 1, %s9
    %p157 = scmp.lt.s32.totalorder %s9, 3
    %p158 = pnand %p156, %p157
    %p159 = pneg %p158
    // Predicated region
    $region29: #{model_forward.42} parent=5 // pred_check
      _
    $region30: #{model_forward.42} parent=5 // pred_check_branch
      %161 = sbr.rel (%p158) target = $region32
    $region31: #{model_forward.42} parent=5 // pred_region
      %s162 = ssub.s32 %s9, 1
      %p163 = scmp.lt.s32.totalorder %s14, 1
      %s164 = scalar_select %p163, %s14, 1
      %s165 = smul.addr %s164, 2
      %s166 = smul.addr %s165, 2
      %s167 = scalar_lea.vmem %s0, %s166
      %p168 = pneg %p35
      %p169 = pneg %p32
      %p170 = scmp.lt.s32.totalorder %s14, 1
      %s171 = scalar_select %p170, %s14, 1
      %s172 = smul.addr %s171, 2
      %s173 = smul.addr %s172, 2
      %s174 = scalar_lea.vmem %s1, %s173
      %p175 = pneg %p61
      %p176 = pneg %p58
      %p177 = scmp.lt.s32.totalorder %s14, 1
      %s178 = scalar_select %p177, %s14, 1
      %s179 = smul.addr %s178, 2
      %s180 = smul.addr %s179, 2
      %s181 = scalar_lea.vmem %s2, %s180
      %p182 = pneg %p87
      %p183 = pneg %p84
      %p184 = pneg %p113
      %p185 = pneg %p110
      %p186 = scmp.lt.s32.totalorder %s14, 1
      %s187 = scalar_select %p186, %s14, 1
      %s188 = smul.addr %s187, 2
      %s189 = smul.addr %s188, 2
      %s190 = scalar_lea.vmem %s3, %s189
      %p191 = scmp.lt.s32.totalorder %s14, 1
      %s192 = scalar_select %p191, %s14, 1
      %s193 = smul.addr %s192, 2
      %s194 = smul.addr %s193, 2
      %s195 = scalar_lea.vmem %s0, %s194
      %p196 = scmp.lt.s32.totalorder %s14, 1
      %s197 = scalar_select %p196, %s14, 1
      %s198 = smul.addr %s197, 2
      %s199 = smul.addr %s198, 2
      %s200 = scalar_lea.vmem %s1, %s199
      %p201 = scmp.lt.s32.totalorder %s14, 1
      %s202 = scalar_select %p201, %s14, 1
      %s203 = smul.addr %s202, 2
      %s204 = smul.addr %s203, 2
      %s205 = scalar_lea.vmem %s2, %s204
      %p206 = scmp.lt.s32.totalorder %s14, 1
      %s207 = scalar_select %p206, %s14, 1
      %s208 = smul.addr %s207, 2
      %s209 = smul.addr %s208, 2
      %s210 = scalar_lea.vmem %s3, %s209
      %v212 = vld [vmem:[%s195] sm:$0x3]
      %v213 = vld [vmem:[%s195 + $0x2] sm:$0x3]
      %v214 = vld [vmem:[%s200] sm:$0x3]
      %v215 = vld [vmem:[%s200 + $0x2] sm:$0x3]
      %v216 = vld [vmem:[%s205] sm:$0x3]
      %v217 = vld [vmem:[%s205 + $0x2] sm:$0x3]
      %vm218 = vcmask 130048
      %v220 = vsel %vm218, %v212, 0
      %v223 = vsel %vm218, %v214, 0
      %225 = vmatprep.subr.bf16.mxu0 0
      %226 = vmatpush1.bf16.xpose.msra.mxu0 %v223
      %227 = vmatprep.subr.bf16.mxu0 0
      %228 = vmatpush1.bf16.xpose.msra.mxu0 0
      %229 = vmatprep.subr.bf16.mxu0 0
      %230 = vmatpush1.bf16.xpose.msra.mxu0 0
      %231 = vmatprep.subr.bf16.mxu0 0
      %232 = vmatpush1.bf16.xpose.msra.mxu0 0
      %233 = vmatprep.subr.bf16.mxu0 0
      %234 = vmatpush1.bf16.xpose.msra.mxu0 0
      %235 = vmatprep.subr.bf16.mxu0 0
      %236 = vmatpush1.bf16.xpose.msra.mxu0 0
      %237 = vmatprep.subr.bf16.mxu0 0
      %238 = vmatpush1.bf16.xpose.msra.mxu0 0
      %239 = vmatprep.subr.bf16.mxu0 0
      %240 = vmatpush1.bf16.xpose.msra.mxu0 0
      %241 = vmatprep.subr.bf16.mxu0 0
      %242 = vmatpush1.bf16.xpose.msra.mxu0 0
      %243 = vmatprep.subr.bf16.mxu0 0
      %244 = vmatpush1.bf16.xpose.msra.mxu0 0
      %245 = vmatprep.subr.bf16.mxu0 0
      %246 = vmatpush1.bf16.xpose.msra.mxu0 0
      %247 = vmatprep.subr.bf16.mxu0 0
      %248 = vmatpush1.bf16.xpose.msra.mxu0 0
      %249 = vmatprep.subr.bf16.mxu0 0
      %250 = vmatpush1.bf16.xpose.msra.mxu0 0
      %251 = vmatprep.subr.bf16.mxu0 0
      %252 = vmatpush1.bf16.xpose.msra.mxu0 0
      %253 = vmatprep.subr.bf16.mxu0 0
      %254 = vmatpush1.bf16.xpose.msra.mxu0 0
      %255 = vmatprep.subr.bf16.mxu0 0
      %256 = vmatpush1.bf16.xpose.msra.mxu0 0
      %257 = vmatprep.mubr.bf16.mxu0 0
      %258 = vmatmul.mubr.bf16.gmra.mrb[0].mxu0 %v220
      %v259 = vpop.f32.mrb[0].mxu0
      %v260 = vadd.f32 0.0, %v259
      %v261 = vpop.f32.mrb[0].mxu0
      %v262 = vpop.f32.mrb[0].mxu0
      %v263 = vpop.f32.mrb[0].mxu0
      %264 = vdwg.mxu0
      %v266 = vsel %vm218, %v213, 0
      %v269 = vsel %vm218, %v215, 0
      %271 = vmatprep.subr.bf16.mxu0 0
      %272 = vmatpush1.bf16.xpose.msra.mxu0 %v269
      %273 = vmatprep.subr.bf16.mxu0 0
      %274 = vmatpush1.bf16.xpose.msra.mxu0 0
      %275 = vmatprep.subr.bf16.mxu0 0
      %276 = vmatpush1.bf16.xpose.msra.mxu0 0
      %277 = vmatprep.subr.bf16.mxu0 0
      %278 = vmatpush1.bf16.xpose.msra.mxu0 0
      %279 = vmatprep.subr.bf16.mxu0 0
      %280 = vmatpush1.bf16.xpose.msra.mxu0 0
      %281 = vmatprep.subr.bf16.mxu0 0
      %282 = vmatpush1.bf16.xpose.msra.mxu0 0
      %283 = vmatprep.subr.bf16.mxu0 0
      %284 = vmatpush1.bf16.xpose.msra.mxu0 0
      %285 = vmatprep.subr.bf16.mxu0 0
      %286 = vmatpush1.bf16.xpose.msra.mxu0 0
      %287 = vmatprep.subr.bf16.mxu0 0
      %288 = vmatpush1.bf16.xpose.msra.mxu0 0
      %289 = vmatprep.subr.bf16.mxu0 0
      %290 = vmatpush1.bf16.xpose.msra.mxu0 0
      %291 = vmatprep.subr.bf16.mxu0 0
      %292 = vmatpush1.bf16.xpose.msra.mxu0 0
      %293 = vmatprep.subr.bf16.mxu0 0
      %294 = vmatpush1.bf16.xpose.msra.mxu0 0
      %295 = vmatprep.subr.bf16.mxu0 0
      %296 = vmatpush1.bf16.xpose.msra.mxu0 0
      %297 = vmatprep.subr.bf16.mxu0 0
      %298 = vmatpush1.bf16.xpose.msra.mxu0 0
      %299 = vmatprep.subr.bf16.mxu0 0
      %300 = vmatpush1.bf16.xpose.msra.mxu0 0
      %301 = vmatprep.subr.bf16.mxu0 0
      %302 = vmatpush1.bf16.xpose.msra.mxu0 0
      %303 = vmatprep.mubr.bf16.mxu0 0
      %304 = vmatmul.mubr.bf16.gmra.mrb[0].mxu0 %v266
      %v305 = vpop.f32.mrb[0].mxu0
      %v306 = vadd.f32 0.0, %v305
      %v307 = vpop.f32.mrb[0].mxu0
      %v308 = vpop.f32.mrb[0].mxu0
      %v309 = vpop.f32.mrb[0].mxu0
      %310 = vdwg.mxu0
      %v311 = vmul.f32 %v260, 0.25
      %v312 = vmul.f32 %v306, 0.25
      %v313 = vlaneseq
      %v314 = vshrl.u32 %v313, 7
      %v315 = vlaneseq
      %v316 = vand.u32 %v315, 127
      %vm317 = vcmp.le.s32.totalorder %v316, %v314
      %v318 = vsel %vm317, 1, 0
      %vm319 = vcmp.eq.s32.totalorder %v318, 1
      %v320 = vsel %vm319, %v311, -1e+30
      %v321 = vsel %vm319, %v312, -1e+30
      %vm322 = vcmask 27648
      %v323 = vsel %vm322, %v320, -inf
      %324 = vmax.xlane.f32.xlu0 %v323
      %v325 = vpop.xlane.xlu0 %324
      %v326 = vsel %vm322, %v321, -inf
      %327 = vmax.xlane.f32.xlu0 %v326
      %v328 = vpop.xlane.xlu0 %327
      %v329 = vsub.f32 %v320, %v325
      %v330 = vsub.f32 %v321, %v328
      %v331 = vmul.f32 %v329, 1.442695
      %v332 = vpow.pop %v331
      %v333 = vmul.f32 %v330, 1.442695
      %v334 = vpow.pop %v333
      %v335 = vsel %vm322, %v332, 0.0
      %336 = vadd.xlane.f32.xlu0 %v335
      %v337 = vpop.xlane.xlu0 %336
      %v338 = vsel %vm322, %v334, 0.0
      %339 = vadd.xlane.f32.xlu0 %v338
      %v340 = vpop.xlane.xlu0 %339
      %v341 = vrcp.pop %v337
      %v342 = vrcp.pop %v340
      %v343 = vmul.f32 %v332, %v341
      %v344 = vmul.f32 %v334, %v342
      %v345 = vpack.c.bf16 %v343, %v343
      %v346 = vpack.c.bf16 %v344, %v344
      %vm347 = vcmask 31744
      %v349 = vsel %vm347, %v345, 0
      %vm351 = vcmask 1041408
      %v353 = vsel %vm351, %v216, 0
      %355 = vmatprep.subr.bf16.mxu0 0
      %356 = vmatpush1.bf16.msra.mxu0 %v353
      %357 = vmatprep.subr.bf16.mxu0 0
      %358 = vmatpush1.bf16.msra.mxu0 0
      %359 = vmatprep.subr.bf16.mxu0 0
      %360 = vmatpush1.bf16.msra.mxu0 0
      %361 = vmatprep.subr.bf16.mxu0 0
      %362 = vmatpush1.bf16.msra.mxu0 0
      %363 = vmatprep.subr.bf16.mxu0 0
      %364 = vmatpush1.bf16.msra.mxu0 0
      %365 = vmatprep.subr.bf16.mxu0 0
      %366 = vmatpush1.bf16.msra.mxu0 0
      %367 = vmatprep.subr.bf16.mxu0 0
      %368 = vmatpush1.bf16.msra.mxu0 0
      %369 = vmatprep.subr.bf16.mxu0 0
      %370 = vmatpush1.bf16.msra.mxu0 0
      %371 = vmatprep.subr.bf16.mxu0 0
      %372 = vmatpush1.bf16.msra.mxu0 0
      %373 = vmatprep.subr.bf16.mxu0 0
      %374 = vmatpush1.bf16.msra.mxu0 0
      %375 = vmatprep.subr.bf16.mxu0 0
      %376 = vmatpush1.bf16.msra.mxu0 0
      %377 = vmatprep.subr.bf16.mxu0 0
      %378 = vmatpush1.bf16.msra.mxu0 0
      %379 = vmatprep.subr.bf16.mxu0 0
      %380 = vmatpush1.bf16.msra.mxu0 0
      %381 = vmatprep.subr.bf16.mxu0 0
      %382 = vmatpush1.bf16.msra.mxu0 0
      %383 = vmatprep.subr.bf16.mxu0 0
      %384 = vmatpush1.bf16.msra.mxu0 0
      %385 = vmatprep.subr.bf16.mxu0 0
      %386 = vmatpush1.bf16.msra.mxu0 0
      %387 = vmatprep.mubr.bf16.mxu0 0
      %388 = vmatmul.mubr.bf16.gmra.mrb[0].mxu0 %v349
      %v389 = vpop.f32.mrb[0].mxu0
      %v390 = vadd.f32 0.0, %v389
      %v391 = vpop.f32.mrb[0].mxu0
      %v392 = vpop.f32.mrb[0].mxu0
      %v393 = vpop.f32.mrb[0].mxu0
      %394 = vdwg.mxu0
      %v396 = vsel %vm347, %v346, 0
      %v399 = vsel %vm351, %v217, 0
      %401 = vmatprep.subr.bf16.mxu0 0
      %402 = vmatpush1.bf16.msra.mxu0 %v399
      %403 = vmatprep.subr.bf16.mxu0 0
      %404 = vmatpush1.bf16.msra.mxu0 0
      %405 = vmatprep.subr.bf16.mxu0 0
      %406 = vmatpush1.bf16.msra.mxu0 0
      %407 = vmatprep.subr.bf16.mxu0 0
      %408 = vmatpush1.bf16.msra.mxu0 0
      %409 = vmatprep.subr.bf16.mxu0 0
      %410 = vmatpush1.bf16.msra.mxu0 0
      %411 = vmatprep.subr.bf16.mxu0 0
      %412 = vmatpush1.bf16.msra.mxu0 0
      %413 = vmatprep.subr.bf16.mxu0 0
      %414 = vmatpush1.bf16.msra.mxu0 0
      %415 = vmatprep.subr.bf16.mxu0 0
      %416 = vmatpush1.bf16.msra.mxu0 0
      %417 = vmatprep.subr.bf16.mxu0 0
      %418 = vmatpush1.bf16.msra.mxu0 0
      %419 = vmatprep.subr.bf16.mxu0 0
      %420 = vmatpush1.bf16.msra.mxu0 0
      %421 = vmatprep.subr.bf16.mxu0 0
      %422 = vmatpush1.bf16.msra.mxu0 0
      %423 = vmatprep.subr.bf16.mxu0 0
      %424 = vmatpush1.bf16.msra.mxu0 0
      %425 = vmatprep.subr.bf16.mxu0 0
      %426 = vmatpush1.bf16.msra.mxu0 0
      %427 = vmatprep.subr.bf16.mxu0 0
      %428 = vmatpush1.bf16.msra.mxu0 0
      %429 = vmatprep.subr.bf16.mxu0 0
      %430 = vmatpush1.bf16.msra.mxu0 0
      %431 = vmatprep.subr.bf16.mxu0 0
      %432 = vmatpush1.bf16.msra.mxu0 0
      %433 = vmatprep.mubr.bf16.mxu0 0
      %434 = vmatmul.mubr.bf16.gmra.mrb[0].mxu0 %v396
      %v435 = vpop.f32.mrb[0].mxu0
      %v436 = vadd.f32 0.0, %v435
      %v437 = vpop.f32.mrb[0].mxu0
      %v438 = vpop.f32.mrb[0].mxu0
      %v439 = vpop.f32.mrb[0].mxu0
      %440 = vdwg.mxu0
      %v441 = vpack.c.bf16 %v390, %v390
      %v442 = vpack.c.bf16 %v436, %v436
      %vm443 = vcmask 123904
      %444 = vst.msk [vmem:[%s210] sm:$0x3] %vm443, %v441
      %445 = vst.msk [vmem:[%s210 + $0x2] sm:$0x3] %vm443, %v442
      %p446 = scmp.lt.s32.totalorder %s14, 1
      %s447 = scalar_select %p446, %s14, 1
      %s448 = smul.addr %s447, 2
      %s449 = smul.addr %s448, 2
      %s450 = scalar_lea.vmem %s3, %s449
      // Predicated region
      $region33: #{model_forward.42} parent=31 // pred_check
        %p451 = pneg %p110
      $region34: #{model_forward.42} parent=31 // pred_check_branch
        %453 = sbr.rel (%p451) target = $region36
      $region35: #{model_forward.42} parent=31 // pred_region
        _
      $region36: #{model_forward.42} parent=31 // pred_fallthru
        _
    $region32: #{model_forward.42} parent=5 // pred_fallthru
      _
    %p454 = scmp.le.s32.totalorder 2, %s9
    // Predicated region
    $region37: #{model_forward.42} parent=5 // pred_check
      %p455 = pneg %p454
    $region38: #{model_forward.42} parent=5 // pred_check_branch
      %457 = sbr.rel (%p455) target = $region40
    $region39: #{model_forward.42} parent=5 // pred_region
      %s458 = ssub.s32 %s9, 2
      // Predicated region
      $region41: #{model_forward.42} parent=39 // pred_check
        %p459 = pneg %p116
      $region42: #{model_forward.42} parent=39 // pred_check_branch
        %461 = sbr.rel (%p459) target = $region44
      $region43: #{model_forward.42} parent=39 // pred_region
        %p462 = scmp.lt.s32.totalorder %s15, 1
        %s463 = scalar_select %p462, %s15, 1
        %s464 = smul.addr %s463, 2
        %s465 = smul.addr %s464, 2
        %s466 = scalar_lea.vmem %s3, %s465
      $region44: #{model_forward.42} parent=39 // pred_fallthru
        _
    $region40: #{model_forward.42} parent=5 // pred_fallthru
      _
  $region6: #{model_forward.42} parent=0 // loop_footer
    %s13 = sadd.s32 1, %s9
  $region7: #{model_forward.42} parent=0 // loop_footer_branch
    %8 = sbr.rel target = $region3
  $region8: #{model_forward.42} parent=0 // loop_exit
    _

// kernel: model_forward.44
$region0: #{model_forward.44}
  #allocation0 [shape = 'u32[]', space=smem, size = 0x4, offset = 0x4, fixed_abs, tag = 'smem constant byte address 0x4 - core index']
  #allocation1 [shape = 'u32[144,128]{1,0:T(1,128)}', space=vmem, size = 0x12000, scoped, tag = 'internal scratch']
  %s0 = inlined_call_operand.vmem [shape: f32[8,32], index: 0, kind: input, shape index: {}]
  %s1 = inlined_call_operand.vmem [shape: f32[1,32], index: 1, kind: input, shape index: {}]
  %s2 = inlined_call_operand.vmem [shape: f32[1,32], index: 2, kind: input, shape index: {}]
  %s3 = inlined_call_operand.vmem [shape: bf16[32,128], index: 3, kind: input, shape index: {}]
  %s4 = inlined_call_operand.vmem [shape: f32[1,128], index: 4, kind: input, shape index: {}]
  %s5 = inlined_call_operand.vmem [shape: bf16[8,128], index: 5, kind: output, shape index: {}]
  %s6 = sld [smem:[#allocation0]]
  $region30: #{model_forward.44} parent=0
    _
  %s8 = ssub.s32 1, %s6
  %s9 = scalar_select 0, %s8, %s6
  // Predicated region
  $region2: #{model_forward.44} parent=0 // pred_check
    _
  $region3: #{model_forward.44} parent=0 // pred_check_branch
    %11 = sbr.rel (0) target = $region5
  $region4: #{model_forward.44} parent=0 // pred_region
    _
  $region5: #{model_forward.44} parent=0 // pred_fallthru
    _
  // Predicated region
  $region6: #{model_forward.44} parent=0 // pred_check
    _
  $region7: #{model_forward.44} parent=0 // pred_check_branch
    %13 = sbr.rel (0) target = $region9
  $region8: #{model_forward.44} parent=0 // pred_region
    _
  $region9: #{model_forward.44} parent=0 // pred_fallthru
    _
  // Predicated region
  $region10: #{model_forward.44} parent=0 // pred_check
    _
  $region11: #{model_forward.44} parent=0 // pred_check_branch
    %15 = sbr.rel (0) target = $region13
  $region12: #{model_forward.44} parent=0 // pred_region
    _
  $region13: #{model_forward.44} parent=0 // pred_fallthru
    _
  // Predicated region
  $region14: #{model_forward.44} parent=0 // pred_check
    _
  $region15: #{model_forward.44} parent=0 // pred_check_branch
    %17 = sbr.rel (0) target = $region17
  $region16: #{model_forward.44} parent=0 // pred_region
    _
  $region17: #{model_forward.44} parent=0 // pred_fallthru
    _
  // Predicated region
  $region18: #{model_forward.44} parent=0 // pred_check
    _
  $region19: #{model_forward.44} parent=0 // pred_check_branch
    %19 = sbr.rel (0) target = $region21
  $region20: #{model_forward.44} parent=0 // pred_region
    _
  $region21: #{model_forward.44} parent=0 // pred_fallthru
    _
  %v21 = vld [vmem:[%s0] sm:$0xff]
  %vm22 = vcmask 261120
  %v23 = vsel %vm22, %v21, 0.0
  %24 = vadd.xlane.f32.xlu0 %v23
  %v25 = vpop.xlane.xlu0 %24
  %v26 = vrcp.pop 32.0
  %v27 = vmul.f32 %v25, %v26
  %v28 = vsub.f32 %v21, %v27
  %v29 = vmul.f32 %v28, %v28
  %v30 = vsel %vm22, %v29, 0.0
  %31 = vadd.xlane.f32.xlu0 %v30
  %v32 = vpop.xlane.xlu0 %31
  %v33 = vmul.f32 %v32, %v26
  %v34 = vadd.f32 %v33, 1e-05
  %v35 = vrsqrt.pop %v34
  %v36 = vmul.f32 %v28, %v35
  %v37 = vld [vmem:[%s1] sm:$0x1]
  %v39 = vlaneseq
  %v40 = vshrl.u32 %v39, 7
  %v41 = vsub.s32 0, %v40
  %v42 = vrot.slane %v37, %v41
  %v44 = vmul.f32 %v36, %v42
  %v45 = vld [vmem:[%s2] sm:$0x1]
  %v47 = vlaneseq
  %v48 = vshrl.u32 %v47, 7
  %v49 = vsub.s32 0, %v48
  %v50 = vrot.slane %v45, %v49
  %v52 = vadd.f32 %v44, %v50
  %v53 = vpack.c.bf16 %v52, %v52
  %v54 = vld [vmem:[%s3] sm:$0xf]
  %v55 = vld [vmem:[%s3 + $0x4] sm:$0xf]
  %v56 = vld [vmem:[%s3 + $0x8] sm:$0xf]
  %v57 = vld [vmem:[%s3 + $0xc] sm:$0xf]
  %v58 = vld [vmem:[%s4] sm:$0x1]
  %v60 = vlaneseq
  %v61 = vshrl.u32 %v60, 7
  %v62 = vsub.s32 0, %v61
  %v63 = vrot.slane %v58, %v62
  %v69 = vunpack.c.l.b16 %v54
  %v70 = vunpack.c.l.b16 %v55
  %v71 = vunpack.c.l.b16 %v56
  %v72 = vunpack.c.l.b16 %v57
  %v73 = vpack.c.b16 %v70, %v69
  %v74 = vpack.c.b16 %v72, %v71
  %v78 = vsel %vm22, %v53, 0
  %80 = vmatprep.subr.bf16.mxu0 0
  %81 = vmatpush1.bf16.msra.mxu0 %v73
  %82 = vmatprep.subr.bf16.mxu0 0
  %83 = vmatpush1.bf16.msra.mxu0 %v74
  %84 = vmatprep.subr.bf16.mxu0 0
  %85 = vmatpush1.bf16.msra.mxu0 0
  %86 = vmatprep.subr.bf16.mxu0 0
  %87 = vmatpush1.bf16.msra.mxu0 0
  %88 = vmatprep.subr.bf16.mxu0 0
  %89 = vmatpush1.bf16.msra.mxu0 0
  %90 = vmatprep.subr.bf16.mxu0 0
  %91 = vmatpush1.bf16.msra.mxu0 0
  %92 = vmatprep.subr.bf16.mxu0 0
  %93 = vmatpush1.bf16.msra.mxu0 0
  %94 = vmatprep.subr.bf16.mxu0 0
  %95 = vmatpush1.bf16.msra.mxu0 0
  %96 = vmatprep.subr.bf16.mxu0 0
  %97 = vmatpush1.bf16.msra.mxu0 0
  %98 = vmatprep.subr.bf16.mxu0 0
  %99 = vmatpush1.bf16.msra.mxu0 0
  %100 = vmatprep.subr.bf16.mxu0 0
  %101 = vmatpush1.bf16.msra.mxu0 0
  %102 = vmatprep.subr.bf16.mxu0 0
  %103 = vmatpush1.bf16.msra.mxu0 0
  %104 = vmatprep.subr.bf16.mxu0 0
  %105 = vmatpush1.bf16.msra.mxu0 0
  %106 = vmatprep.subr.bf16.mxu0 0
  %107 = vmatpush1.bf16.msra.mxu0 0
  %108 = vmatprep.subr.bf16.mxu0 0
  %109 = vmatpush1.bf16.msra.mxu0 0
  %110 = vmatprep.subr.bf16.mxu0 0
  %111 = vmatpush1.bf16.msra.mxu0 0
  %112 = vmatprep.mubr.bf16.mxu0 0
  %113 = vmatmul.mubr.bf16.gmra.mrb[0].mxu0 %v78
  %v114 = vpop.f32.mrb[0].mxu0
  %v115 = vadd.f32 %v63, %v114
  %v116 = vpop.f32.mrb[0].mxu0
  %v117 = vpop.f32.mrb[0].mxu0
  %v118 = vpop.f32.mrb[0].mxu0
  %119 = vdwg.mxu0
  %v120 = vmul.f32 %v115, 0.5
  %v121 = vmul.f32 %v115, 0.044715
  %v122 = vmul.f32 %v121, %v115
  %v123 = vmul.f32 %v122, %v115
  %v124 = vadd.f32 %v115, %v123
  %v125 = vmul.f32 %v124, 0.7978846
  %v126 = vtanh.pop %v125
  %v127 = vadd.f32 %v126, 1.0
  %v128 = vmul.f32 %v120, %v127
  %v129 = vpack.c.bf16 %v128, %v128
  %130 = vst [vmem:[%s5] sm:$0xf] %v129
  // Predicated region
  $region22: #{model_forward.44} parent=0 // pred_check
    _
  $region23: #{model_forward.44} parent=0 // pred_check_branch
    %132 = sbr.rel (0) target = $region25
  $region24: #{model_forward.44} parent=0 // pred_region
    _
  $region25: #{model_forward.44} parent=0 // pred_fallthru
    _
  // Predicated region
  $region26: #{model_forward.44} parent=0 // pred_check
    _
  $region27: #{model_forward.44} parent=0 // pred_check_branch
    %134 = sbr.rel (0) target = $region29
  $region28: #{model_forward.44} parent=0 // pred_region
    _
  $region29: #{model_forward.44} parent=0 // pred_fallthru
    _

// kernel: model_forward.43
$region0: #{model_forward.43}
  #allocation0 [shape = 'u32[]', space=smem, size = 0x4, offset = 0x4, fixed_abs, tag = 'smem constant byte address 0x4 - core index']
  #allocation1 [shape = 'u32[144,128]{1,0:T(1,128)}', space=vmem, size = 0x12000, scoped, tag = 'internal scratch']
  #allocation2 [shape = 'f32[8,32]{1,0:T(8,128)}', space=vmem, size = 0x1000, scoped, tag = 'scratch operand']
  %s0 = inlined_call_operand.vmem [shape: bf16[8,32], index: 0, kind: input, shape index: {}]
  %s1 = inlined_call_operand.vmem [shape: bf16[32,32], index: 1, kind: input, shape index: {}]
  %s2 = inlined_call_operand.vmem [shape: f32[1,32], index: 2, kind: input, shape index: {}]
  %s3 = inlined_call_operand.vmem [shape: f32[8,32], index: 3, kind: input, shape index: {}]
  %s4 = inlined_call_operand.vmem [shape: f32[8,32], index: 4, kind: output, shape index: {}]
  %s5 = sld [smem:[#allocation0]]
  $region34: #{model_forward.43} parent=0
    _
  %s7 = ssub.s32 1, %s5
  %s8 = scalar_select 0, %s7, %s5
  // Predicated region
  $region2: #{model_forward.43} parent=0 // pred_check
    _
  $region3: #{model_forward.43} parent=0 // pred_check_branch
    %10 = sbr.rel (0) target = $region5
  $region4: #{model_forward.43} parent=0 // pred_region
    _
  $region5: #{model_forward.43} parent=0 // pred_fallthru
    _
  // Predicated region
  $region6: #{model_forward.43} parent=0 // pred_check
    _
  $region7: #{model_forward.43} parent=0 // pred_check_branch
    %12 = sbr.rel (0) target = $region9
  $region8: #{model_forward.43} parent=0 // pred_region
    _
  $region9: #{model_forward.43} parent=0 // pred_fallthru
    _
  // Predicated region
  $region10: #{model_forward.43} parent=0 // pred_check
    _
  $region11: #{model_forward.43} parent=0 // pred_check_branch
    %14 = sbr.rel (0) target = $region13
  $region12: #{model_forward.43} parent=0 // pred_region
    _
  $region13: #{model_forward.43} parent=0 // pred_fallthru
    _
  // Predicated region
  $region14: #{model_forward.43} parent=0 // pred_check
    _
  $region15: #{model_forward.43} parent=0 // pred_check_branch
    %16 = sbr.rel (0) target = $region17
  $region16: #{model_forward.43} parent=0 // pred_region
    _
  $region17: #{model_forward.43} parent=0 // pred_fallthru
    _
  %p18 = scmp.eq.s32.totalorder 0, 0
  // Predicated region
  $region18: #{model_forward.43} parent=0 // pred_check
    %p19 = pneg %p18
  $region19: #{model_forward.43} parent=0 // pred_check_branch
    %21 = sbr.rel (%p19) target = $region21
  $region20: #{model_forward.43} parent=0 // pred_region
    %vm22 = vcmask 261120
    %23 = vst.msk [vmem:[#allocation2] sm:$0xff] %vm22, 0.0
  $region21: #{model_forward.43} parent=0 // pred_fallthru
    _
  %v24 = vld [vmem:[#allocation2] sm:$0xff]
  %v25 = vld [vmem:[%s0] sm:$0xf]
  %v26 = vld [vmem:[%s1] sm:$0xf]
  %v27 = vld [vmem:[%s1 + $0x4] sm:$0xf]
  %v28 = vld [vmem:[%s1 + $0x8] sm:$0xf]
  %v29 = vld [vmem:[%s1 + $0xc] sm:$0xf]
  %v34 = vunpack.c.l.b16 %v26
  %v35 = vunpack.c.l.b16 %v27
  %v36 = vunpack.c.l.b16 %v28
  %v37 = vunpack.c.l.b16 %v29
  %v38 = vpack.c.b16 %v35, %v34
  %v39 = vpack.c.b16 %v37, %v36
  %vm42 = vcmask 261120
  %v44 = vsel %vm42, %v25, 0
  %46 = vmatprep.subr.bf16.mxu0 0
  %47 = vmatpush1.bf16.msra.mxu0 %v38
  %48 = vmatprep.subr.bf16.mxu0 0
  %49 = vmatpush1.bf16.msra.mxu0 %v39
  %50 = vmatprep.subr.bf16.mxu0 0
  %51 = vmatpush1.bf16.msra.mxu0 0
  %52 = vmatprep.subr.bf16.mxu0 0
  %53 = vmatpush1.bf16.msra.mxu0 0
  %54 = vmatprep.subr.bf16.mxu0 0
  %55 = vmatpush1.bf16.msra.mxu0 0
  %56 = vmatprep.subr.bf16.mxu0 0
  %57 = vmatpush1.bf16.msra.mxu0 0
  %58 = vmatprep.subr.bf16.mxu0 0
  %59 = vmatpush1.bf16.msra.mxu0 0
  %60 = vmatprep.subr.bf16.mxu0 0
  %61 = vmatpush1.bf16.msra.mxu0 0
  %62 = vmatprep.subr.bf16.mxu0 0
  %63 = vmatpush1.bf16.msra.mxu0 0
  %64 = vmatprep.subr.bf16.mxu0 0
  %65 = vmatpush1.bf16.msra.mxu0 0
  %66 = vmatprep.subr.bf16.mxu0 0
  %67 = vmatpush1.bf16.msra.mxu0 0
  %68 = vmatprep.subr.bf16.mxu0 0
  %69 = vmatpush1.bf16.msra.mxu0 0
  %70 = vmatprep.subr.bf16.mxu0 0
  %71 = vmatpush1.bf16.msra.mxu0 0
  %72 = vmatprep.subr.bf16.mxu0 0
  %73 = vmatpush1.bf16.msra.mxu0 0
  %74 = vmatprep.subr.bf16.mxu0 0
  %75 = vmatpush1.bf16.msra.mxu0 0
  %76 = vmatprep.subr.bf16.mxu0 0
  %77 = vmatpush1.bf16.msra.mxu0 0
  %78 = vmatprep.mubr.bf16.mxu0 0
  %79 = vmatmul.mubr.bf16.gmra.mrb[0].mxu0 %v44
  %v80 = vpop.f32.mrb[0].mxu0
  %v81 = vadd.f32 0.0, %v80
  %v82 = vpop.f32.mrb[0].mxu0
  %v83 = vpop.f32.mrb[0].mxu0
  %v84 = vpop.f32.mrb[0].mxu0
  %85 = vdwg.mxu0
  %v86 = vadd.f32 %v24, %v81
  %87 = vst.msk [vmem:[#allocation2] sm:$0xff] %vm42, %v86
  // Predicated region
  $region22: #{model_forward.43} parent=0 // pred_check
    %p88 = pneg %p18
  $region23: #{model_forward.43} parent=0 // pred_check_branch
    %90 = sbr.rel (%p88) target = $region25
  $region24: #{model_forward.43} parent=0 // pred_region
    %v91 = vld [vmem:[#allocation2] sm:$0xff]
    %v92 = vld [vmem:[%s2] sm:$0x1]
    %v94 = vlaneseq
    %v95 = vshrl.u32 %v94, 7
    %v96 = vsub.s32 0, %v95
    %v97 = vrot.slane %v92, %v96
    %v99 = vadd.f32 %v91, %v97
    %v100 = vld [vmem:[%s3] sm:$0xff]
    %v101 = vadd.f32 %v99, %v100
    %102 = vst.msk [vmem:[%s4] sm:$0xff] %vm42, %v101
  $region25: #{model_forward.43} parent=0 // pred_fallthru
    _
  // Predicated region
  $region26: #{model_forward.43} parent=0 // pred_check
    _
  $region27: #{model_forward.43} parent=0 // pred_check_branch
    %104 = sbr.rel (0) target = $region29
  $region28: #{model_forward.43} parent=0 // pred_region
    _
  $region29: #{model_forward.43} parent=0 // pred_fallthru
    _
  // Predicated region
  $region30: #{model_forward.43} parent=0 // pred_check
    _
  $region31: #{model_forward.43} parent=0 // pred_check_branch
    %106 = sbr.rel (0) target = $region33
  $region32: #{model_forward.43} parent=0 // pred_region
    _
  $region33: #{model_forward.43} parent=0 // pred_fallthru
    _

// kernel: model_forward.45
$region0: #{model_forward.45}
  #allocation0 [shape = 'u32[]', space=smem, size = 0x4, offset = 0x4, fixed_abs, tag = 'smem constant byte address 0x4 - core index']
  #allocation1 [shape = 'u32[144,128]{1,0:T(1,128)}', space=vmem, size = 0x12000, scoped, tag = 'internal scratch']
  #allocation2 [shape = 'f32[8,32]{1,0:T(8,128)}', space=vmem, size = 0x1000, scoped, tag = 'scratch operand']
  %s0 = inlined_call_operand.vmem [shape: bf16[8,128], index: 0, kind: input, shape index: {}]
  %s1 = inlined_call_operand.vmem [shape: bf16[128,32], index: 1, kind: input, shape index: {}]
  %s2 = inlined_call_operand.vmem [shape: f32[1,32], index: 2, kind: input, shape index: {}]
  %s3 = inlined_call_operand.vmem [shape: f32[8,32], index: 3, kind: input, shape index: {}]
  %s4 = inlined_call_operand.vmem [shape: f32[8,32], index: 4, kind: output, shape index: {}]
  %s5 = sld [smem:[#allocation0]]
  $region34: #{model_forward.45} parent=0
    _
  %s7 = ssub.s32 1, %s5
  %s8 = scalar_select 0, %s7, %s5
  // Predicated region
  $region2: #{model_forward.45} parent=0 // pred_check
    _
  $region3: #{model_forward.45} parent=0 // pred_check_branch
    %10 = sbr.rel (0) target = $region5
  $region4: #{model_forward.45} parent=0 // pred_region
    _
  $region5: #{model_forward.45} parent=0 // pred_fallthru
    _
  // Predicated region
  $region6: #{model_forward.45} parent=0 // pred_check
    _
  $region7: #{model_forward.45} parent=0 // pred_check_branch
    %12 = sbr.rel (0) target = $region9
  $region8: #{model_forward.45} parent=0 // pred_region
    _
  $region9: #{model_forward.45} parent=0 // pred_fallthru
    _
  // Predicated region
  $region10: #{model_forward.45} parent=0 // pred_check
    _
  $region11: #{model_forward.45} parent=0 // pred_check_branch
    %14 = sbr.rel (0) target = $region13
  $region12: #{model_forward.45} parent=0 // pred_region
    _
  $region13: #{model_forward.45} parent=0 // pred_fallthru
    _
  // Predicated region
  $region14: #{model_forward.45} parent=0 // pred_check
    _
  $region15: #{model_forward.45} parent=0 // pred_check_branch
    %16 = sbr.rel (0) target = $region17
  $region16: #{model_forward.45} parent=0 // pred_region
    _
  $region17: #{model_forward.45} parent=0 // pred_fallthru
    _
  %p18 = scmp.eq.s32.totalorder 0, 0
  // Predicated region
  $region18: #{model_forward.45} parent=0 // pred_check
    %p19 = pneg %p18
  $region19: #{model_forward.45} parent=0 // pred_check_branch
    %21 = sbr.rel (%p19) target = $region21
  $region20: #{model_forward.45} parent=0 // pred_region
    %vm22 = vcmask 261120
    %23 = vst.msk [vmem:[#allocation2] sm:$0xff] %vm22, 0.0
  $region21: #{model_forward.45} parent=0 // pred_fallthru
    _
  %v24 = vld [vmem:[#allocation2] sm:$0xff]
  %v25 = vld [vmem:[%s0] sm:$0xf]
  %v26 = vld [vmem:[%s1] sm:$0xf]
  %v27 = vld [vmem:[%s1 + $0x4] sm:$0xf]
  %v28 = vld [vmem:[%s1 + $0x8] sm:$0xf]
  %v29 = vld [vmem:[%s1 + $0xc] sm:$0xf]
  %v30 = vld [vmem:[%s1 + $0x10] sm:$0xf]
  %v31 = vld [vmem:[%s1 + $0x14] sm:$0xf]
  %v32 = vld [vmem:[%s1 + $0x18] sm:$0xf]
  %v33 = vld [vmem:[%s1 + $0x1c] sm:$0xf]
  %v34 = vld [vmem:[%s1 + $0x20] sm:$0xf]
  %v35 = vld [vmem:[%s1 + $0x24] sm:$0xf]
  %v36 = vld [vmem:[%s1 + $0x28] sm:$0xf]
  %v37 = vld [vmem:[%s1 + $0x2c] sm:$0xf]
  %v38 = vld [vmem:[%s1 + $0x30] sm:$0xf]
  %v39 = vld [vmem:[%s1 + $0x34] sm:$0xf]
  %v40 = vld [vmem:[%s1 + $0x38] sm:$0xf]
  %v41 = vld [vmem:[%s1 + $0x3c] sm:$0xf]
  %v58 = vunpack.c.l.b16 %v26
  %v59 = vunpack.c.l.b16 %v27
  %v60 = vunpack.c.l.b16 %v28
  %v61 = vunpack.c.l.b16 %v29
  %v62 = vunpack.c.l.b16 %v30
  %v63 = vunpack.c.l.b16 %v31
  %v64 = vunpack.c.l.b16 %v32
  %v65 = vunpack.c.l.b16 %v33
  %v66 = vunpack.c.l.b16 %v34
  %v67 = vunpack.c.l.b16 %v35
  %v68 = vunpack.c.l.b16 %v36
  %v69 = vunpack.c.l.b16 %v37
  %v70 = vunpack.c.l.b16 %v38
  %v71 = vunpack.c.l.b16 %v39
  %v72 = vunpack.c.l.b16 %v40
  %v73 = vunpack.c.l.b16 %v41
  %v74 = vpack.c.b16 %v59, %v58
  %v75 = vpack.c.b16 %v61, %v60
  %v76 = vpack.c.b16 %v63, %v62
  %v77 = vpack.c.b16 %v65, %v64
  %v78 = vpack.c.b16 %v67, %v66
  %v79 = vpack.c.b16 %v69, %v68
  %v80 = vpack.c.b16 %v71, %v70
  %v81 = vpack.c.b16 %v73, %v72
  %90 = vmatprep.subr.bf16.mxu0 0
  %91 = vmatpush1.bf16.msra.mxu0 %v74
  %92 = vmatprep.subr.bf16.mxu0 0
  %93 = vmatpush1.bf16.msra.mxu0 %v75
  %94 = vmatprep.subr.bf16.mxu0 0
  %95 = vmatpush1.bf16.msra.mxu0 %v76
  %96 = vmatprep.subr.bf16.mxu0 0
  %97 = vmatpush1.bf16.msra.mxu0 %v77
  %98 = vmatprep.subr.bf16.mxu0 0
  %99 = vmatpush1.bf16.msra.mxu0 %v78
  %100 = vmatprep.subr.bf16.mxu0 0
  %101 = vmatpush1.bf16.msra.mxu0 %v79
  %102 = vmatprep.subr.bf16.mxu0 0
  %103 = vmatpush1.bf16.msra.mxu0 %v80
  %104 = vmatprep.subr.bf16.mxu0 0
  %105 = vmatpush1.bf16.msra.mxu0 %v81
  %106 = vmatprep.subr.bf16.mxu0 0
  %107 = vmatpush1.bf16.msra.mxu0 0
  %108 = vmatprep.subr.bf16.mxu0 0
  %109 = vmatpush1.bf16.msra.mxu0 0
  %110 = vmatprep.subr.bf16.mxu0 0
  %111 = vmatpush1.bf16.msra.mxu0 0
  %112 = vmatprep.subr.bf16.mxu0 0
  %113 = vmatpush1.bf16.msra.mxu0 0
  %114 = vmatprep.subr.bf16.mxu0 0
  %115 = vmatpush1.bf16.msra.mxu0 0
  %116 = vmatprep.subr.bf16.mxu0 0
  %117 = vmatpush1.bf16.msra.mxu0 0
  %118 = vmatprep.subr.bf16.mxu0 0
  %119 = vmatpush1.bf16.msra.mxu0 0
  %120 = vmatprep.subr.bf16.mxu0 0
  %121 = vmatpush1.bf16.msra.mxu0 0
  %122 = vmatprep.mubr.bf16.mxu0 0
  %123 = vmatmul.mubr.bf16.gmra.mrb[0].mxu0 %v25
  %v124 = vpop.f32.mrb[0].mxu0
  %v125 = vadd.f32 0.0, %v124
  %v126 = vpop.f32.mrb[0].mxu0
  %v127 = vpop.f32.mrb[0].mxu0
  %v128 = vpop.f32.mrb[0].mxu0
  %129 = vdwg.mxu0
  %v130 = vadd.f32 %v24, %v125
  %vm131 = vcmask 261120
  %132 = vst.msk [vmem:[#allocation2] sm:$0xff] %vm131, %v130
  // Predicated region
  $region22: #{model_forward.45} parent=0 // pred_check
    %p133 = pneg %p18
  $region23: #{model_forward.45} parent=0 // pred_check_branch
    %135 = sbr.rel (%p133) target = $region25
  $region24: #{model_forward.45} parent=0 // pred_region
    %v136 = vld [vmem:[#allocation2] sm:$0xff]
    %v137 = vld [vmem:[%s2] sm:$0x1]
    %v139 = vlaneseq
    %v140 = vshrl.u32 %v139, 7
    %v141 = vsub.s32 0, %v140
    %v142 = vrot.slane %v137, %v141
    %v144 = vadd.f32 %v136, %v142
    %v145 = vld [vmem:[%s3] sm:$0xff]
    %v146 = vadd.f32 %v144, %v145
    %147 = vst.msk [vmem:[%s4] sm:$0xff] %vm131, %v146
  $region25: #{model_forward.45} parent=0 // pred_fallthru
    _
  // Predicated region
  $region26: #{model_forward.45} parent=0 // pred_check
    _
  $region27: #{model_forward.45} parent=0 // pred_check_branch
    %149 = sbr.rel (0) target = $region29
  $region28: #{model_forward.45} parent=0 // pred_region
    _
  $region29: #{model_forward.45} parent=0 // pred_fallthru
    _
  // Predicated region
  $region30: #{model_forward.45} parent=0 // pred_check
    _
  $region31: #{model_forward.45} parent=0 // pred_check_branch
    %151 = sbr.rel (0) target = $region33
  $region32: #{model_forward.45} parent=0 // pred_region
    _
  $region33: #{model_forward.45} parent=0 // pred_fallthru
    _

// kernel: model_forward.51
$region0: #{model_forward.51}
  #allocation0 [shape = 'u32[]', space=smem, size = 0x4, offset = 0x4, fixed_abs, tag = 'smem constant byte address 0x4 - core index']
  #allocation1 [shape = 'u32[144,128]{1,0:T(1,128)}', space=vmem, size = 0x12000, scoped, tag = 'internal scratch']
  %s0 = inlined_call_operand.vmem [shape: f32[8,32], index: 0, kind: input, shape index: {}]
  %s1 = inlined_call_operand.vmem [shape: f32[1,32], index: 1, kind: input, shape index: {}]
  %s2 = inlined_call_operand.vmem [shape: f32[1,32], index: 2, kind: input, shape index: {}]
  %s3 = inlined_call_operand.vmem [shape: f32[8,32], index: 3, kind: output, shape index: {}]
  %s4 = sld [smem:[#allocation0]]
  $region22: #{model_forward.51} parent=0
    _
  %s6 = ssub.s32 1, %s4
  %s7 = scalar_select 0, %s6, %s4
  // Predicated region
  $region2: #{model_forward.51} parent=0 // pred_check
    _
  $region3: #{model_forward.51} parent=0 // pred_check_branch
    %9 = sbr.rel (0) target = $region5
  $region4: #{model_forward.51} parent=0 // pred_region
    _
  $region5: #{model_forward.51} parent=0 // pred_fallthru
    _
  // Predicated region
  $region6: #{model_forward.51} parent=0 // pred_check
    _
  $region7: #{model_forward.51} parent=0 // pred_check_branch
    %11 = sbr.rel (0) target = $region9
  $region8: #{model_forward.51} parent=0 // pred_region
    _
  $region9: #{model_forward.51} parent=0 // pred_fallthru
    _
  // Predicated region
  $region10: #{model_forward.51} parent=0 // pred_check
    _
  $region11: #{model_forward.51} parent=0 // pred_check_branch
    %13 = sbr.rel (0) target = $region13
  $region12: #{model_forward.51} parent=0 // pred_region
    _
  $region13: #{model_forward.51} parent=0 // pred_fallthru
    _
  %v14 = vld [vmem:[%s0] sm:$0xff]
  %vm15 = vcmask 261120
  %v16 = vsel %vm15, %v14, 0.0
  %17 = vadd.xlane.f32.xlu0 %v16
  %v18 = vpop.xlane.xlu0 %17
  %v19 = vrcp.pop 32.0
  %v20 = vmul.f32 %v18, %v19
  %v21 = vsub.f32 %v14, %v20
  %v22 = vmul.f32 %v21, %v21
  %v23 = vsel %vm15, %v22, 0.0
  %24 = vadd.xlane.f32.xlu0 %v23
  %v25 = vpop.xlane.xlu0 %24
  %v26 = vmul.f32 %v25, %v19
  %v27 = vadd.f32 %v26, 1e-05
  %v28 = vrsqrt.pop %v27
  %v29 = vmul.f32 %v21, %v28
  %v30 = vld [vmem:[%s1] sm:$0x1]
  %v32 = vlaneseq
  %v33 = vshrl.u32 %v32, 7
  %v34 = vsub.s32 0, %v33
  %v35 = vrot.slane %v30, %v34
  %v37 = vmul.f32 %v29, %v35
  %v38 = vld [vmem:[%s2] sm:$0x1]
  %v40 = vlaneseq
  %v41 = vshrl.u32 %v40, 7
  %v42 = vsub.s32 0, %v41
  %v43 = vrot.slane %v38, %v42
  %v45 = vadd.f32 %v37, %v43
  %46 = vst.msk [vmem:[%s3] sm:$0xff] %vm15, %v45
  // Predicated region
  $region14: #{model_forward.51} parent=0 // pred_check
    _
  $region15: #{model_forward.51} parent=0 // pred_check_branch
    %48 = sbr.rel (0) target = $region17
  $region16: #{model_forward.51} parent=0 // pred_region
    _
  $region17: #{model_forward.51} parent=0 // pred_fallthru
    _
  // Predicated region
  $region18: #{model_forward.51} parent=0 // pred_check
    _
  $region19: #{model_forward.51} parent=0 // pred_check_branch
    %50 = sbr.rel (0) target = $region21
  $region20: #{model_forward.51} parent=0 // pred_region
    _
  $region21: #{model_forward.51} parent=0 // pred_fallthru
    _

// kernel: model_forward.53
$region0: #{model_forward.53}
  #allocation0 [shape = 'u32[]', space=smem, size = 0x4, offset = 0x4, fixed_abs, tag = 'smem constant byte address 0x4 - core index']
  #allocation1 [shape = 'u32[144,128]{1,0:T(1,128)}', space=vmem, size = 0x12000, scoped, tag = 'internal scratch']
  #allocation2 [shape = 'f32[32,4]{1,0:T(8,128)}', space=vmem, size = 0x4000, scoped, tag = 'scratch operand']
  %s0 = inlined_call_operand.vmem [shape: f32[32,8], index: 0, kind: input, shape index: {}]
  %s1 = inlined_call_operand.vmem [shape: bf16[8,4], index: 1, kind: input, shape index: {}]
  %s2 = inlined_call_operand.vmem [shape: f32[1,4], index: 2, kind: input, shape index: {}]
  %s3 = inlined_call_operand.vmem [shape: f32[32,4], index: 3, kind: output, shape index: {}]
  %s4 = sld [smem:[#allocation0]]
  $region30: #{model_forward.53} parent=0
    _
  %s6 = ssub.s32 1, %s4
  %s7 = scalar_select 0, %s6, %s4
  // Predicated region
  $region2: #{model_forward.53} parent=0 // pred_check
    _
  $region3: #{model_forward.53} parent=0 // pred_check_branch
    %9 = sbr.rel (0) target = $region5
  $region4: #{model_forward.53} parent=0 // pred_region
    _
  $region5: #{model_forward.53} parent=0 // pred_fallthru
    _
  // Predicated region
  $region6: #{model_forward.53} parent=0 // pred_check
    _
  $region7: #{model_forward.53} parent=0 // pred_check_branch
    %11 = sbr.rel (0) target = $region9
  $region8: #{model_forward.53} parent=0 // pred_region
    _
  $region9: #{model_forward.53} parent=0 // pred_fallthru
    _
  // Predicated region
  $region10: #{model_forward.53} parent=0 // pred_check
    _
  $region11: #{model_forward.53} parent=0 // pred_check_branch
    %13 = sbr.rel (0) target = $region13
  $region12: #{model_forward.53} parent=0 // pred_region
    _
  $region13: #{model_forward.53} parent=0 // pred_fallthru
    _
  %p15 = scmp.eq.s32.totalorder 0, 0
  // Predicated region
  $region14: #{model_forward.53} parent=0 // pred_check
    %p16 = pneg %p15
  $region15: #{model_forward.53} parent=0 // pred_check_branch
    %18 = sbr.rel (%p16) target = $region17
  $region16: #{model_forward.53} parent=0 // pred_region
    %vm19 = vcmask 31744
    %20 = vst.msk [vmem:[#allocation2] sm:$0xff] %vm19, 0.0
    %21 = vst.msk [vmem:[#allocation2 + $0x8] sm:$0xff] %vm19, 0.0
    %22 = vst.msk [vmem:[#allocation2 + $0x10] sm:$0xff] %vm19, 0.0
    %23 = vst.msk [vmem:[#allocation2 + $0x18] sm:$0xff] %vm19, 0.0
  $region17: #{model_forward.53} parent=0 // pred_fallthru
    _
  %v24 = vld [vmem:[#allocation2] sm:$0xff]
  %v25 = vld [vmem:[#allocation2 + $0x8] sm:$0xff]
  %v26 = vld [vmem:[#allocation2 + $0x10] sm:$0xff]
  %v27 = vld [vmem:[#allocation2 + $0x18] sm:$0xff]
  %v28 = vld [vmem:[%s0] sm:$0xff]
  %v29 = vld [vmem:[%s0 + $0x8] sm:$0xff]
  %v30 = vld [vmem:[%s0 + $0x10] sm:$0xff]
  %v31 = vld [vmem:[%s0 + $0x18] sm:$0xff]
  %v32 = vpack.c.bf16 %v29, %v28
  %v33 = vpack.c.bf16 %v31, %v30
  %v34 = vld [vmem:[%s1] sm:$0xf]
  %vm35 = vcmask 64512
  %v37 = vsel %vm35, %v32, 0
  %v40 = vsel %vm35, %v33, 0
  %vm42 = vcmask 1043456
  %v44 = vsel %vm42, %v34, 0
  %46 = vmatprep.subr.bf16.mxu0 0
  %47 = vmatpush1.bf16.msra.mxu0 %v44
  %48 = vmatprep.subr.bf16.mxu0 0
  %49 = vmatpush1.bf16.msra.mxu0 0
  %50 = vmatprep.subr.bf16.mxu0 0
  %51 = vmatpush1.bf16.msra.mxu0 0
  %52 = vmatprep.subr.bf16.mxu0 0
  %53 = vmatpush1.bf16.msra.mxu0 0
  %54 = vmatprep.subr.bf16.mxu0 0
  %55 = vmatpush1.bf16.msra.mxu0 0
  %56 = vmatprep.subr.bf16.mxu0 0
  %57 = vmatpush1.bf16.msra.mxu0 0
  %58 = vmatprep.subr.bf16.mxu0 0
  %59 = vmatpush1.bf16.msra.mxu0 0
  %60 = vmatprep.subr.bf16.mxu0 0
  %61 = vmatpush1.bf16.msra.mxu0 0
  %62 = vmatprep.subr.bf16.mxu0 0
  %63 = vmatpush1.bf16.msra.mxu0 0
  %64 = vmatprep.subr.bf16.mxu0 0
  %65 = vmatpush1.bf16.msra.mxu0 0
  %66 = vmatprep.subr.bf16.mxu0 0
  %67 = vmatpush1.bf16.msra.mxu0 0
  %68 = vmatprep.subr.bf16.mxu0 0
  %69 = vmatpush1.bf16.msra.mxu0 0
  %70 = vmatprep.subr.bf16.mxu0 0
  %71 = vmatpush1.bf16.msra.mxu0 0
  %72 = vmatprep.subr.bf16.mxu0 0
  %73 = vmatpush1.bf16.msra.mxu0 0
  %74 = vmatprep.subr.bf16.mxu0 0
  %75 = vmatpush1.bf16.msra.mxu0 0
  %76 = vmatprep.subr.bf16.mxu0 0
  %77 = vmatpush1.bf16.msra.mxu0 0
  %78 = vmatprep.mubr.bf16.mxu0 0
  %79 = vmatmul.mubr.bf16.gmra.mrb[0].mxu0 %v37
  %v80 = vpop.f32.mrb[0].mxu0
  %v81 = vadd.f32 0.0, %v80
  %v82 = vpop.f32.mrb[0].mxu0
  %v83 = vpop.f32.mrb[0].mxu0
  %v84 = vadd.f32 0.0, %v83
  %v85 = vpop.f32.mrb[0].mxu0
  %86 = vmatprep.mubr.bf16.mxu0 0
  %87 = vmatmul.mubr.bf16.gmra.mrb[0].mxu0 %v40
  %v88 = vpop.f32.mrb[0].mxu0
  %v89 = vadd.f32 0.0, %v88
  %v90 = vpop.f32.mrb[0].mxu0
  %v91 = vpop.f32.mrb[0].mxu0
  %v92 = vadd.f32 0.0, %v91
  %v93 = vpop.f32.mrb[0].mxu0
  %94 = vdwg.mxu0
  %v95 = vadd.f32 %v24, %v81
  %v96 = vadd.f32 %v25, %v84
  %v97 = vadd.f32 %v26, %v89
  %v98 = vadd.f32 %v27, %v92
  %vm99 = vcmask 31744
  %100 = vst.msk [vmem:[#allocation2] sm:$0xff] %vm99, %v95
  %101 = vst.msk [vmem:[#allocation2 + $0x8] sm:$0xff] %vm99, %v96
  %102 = vst.msk [vmem:[#allocation2 + $0x10] sm:$0xff] %vm99, %v97
  %103 = vst.msk [vmem:[#allocation2 + $0x18] sm:$0xff] %vm99, %v98
  // Predicated region
  $region18: #{model_forward.53} parent=0 // pred_check
    %p104 = pneg %p15
  $region19: #{model_forward.53} parent=0 // pred_check_branch
    %106 = sbr.rel (%p104) target = $region21
  $region20: #{model_forward.53} parent=0 // pred_region
    %v107 = vld [vmem:[#allocation2] sm:$0xff]
    %v108 = vld [vmem:[#allocation2 + $0x8] sm:$0xff]
    %v109 = vld [vmem:[#allocation2 + $0x10] sm:$0xff]
    %v110 = vld [vmem:[#allocation2 + $0x18] sm:$0xff]
    %v111 = vld [vmem:[%s2] sm:$0x1]
    %v113 = vlaneseq
    %v114 = vshrl.u32 %v113, 7
    %v115 = vsub.s32 0, %v114
    %v116 = vrot.slane %v111, %v115
    %v118 = vadd.f32 %v107, %v116
    %v119 = vadd.f32 %v108, %v116
    %v120 = vadd.f32 %v109, %v116
    %v121 = vadd.f32 %v110, %v116
    %122 = vst.msk [vmem:[%s3] sm:$0xff] %vm99, %v118
    %123 = vst.msk [vmem:[%s3 + $0x8] sm:$0xff] %vm99, %v119
    %124 = vst.msk [vmem:[%s3 + $0x10] sm:$0xff] %vm99, %v120
    %125 = vst.msk [vmem:[%s3 + $0x18] sm:$0xff] %vm99, %v121
  $region21: #{model_forward.53} parent=0 // pred_fallthru
    _
  // Predicated region
  $region22: #{model_forward.53} parent=0 // pred_check
    _
  $region23: #{model_forward.53} parent=0 // pred_check_branch
    %127 = sbr.rel (0) target = $region25
  $region24: #{model_forward.53} parent=0 // pred_region
    _
  $region25: #{model_forward.53} parent=0 // pred_fallthru
    _
  // Predicated region
  $region26: #{model_forward.53} parent=0 // pred_check
    _
  $region27: #{model_forward.53} parent=0 // pred_check_branch
    %129 = sbr.rel (0) target = $region29
  $region28: #{model_forward.53} parent=0 // pred_region
    _
  $region29: #{model_forward.53} parent=0 // pred_fallthru
    _

// kernel: model_forward.52
$region0: #{model_forward.52}
  #allocation0 [shape = 'u32[]', space=smem, size = 0x4, offset = 0x4, fixed_abs, tag = 'smem constant byte address 0x4 - core index']
  #allocation1 [shape = 'u32[144,128]{1,0:T(1,128)}', space=vmem, size = 0x12000, scoped, tag = 'internal scratch']
  %s0 = inlined_call_operand.vmem [shape: f32[8,32], index: 0, kind: input, shape index: {}]
  %s1 = inlined_call_operand.vmem [shape: f32[1,32], index: 1, kind: input, shape index: {}]
  %s2 = inlined_call_operand.vmem [shape: f32[1,32], index: 2, kind: input, shape index: {}]
  %s3 = inlined_call_operand.vmem [shape: bf16[32,16], index: 3, kind: input, shape index: {}]
  %s4 = inlined_call_operand.vmem [shape: f32[1,16], index: 4, kind: input, shape index: {}]
  %s5 = inlined_call_operand.vmem [shape: f32[8,16], index: 5, kind: output, shape index: {}]
  %s6 = sld [smem:[#allocation0]]
  $region30: #{model_forward.52} parent=0
    _
  %s8 = ssub.s32 1, %s6
  %s9 = scalar_select 0, %s8, %s6
  // Predicated region
  $region2: #{model_forward.52} parent=0 // pred_check
    _
  $region3: #{model_forward.52} parent=0 // pred_check_branch
    %11 = sbr.rel (0) target = $region5
  $region4: #{model_forward.52} parent=0 // pred_region
    _
  $region5: #{model_forward.52} parent=0 // pred_fallthru
    _
  // Predicated region
  $region6: #{model_forward.52} parent=0 // pred_check
    _
  $region7: #{model_forward.52} parent=0 // pred_check_branch
    %13 = sbr.rel (0) target = $region9
  $region8: #{model_forward.52} parent=0 // pred_region
    _
  $region9: #{model_forward.52} parent=0 // pred_fallthru
    _
  // Predicated region
  $region10: #{model_forward.52} parent=0 // pred_check
    _
  $region11: #{model_forward.52} parent=0 // pred_check_branch
    %15 = sbr.rel (0) target = $region13
  $region12: #{model_forward.52} parent=0 // pred_region
    _
  $region13: #{model_forward.52} parent=0 // pred_fallthru
    _
  // Predicated region
  $region14: #{model_forward.52} parent=0 // pred_check
    _
  $region15: #{model_forward.52} parent=0 // pred_check_branch
    %17 = sbr.rel (0) target = $region17
  $region16: #{model_forward.52} parent=0 // pred_region
    _
  $region17: #{model_forward.52} parent=0 // pred_fallthru
    _
  // Predicated region
  $region18: #{model_forward.52} parent=0 // pred_check
    _
  $region19: #{model_forward.52} parent=0 // pred_check_branch
    %19 = sbr.rel (0) target = $region21
  $region20: #{model_forward.52} parent=0 // pred_region
    _
  $region21: #{model_forward.52} parent=0 // pred_fallthru
    _
  %v21 = vld [vmem:[%s0] sm:$0xff]
  %vm22 = vcmask 261120
  %v23 = vsel %vm22, %v21, 0.0
  %24 = vadd.xlane.f32.xlu0 %v23
  %v25 = vpop.xlane.xlu0 %24
  %v26 = vrcp.pop 32.0
  %v27 = vmul.f32 %v25, %v26
  %v28 = vsub.f32 %v21, %v27
  %v29 = vmul.f32 %v28, %v28
  %v30 = vsel %vm22, %v29, 0.0
  %31 = vadd.xlane.f32.xlu0 %v30
  %v32 = vpop.xlane.xlu0 %31
  %v33 = vmul.f32 %v32, %v26
  %v34 = vadd.f32 %v33, 1e-05
  %v35 = vrsqrt.pop %v34
  %v36 = vmul.f32 %v28, %v35
  %v37 = vld [vmem:[%s1] sm:$0x1]
  %v39 = vlaneseq
  %v40 = vshrl.u32 %v39, 7
  %v41 = vsub.s32 0, %v40
  %v42 = vrot.slane %v37, %v41
  %v44 = vmul.f32 %v36, %v42
  %v45 = vld [vmem:[%s2] sm:$0x1]
  %v47 = vlaneseq
  %v48 = vshrl.u32 %v47, 7
  %v49 = vsub.s32 0, %v48
  %v50 = vrot.slane %v45, %v49
  %v52 = vadd.f32 %v44, %v50
  %v53 = vpack.c.bf16 %v52, %v52
  %v54 = vld [vmem:[%s3] sm:$0xf]
  %v55 = vld [vmem:[%s3 + $0x4] sm:$0xf]
  %v56 = vld [vmem:[%s3 + $0x8] sm:$0xf]
  %v57 = vld [vmem:[%s3 + $0xc] sm:$0xf]
  %v58 = vld [vmem:[%s4] sm:$0x1]
  %v60 = vlaneseq
  %v61 = vshrl.u32 %v60, 7
  %v62 = vsub.s32 0, %v61
  %v63 = vrot.slane %v58, %v62
  %v69 = vunpack.c.l.b16 %v54
  %v70 = vunpack.c.l.b16 %v55
  %v71 = vunpack.c.l.b16 %v56
  %v72 = vunpack.c.l.b16 %v57
  %v73 = vpack.c.b16 %v70, %v69
  %v74 = vpack.c.b16 %v72, %v71
  %v78 = vsel %vm22, %v53, 0
  %80 = vmatprep.subr.bf16.mxu0 0
  %81 = vmatpush1.bf16.msra.mxu0 %v73
  %82 = vmatprep.subr.bf16.mxu0 0
  %83 = vmatpush1.bf16.msra.mxu0 %v74
  %84 = vmatprep.subr.bf16.mxu0 0
  %85 = vmatpush1.bf16.msra.mxu0 0
  %86 = vmatprep.subr.bf16.mxu0 0
  %87 = vmatpush1.bf16.msra.mxu0 0
  %88 = vmatprep.subr.bf16.mxu0 0
  %89 = vmatpush1.bf16.msra.mxu0 0
  %90 = vmatprep.subr.bf16.mxu0 0
  %91 = vmatpush1.bf16.msra.mxu0 0
  %92 = vmatprep.subr.bf16.mxu0 0
  %93 = vmatpush1.bf16.msra.mxu0 0
  %94 = vmatprep.subr.bf16.mxu0 0
  %95 = vmatpush1.bf16.msra.mxu0 0
  %96 = vmatprep.subr.bf16.mxu0 0
  %97 = vmatpush1.bf16.msra.mxu0 0
  %98 = vmatprep.subr.bf16.mxu0 0
  %99 = vmatpush1.bf16.msra.mxu0 0
  %100 = vmatprep.subr.bf16.mxu0 0
  %101 = vmatpush1.bf16.msra.mxu0 0
  %102 = vmatprep.subr.bf16.mxu0 0
  %103 = vmatpush1.bf16.msra.mxu0 0
  %104 = vmatprep.subr.bf16.mxu0 0
  %105 = vmatpush1.bf16.msra.mxu0 0
  %106 = vmatprep.subr.bf16.mxu0 0
  %107 = vmatpush1.bf16.msra.mxu0 0
  %108 = vmatprep.subr.bf16.mxu0 0
  %109 = vmatpush1.bf16.msra.mxu0 0
  %110 = vmatprep.subr.bf16.mxu0 0
  %111 = vmatpush1.bf16.msra.mxu0 0
  %112 = vmatprep.mubr.bf16.mxu0 0
  %113 = vmatmul.mubr.bf16.gmra.mrb[0].mxu0 %v78
  %v114 = vpop.f32.mrb[0].mxu0
  %v115 = vadd.f32 %v63, %v114
  %v116 = vpop.f32.mrb[0].mxu0
  %v117 = vpop.f32.mrb[0].mxu0
  %v118 = vpop.f32.mrb[0].mxu0
  %119 = vdwg.mxu0
  %vm120 = vcmask 130048
  %121 = vst.msk [vmem:[%s5] sm:$0xff] %vm120, %v115
  // Predicated region
  $region22: #{model_forward.52} parent=0 // pred_check
    _
  $region23: #{model_forward.52} parent=0 // pred_check_branch
    %123 = sbr.rel (0) target = $region25
  $region24: #{model_forward.52} parent=0 // pred_region
    _
  $region25: #{model_forward.52} parent=0 // pred_fallthru
    _
  // Predicated region
  $region26: #{model_forward.52} parent=0 // pred_check
    _
  $region27: #{model_forward.52} parent=0 // pred_check_branch
    %125 = sbr.rel (0) target = $region29
  $region28: #{model_forward.52} parent=0 // pred_region
    _
  $region29: #{model_forward.52} parent=0 // pred_fallthru
    _

</llo_original>
